<compile_context>
chip_gen: v7x
topology: tpu7x:2x2x1
jax: 0.10.0
libtpu: 0.0.40
codegen_flags: <defaults>
</compile_context>

<pallas_src>
import functools

import jax
import jax.numpy as jnp
from jax.experimental import pallas as pl
from jax.experimental.pallas import tpu as pltpu

MP_SUM = "sum"
MP_MEAN = "mean"
READOUT_SUM = "sum"
READOUT_MEAN = "mean"

_TILE_K = 128  # neighbor-tile (lane-width) for the streamed adjacency


# ------------------------------ Pallas kernel ------------------------------ #

def _gnn_kernel(x_ref, adj_ref, idx_ref, inv_deg_ref, inv_cnt_ref,
                w1a_ref, b1a_ref, w2a_ref, b2a_ref,
                w1b_ref, b1b_ref, w2b_ref, b2b_ref,
                wf_ref, bf_ref,
                o_ref,
                h_ref, m_ref,
                *, neighbor_aggr, readout, tile_k, num_graphs):
    layer = pl.program_id(0)          # 0 / 1 : which MessagePassing layer
    k = pl.program_id(1)              # neighbor-tile index
    nk = pl.num_programs(1)

    # Streamed bf16 adjacency tile [N, tile_k]; upcast once in-register.
    adj_tile = adj_ref[...].astype(jnp.float32)

    @pl.when(k == 0)
    def _():                          # fresh message accumulator per layer
        m_ref[...] = jnp.zeros_like(m_ref)

    start = pl.multiple_of(k * tile_k, tile_k)

    # ---- neighbour projection for this k-tile + partial adj matmul ---- #
    @pl.when(layer == 0)
    def _():
        xt = x_ref[pl.ds(start, tile_k), :]                         # [tk, D_in]
        nb = jnp.dot(xt, w2a_ref[...],
                     preferred_element_type=jnp.float32) + b2a_ref[...]
        m_ref[...] += jnp.dot(adj_tile, nb,
                              preferred_element_type=jnp.float32)

    @pl.when(layer == 1)
    def _():
        ht = h_ref[pl.ds(start, tile_k), :]                         # [tk, H]
        nb = jnp.dot(ht, w2b_ref[...],
                     preferred_element_type=jnp.float32) + b2b_ref[...]
        m_ref[...] += jnp.dot(adj_tile, nb,
                              preferred_element_type=jnp.float32)

    # ---- per-layer finalisation: node projection + aggregation + ReLU ---- #
    def aggregated_messages():
        m = m_ref[...]
        if neighbor_aggr == MP_MEAN:
            # host-precomputed 1/deg (matches torch: inf for isolated nodes)
            m = m * inv_deg_ref[...]
        return m

    @pl.when(jnp.logical_and(layer == 0, k == nk - 1))
    def _():
        x_node = jnp.dot(x_ref[...], w1a_ref[...],
                         preferred_element_type=jnp.float32) + b1a_ref[...]
        # dropout: eval mode -> identity (see TODO at top)
        h_ref[...] = jnp.maximum(x_node + aggregated_messages(), 0.0)

    @pl.when(jnp.logical_and(layer == 1, k == nk - 1))
    def _():
        x_node = jnp.dot(h_ref[...], w1b_ref[...],
                         preferred_element_type=jnp.float32) + b1b_ref[...]
        h2 = jnp.maximum(x_node + aggregated_messages(), 0.0)      # [N, H]

        # Readout (scatter_add over graph ids expressed as one-hot @ h2).
        idx = idx_ref[...]                                          # [1, N]
        seg = jax.lax.broadcasted_iota(jnp.int32,
                                       (num_graphs, idx.shape[1]), 0)
        onehot = (seg == idx).astype(jnp.float32)                   # [G, N]
        pooled = jnp.dot(onehot, h2, preferred_element_type=jnp.float32)
        if readout == READOUT_MEAN:
            pooled = pooled * inv_cnt_ref[...]     # host-precomputed 1/count
        o_ref[...] = (jnp.dot(pooled, wf_ref[...],
                              preferred_element_type=jnp.float32) + bf_ref[...])


# ------------------------- one-time host preprocessing --------------------- #

def gnn_preprocess(params, adj, idx, num_graphs):
    """Hoisted out of the per-call wrapper: bf16 adj, 1/deg, 1/count, reshapes."""
    n = adj.shape[0]
    deg = jnp.sum(adj.astype(jnp.float32), axis=1, keepdims=True)   # [N, 1]
    inv_deg = 1.0 / deg                 # inf for degree-0 nodes (ref semantics)
    counts = jax.ops.segment_sum(jnp.ones((n,), jnp.float32), idx,
                                 num_segments=num_graphs).reshape(num_graphs, 1)
    inv_counts = 1.0 / counts           # inf for empty graphs (ref semantics)
    return dict(
        adj_bf16=adj.astype(jnp.bfloat16),
        idx=idx.reshape(1, -1).astype(jnp.int32),
        inv_deg=inv_deg, inv_counts=inv_counts,
        w1a=params["mp1_w1"], b1a=params["mp1_b1"].reshape(1, -1),
        w2a=params["mp1_w2"], b2a=params["mp1_b2"].reshape(1, -1),
        w1b=params["mp2_w1"], b1b=params["mp2_b1"].reshape(1, -1),
        w2b=params["mp2_w2"], b2b=params["mp2_b2"].reshape(1, -1),
        wf=params["fc_w"], bf=params["fc_b"].reshape(1, -1),
    )


# ------------------------------ host wrapper ------------------------------- #

def gnn_forward(prep, x, neighbor_aggr, readout, num_graphs, *, tile_k=_TILE_K):
    n, d_in = x.shape
    h_dim = prep["w1a"].shape[1]
    out_dim = prep["wf"].shape[1]
    assert n % tile_k == 0, "node count must be a multiple of the neighbor tile"
    nk = n // tile_k

    def resident(shape):
        return pl.BlockSpec(shape, lambda l, k, _s=len(shape): (0,) * _s)

    in_specs = [
        resident((n, d_in)),                              # x
        pl.BlockSpec((n, tile_k), lambda l, k: (0, k)),   # adj: streamed bf16
        resident((1, n)),                                 # idx (graph ids)
        resident((n, 1)),                                 # inv_deg
        resident((num_graphs, 1)),                        # inv_counts
        resident((d_in, h_dim)), resident((1, h_dim)),    # mp1.fc1
        resident((d_in, h_dim)), resident((1, h_dim)),    # mp1.fc2
        resident((h_dim, h_dim)), resident((1, h_dim)),   # mp2.fc1
        resident((h_dim, h_dim)), resident((1, h_dim)),   # mp2.fc2
        resident((h_dim, out_dim)), resident((1, out_dim)),  # fc
    ]

    # Explicit VMEM budget: double-buffered bf16 adj tile + resident scratch
    # + resident small arrays, with headroom.
    vmem_bytes = (2 * n * tile_k * 2          # adj tile, double-buffered, bf16
                  + 2 * n * h_dim * 4         # h + m scratch
                  + n * (d_in + 3) * 4        # x, inv_deg, idx
                  + 4 * 1024 * 1024)          # weights / output / headroom
    vmem_bytes = int(min(vmem_bytes, 96 * 1024 * 1024))

    kernel = functools.partial(_gnn_kernel,
                               neighbor_aggr=neighbor_aggr, readout=readout,
                               tile_k=tile_k, num_graphs=num_graphs)

    return pl.pallas_call(
        kernel,
        out_shape=jax.ShapeDtypeStruct((num_graphs, out_dim), jnp.float32),
        grid_spec=pltpu.PrefetchScalarGridSpec(
            num_scalar_prefetch=0,
            grid=(2, nk),                      # (layer, neighbor-tile) — layer outermost
            in_specs=in_specs,
            out_specs=pl.BlockSpec((num_graphs, out_dim), lambda l, k: (0, 0)),
            scratch_shapes=[pltpu.VMEM((n, h_dim), jnp.float32),   # h (layer output)
                            pltpu.VMEM((n, h_dim), jnp.float32)],  # m (message acc)
        ),
        compiler_params=pltpu.CompilerParams(
            # Both axes must be sequential: layer 1 consumes every row of the
            # layer-0 output held in scratch, and the output block is revisited.
            dimension_semantics=("arbitrary", "arbitrary"),
            vmem_limit_bytes=vmem_bytes),
    )(x, prep["adj_bf16"], prep["idx"], prep["inv_deg"], prep["inv_counts"],
      prep["w1a"], prep["b1a"], prep["w2a"], prep["b2a"],
      prep["w1b"], prep["b1b"], prep["w2b"], prep["b2b"],
      prep["wf"], prep["bf"])


# ------------------------------ pure-JAX ref -------------------------------- #

def _mp_ref(x, adj, w1, b1, w2, b2, neighbor_aggr):
    x_node = x @ w1 + b1
    m = adj @ (x @ w2 + b2)
    if neighbor_aggr == MP_MEAN:
        deg = adj @ jnp.ones((x.shape[0], 1), jnp.float32)
        m = m / deg
    return x_node + m


def gnn_ref(params, x, adj, idx, neighbor_aggr, readout, num_graphs):
    h = jax.nn.relu(_mp_ref(x, adj, params["mp1_w1"], params["mp1_b1"],
                            params["mp1_w2"], params["mp1_b2"], neighbor_aggr))
    h = jax.nn.relu(_mp_ref(h, adj, params["mp2_w1"], params["mp2_b1"],
                            params["mp2_w2"], params["mp2_b2"], neighbor_aggr))
    pooled = jax.ops.segment_sum(h, idx, num_segments=num_graphs)
    if readout == READOUT_MEAN:
        count = jax.ops.segment_sum(jnp.ones((h.shape[0],), jnp.float32), idx,
                                    num_segments=num_graphs)
        pooled = pooled / count[:, None]
    return pooled @ params["fc_w"] + params["fc_b"]


# --------------------------------- main ------------------------------------ #

if __name__ == "__main__":
    input_dim, hidden_dim, output_dim = 16, 32, 8
    nodes_per_graph, num_graphs = 32, 8
    n = nodes_per_graph * num_graphs          # 256 nodes -> 2 adj tiles of 128

    key = jax.random.PRNGKey(0)
    keys = jax.random.split(key, 8)

    def lin(kw, d_in, d_out):
        w = jax.random.normal(kw, (d_in, d_out), jnp.float32) * (1.0 / jnp.sqrt(d_in))
        b = jnp.linspace(-0.1, 0.1, d_out, dtype=jnp.float32)
        return w, b

    mp1_w1, mp1_b1 = lin(keys[0], input_dim, hidden_dim)
    mp1_w2, mp1_b2 = lin(keys[1], input_dim, hidden_dim)
    mp2_w1, mp2_b1 = lin(keys[2], hidden_dim, hidden_dim)
    mp2_w2, mp2_b2 = lin(keys[3], hidden_dim, hidden_dim)
    fc_w, fc_b = lin(keys[4], hidden_dim, output_dim)
    params = dict(mp1_w1=mp1_w1, mp1_b1=mp1_b1, mp1_w2=mp1_w2, mp1_b2=mp1_b2,
                  mp2_w1=mp2_w1, mp2_b1=mp2_b1, mp2_w2=mp2_w2, mp2_b2=mp2_b2,
                  fc_w=fc_w, fc_b=fc_b)

    # node features
    x = jax.random.normal(keys[5], (n, input_dim), jnp.float32)

    # block-diagonal adjacency: ring inside each graph, symmetric, no self loops
    base = jnp.arange(num_graphs, dtype=jnp.int32) * nodes_per_graph
    loc = jnp.arange(nodes_per_graph, dtype=jnp.int32)
    src = (base[:, None] + loc[None, :]).reshape(-1)
    dst = (base[:, None] + (loc + 1) % nodes_per_graph).reshape(-1)
    adj = jnp.zeros((n, n), jnp.float32)
    adj = adj.at[src, dst].set(1.0)
    adj = adj.at[dst, src].set(1.0)

    # graph-id per node
    idx = jnp.repeat(jnp.arange(num_graphs, dtype=jnp.int32), nodes_per_graph)

    ok = True
    for neighbor_aggr in (MP_SUM, MP_MEAN):
        for readout in (READOUT_SUM, READOUT_MEAN):
            prep = gnn_preprocess(params, adj, idx, num_graphs)
            out = gnn_forward(prep, x, neighbor_aggr, readout, num_graphs)
            out = jax.block_until_ready(out)
            ref = gnn_ref(params, x, adj, idx, neighbor_aggr, readout, num_graphs)
            assert out.shape == (num_graphs, output_dim)
            ok &= bool(jnp.allclose(out, ref, atol=1e-4, rtol=1e-4))

    assert ok, "mismatch vs pure-JAX reference"
    print("KERNEL_OK")
</pallas_src>

<mosaic_0001>
module attributes {stable_mosaic.version = 11 : i64} {
  func.func @_gnn_kernel(%arg0: i32, %arg1: i32, %arg2: memref<256x16xf32, #tpu.memory_space<vmem>>, %arg3: memref<256x128xbf16, #tpu.memory_space<vmem>>, %arg4: memref<1x256xi32, #tpu.memory_space<vmem>>, %arg5: memref<256x1xf32, #tpu.memory_space<vmem>>, %arg6: memref<8x1xf32, #tpu.memory_space<vmem>>, %arg7: memref<16x32xf32, #tpu.memory_space<vmem>>, %arg8: memref<1x32xf32, #tpu.memory_space<vmem>>, %arg9: memref<16x32xf32, #tpu.memory_space<vmem>>, %arg10: memref<1x32xf32, #tpu.memory_space<vmem>>, %arg11: memref<32x32xf32, #tpu.memory_space<vmem>>, %arg12: memref<1x32xf32, #tpu.memory_space<vmem>>, %arg13: memref<32x32xf32, #tpu.memory_space<vmem>>, %arg14: memref<1x32xf32, #tpu.memory_space<vmem>>, %arg15: memref<32x8xf32, #tpu.memory_space<vmem>>, %arg16: memref<1x8xf32, #tpu.memory_space<vmem>>, %arg17: memref<8x8xf32, #tpu.memory_space<vmem>>, %arg18: memref<256x32xf32, #tpu.memory_space<vmem>>, %arg19: memref<256x32xf32, #tpu.memory_space<vmem>>) attributes {dimension_semantics = [#tpu.dimension_semantics<arbitrary>, #tpu.dimension_semantics<arbitrary>], iteration_bounds = array<i64: 2, 2>, scalar_prefetch = 0 : i64, scratch_operands = 2 : i64, tpu.core_type = #tpu.core_type<tc>, window_params = [{pipeline_mode = #tpu.pipeline_mode<synchronous>, transform_indices = @transform_0, window_bounds = array<i64: 256, 16>}, {transform_indices = @transform_1, window_bounds = array<i64: 256, 128>}, {pipeline_mode = #tpu.pipeline_mode<synchronous>, transform_indices = @transform_2, window_bounds = array<i64: 1, 256>}, {pipeline_mode = #tpu.pipeline_mode<synchronous>, transform_indices = @transform_3, window_bounds = array<i64: 256, 1>}, {pipeline_mode = #tpu.pipeline_mode<synchronous>, transform_indices = @transform_4, window_bounds = array<i64: 8, 1>}, {pipeline_mode = #tpu.pipeline_mode<synchronous>, transform_indices = @transform_5, window_bounds = array<i64: 16, 32>}, {pipeline_mode = #tpu.pipeline_mode<synchronous>, transform_indices = @transform_6, window_bounds = array<i64: 1, 32>}, {pipeline_mode = #tpu.pipeline_mode<synchronous>, transform_indices = @transform_7, window_bounds = array<i64: 16, 32>}, {pipeline_mode = #tpu.pipeline_mode<synchronous>, transform_indices = @transform_8, window_bounds = array<i64: 1, 32>}, {pipeline_mode = #tpu.pipeline_mode<synchronous>, transform_indices = @transform_9, window_bounds = array<i64: 32, 32>}, {pipeline_mode = #tpu.pipeline_mode<synchronous>, transform_indices = @transform_10, window_bounds = array<i64: 1, 32>}, {pipeline_mode = #tpu.pipeline_mode<synchronous>, transform_indices = @transform_11, window_bounds = array<i64: 32, 32>}, {pipeline_mode = #tpu.pipeline_mode<synchronous>, transform_indices = @transform_12, window_bounds = array<i64: 1, 32>}, {pipeline_mode = #tpu.pipeline_mode<synchronous>, transform_indices = @transform_13, window_bounds = array<i64: 32, 8>}, {pipeline_mode = #tpu.pipeline_mode<synchronous>, transform_indices = @transform_14, window_bounds = array<i64: 1, 8>}, {pipeline_mode = #tpu.pipeline_mode<synchronous>, transform_indices = @transform_15, window_bounds = array<i64: 8, 8>}]} {
    %c0 = arith.constant 0 : index
    %c0_0 = arith.constant 0 : index
    %0 = vector.load %arg3[%c0, %c0_0] : memref<256x128xbf16, #tpu.memory_space<vmem>>, vector<256x128xbf16>
    %1 = arith.extf %0 : vector<256x128xbf16> to vector<256x128xf32>
    %c0_i32 = arith.constant 0 : i32
    %2 = arith.cmpi eq, %arg1, %c0_i32 : i32
    %3 = arith.extui %2 : i1 to i32
    %c0_i32_1 = arith.constant 0 : i32
    %4 = arith.cmpi ne, %3, %c0_i32_1 : i32
    scf.if %4 {
      %cst = arith.constant 0.000000e+00 : f32
      %23 = vector.broadcast %cst : f32 to vector<256x32xf32>
      %c0_11 = arith.constant 0 : index
      %c0_12 = arith.constant 0 : index
      %24 = vector.load %arg19[%c0_11, %c0_12] : memref<256x32xf32, #tpu.memory_space<vmem>>, vector<256x32xf32>
      tpu.vector_store %arg19[%c0_11, %c0_12], %23 {strides = array<i32>} : memref<256x32xf32, #tpu.memory_space<vmem>>, vector<256x32xf32>,
    } else {
    }
    %c128_i32 = arith.constant 128 : i32
    %5 = arith.muli %arg1, %c128_i32 : i32
    %6 = tpu.assume_multiple %5, 128 : i32
    %c0_i32_2 = arith.constant 0 : i32
    %7 = arith.cmpi eq, %arg0, %c0_i32_2 : i32
    %8 = arith.extui %7 : i1 to i32
    %c0_i32_3 = arith.constant 0 : i32
    %9 = arith.cmpi ne, %8, %c0_i32_3 : i32
    scf.if %9 {
      %23 = arith.index_cast %6 : i32 to index
      %c0_11 = arith.constant 0 : index
      %24 = vector.load %arg2[%23, %c0_11] : memref<256x16xf32, #tpu.memory_space<vmem>>, vector<128x16xf32>
      %c0_12 = arith.constant 0 : index
      %c0_13 = arith.constant 0 : index
      %25 = vector.load %arg9[%c0_12, %c0_13] : memref<16x32xf32, #tpu.memory_space<vmem>>, vector<16x32xf32>
      %cst = arith.constant dense<0.000000e+00> : vector<128x32xf32>
      %26 = tpu.matmul %24, %25, %cst {dimension_numbers = #tpu.dot_dimension_numbers<[1], [0], [0], [1], [0, 0, 1, 1], [], []>} : vector<128x16xf32>, vector<16x32xf32>, vector<128x32xf32> -> vector<128x32xf32>
      %c0_14 = arith.constant 0 : index
      %c0_15 = arith.constant 0 : index
      %27 = vector.load %arg10[%c0_14, %c0_15] : memref<1x32xf32, #tpu.memory_space<vmem>>, vector<1x32xf32>
      %28 = vector.broadcast %27 : vector<1x32xf32> to vector<128x32xf32>
      %29 = arith.addf %26, %28 : vector<128x32xf32>
      %c0_16 = arith.constant 0 : index
      %c0_17 = arith.constant 0 : index
      %30 = vector.load %arg19[%c0_16, %c0_17] : memref<256x32xf32, #tpu.memory_space<vmem>>, vector<256x32xf32>
      %cst_18 = arith.constant dense<0.000000e+00> : vector<256x32xf32>
      %31 = tpu.matmul %1, %29, %cst_18 {dimension_numbers = #tpu.dot_dimension_numbers<[1], [0], [0], [1], [0, 0, 1, 1], [], []>} : vector<256x128xf32>, vector<128x32xf32>, vector<256x32xf32> -> vector<256x32xf32>
      %32 = arith.addf %30, %31 : vector<256x32xf32>
      %c0_19 = arith.constant 0 : index
      %c0_20 = arith.constant 0 : index
      %33 = vector.load %arg19[%c0_19, %c0_20] : memref<256x32xf32, #tpu.memory_space<vmem>>, vector<256x32xf32>
      tpu.vector_store %arg19[%c0_19, %c0_20], %32 {strides = array<i32>} : memref<256x32xf32, #tpu.memory_space<vmem>>, vector<256x32xf32>,
    } else {
    }
    %c1_i32 = arith.constant 1 : i32
    %10 = arith.cmpi eq, %arg0, %c1_i32 : i32
    %11 = arith.extui %10 : i1 to i32
    %c0_i32_4 = arith.constant 0 : i32
    %12 = arith.cmpi ne, %11, %c0_i32_4 : i32
    scf.if %12 {
      %23 = arith.index_cast %6 : i32 to index
      %c0_11 = arith.constant 0 : index
      %24 = vector.load %arg18[%23, %c0_11] : memref<256x32xf32, #tpu.memory_space<vmem>>, vector<128x32xf32>
      %c0_12 = arith.constant 0 : index
      %c0_13 = arith.constant 0 : index
      %25 = vector.load %arg13[%c0_12, %c0_13] : memref<32x32xf32, #tpu.memory_space<vmem>>, vector<32x32xf32>
      %cst = arith.constant dense<0.000000e+00> : vector<128x32xf32>
      %26 = tpu.matmul %24, %25, %cst {dimension_numbers = #tpu.dot_dimension_numbers<[1], [0], [0], [1], [0, 0, 1, 1], [], []>} : vector<128x32xf32>, vector<32x32xf32>, vector<128x32xf32> -> vector<128x32xf32>
      %c0_14 = arith.constant 0 : index
      %c0_15 = arith.constant 0 : index
      %27 = vector.load %arg14[%c0_14, %c0_15] : memref<1x32xf32, #tpu.memory_space<vmem>>, vector<1x32xf32>
      %28 = vector.broadcast %27 : vector<1x32xf32> to vector<128x32xf32>
      %29 = arith.addf %26, %28 : vector<128x32xf32>
      %c0_16 = arith.constant 0 : index
      %c0_17 = arith.constant 0 : index
      %30 = vector.load %arg19[%c0_16, %c0_17] : memref<256x32xf32, #tpu.memory_space<vmem>>, vector<256x32xf32>
      %cst_18 = arith.constant dense<0.000000e+00> : vector<256x32xf32>
      %31 = tpu.matmul %1, %29, %cst_18 {dimension_numbers = #tpu.dot_dimension_numbers<[1], [0], [0], [1], [0, 0, 1, 1], [], []>} : vector<256x128xf32>, vector<128x32xf32>, vector<256x32xf32> -> vector<256x32xf32>
      %32 = arith.addf %30, %31 : vector<256x32xf32>
      %c0_19 = arith.constant 0 : index
      %c0_20 = arith.constant 0 : index
      %33 = vector.load %arg19[%c0_19, %c0_20] : memref<256x32xf32, #tpu.memory_space<vmem>>, vector<256x32xf32>
      tpu.vector_store %arg19[%c0_19, %c0_20], %32 {strides = array<i32>} : memref<256x32xf32, #tpu.memory_space<vmem>>, vector<256x32xf32>,
    } else {
    }
    %c0_i32_5 = arith.constant 0 : i32
    %13 = arith.cmpi eq, %arg0, %c0_i32_5 : i32
    %c1_i32_6 = arith.constant 1 : i32
    %14 = arith.cmpi eq, %arg1, %c1_i32_6 : i32
    %15 = arith.andi %13, %14 : i1
    %16 = arith.extui %15 : i1 to i32
    %c0_i32_7 = arith.constant 0 : i32
    %17 = arith.cmpi ne, %16, %c0_i32_7 : i32
    scf.if %17 {
      %c0_11 = arith.constant 0 : index
      %c0_12 = arith.constant 0 : index
      %23 = vector.load %arg2[%c0_11, %c0_12] : memref<256x16xf32, #tpu.memory_space<vmem>>, vector<256x16xf32>
      %c0_13 = arith.constant 0 : index
      %c0_14 = arith.constant 0 : index
      %24 = vector.load %arg7[%c0_13, %c0_14] : memref<16x32xf32, #tpu.memory_space<vmem>>, vector<16x32xf32>
      %cst = arith.constant dense<0.000000e+00> : vector<256x32xf32>
      %25 = tpu.matmul %23, %24, %cst {dimension_numbers = #tpu.dot_dimension_numbers<[1], [0], [0], [1], [0, 0, 1, 1], [], []>} : vector<256x16xf32>, vector<16x32xf32>, vector<256x32xf32> -> vector<256x32xf32>
      %c0_15 = arith.constant 0 : index
      %c0_16 = arith.constant 0 : index
      %26 = vector.load %arg8[%c0_15, %c0_16] : memref<1x32xf32, #tpu.memory_space<vmem>>, vector<1x32xf32>
      %27 = vector.broadcast %26 : vector<1x32xf32> to vector<256x32xf32>
      %28 = arith.addf %25, %27 : vector<256x32xf32>
      %c0_17 = arith.constant 0 : index
      %c0_18 = arith.constant 0 : index
      %29 = vector.load %arg19[%c0_17, %c0_18] : memref<256x32xf32, #tpu.memory_space<vmem>>, vector<256x32xf32>
      %30 = arith.addf %28, %29 : vector<256x32xf32>
      %cst_19 = arith.constant 0.000000e+00 : f32
      %31 = vector.broadcast %cst_19 : f32 to vector<256x32xf32>
      %32 = arith.maximumf %30, %31 : vector<256x32xf32>
      %c0_20 = arith.constant 0 : index
      %c0_21 = arith.constant 0 : index
      %33 = vector.load %arg18[%c0_20, %c0_21] : memref<256x32xf32, #tpu.memory_space<vmem>>, vector<256x32xf32>
      tpu.vector_store %arg18[%c0_20, %c0_21], %32 {strides = array<i32>} : memref<256x32xf32, #tpu.memory_space<vmem>>, vector<256x32xf32>,
    } else {
    }
    %c1_i32_8 = arith.constant 1 : i32
    %18 = arith.cmpi eq, %arg0, %c1_i32_8 : i32
    %c1_i32_9 = arith.constant 1 : i32
    %19 = arith.cmpi eq, %arg1, %c1_i32_9 : i32
    %20 = arith.andi %18, %19 : i1
    %21 = arith.extui %20 : i1 to i32
    %c0_i32_10 = arith.constant 0 : i32
    %22 = arith.cmpi ne, %21, %c0_i32_10 : i32
    scf.if %22 {
      %c0_11 = arith.constant 0 : index
      %c0_12 = arith.constant 0 : index
      %23 = vector.load %arg18[%c0_11, %c0_12] : memref<256x32xf32, #tpu.memory_space<vmem>>, vector<256x32xf32>
      %c0_13 = arith.constant 0 : index
      %c0_14 = arith.constant 0 : index
      %24 = vector.load %arg11[%c0_13, %c0_14] : memref<32x32xf32, #tpu.memory_space<vmem>>, vector<32x32xf32>
      %cst = arith.constant dense<0.000000e+00> : vector<256x32xf32>
      %25 = tpu.matmul %23, %24, %cst {dimension_numbers = #tpu.dot_dimension_numbers<[1], [0], [0], [1], [0, 0, 1, 1], [], []>} : vector<256x32xf32>, vector<32x32xf32>, vector<256x32xf32> -> vector<256x32xf32>
      %c0_15 = arith.constant 0 : index
      %c0_16 = arith.constant 0 : index
      %26 = vector.load %arg12[%c0_15, %c0_16] : memref<1x32xf32, #tpu.memory_space<vmem>>, vector<1x32xf32>
      %27 = vector.broadcast %26 : vector<1x32xf32> to vector<256x32xf32>
      %28 = arith.addf %25, %27 : vector<256x32xf32>
      %c0_17 = arith.constant 0 : index
      %c0_18 = arith.constant 0 : index
      %29 = vector.load %arg19[%c0_17, %c0_18] : memref<256x32xf32, #tpu.memory_space<vmem>>, vector<256x32xf32>
      %30 = arith.addf %28, %29 : vector<256x32xf32>
      %cst_19 = arith.constant 0.000000e+00 : f32
      %31 = vector.broadcast %cst_19 : f32 to vector<256x32xf32>
      %32 = arith.maximumf %30, %31 : vector<256x32xf32>
      %c0_20 = arith.constant 0 : index
      %c0_21 = arith.constant 0 : index
      %33 = vector.load %arg4[%c0_20, %c0_21] : memref<1x256xi32, #tpu.memory_space<vmem>>, vector<1x256xi32>
      %34 = tpu.iota {dimensions = array<i32: 0>} : vector<8x256xi32>
      %35 = vector.broadcast %33 : vector<1x256xi32> to vector<8x256xi32>
      %36 = arith.cmpi eq, %34, %35 : vector<8x256xi32>
      %37 = arith.extui %36 : vector<8x256xi1> to vector<8x256xi32>
      %38 = arith.sitofp %37 : vector<8x256xi32> to vector<8x256xf32>
      %cst_22 = arith.constant dense<0.000000e+00> : vector<8x32xf32>
      %39 = tpu.matmul %38, %32, %cst_22 {dimension_numbers = #tpu.dot_dimension_numbers<[1], [0], [0], [1], [0, 0, 1, 1], [], []>} : vector<8x256xf32>, vector<256x32xf32>, vector<8x32xf32> -> vector<8x32xf32>
      %c0_23 = arith.constant 0 : index
      %c0_24 = arith.constant 0 : index
      %40 = vector.load %arg15[%c0_23, %c0_24] : memref<32x8xf32, #tpu.memory_space<vmem>>, vector<32x8xf32>
      %cst_25 = arith.constant dense<0.000000e+00> : vector<8x8xf32>
      %41 = tpu.matmul %39, %40, %cst_25 {dimension_numbers = #tpu.dot_dimension_numbers<[1], [0], [0], [1], [0, 0, 1, 1], [], []>} : vector<8x32xf32>, vector<32x8xf32>, vector<8x8xf32> -> vector<8x8xf32>
      %c0_26 = arith.constant 0 : index
      %c0_27 = arith.constant 0 : index
      %42 = vector.load %arg16[%c0_26, %c0_27] : memref<1x8xf32, #tpu.memory_space<vmem>>, vector<1x8xf32>
      %43 = vector.broadcast %42 : vector<1x8xf32> to vector<8x8xf32>
      %44 = arith.addf %41, %43 : vector<8x8xf32>
      %c0_28 = arith.constant 0 : index
      %c0_29 = arith.constant 0 : index
      %45 = vector.load %arg17[%c0_28, %c0_29] : memref<8x8xf32, #tpu.memory_space<vmem>>, vector<8x8xf32>
      tpu.vector_store %arg17[%c0_28, %c0_29], %44 {strides = array<i32>} : memref<8x8xf32, #tpu.memory_space<vmem>>, vector<8x8xf32>,
    } else {
    }
    return
  }
  func.func @transform_0(%arg0: i32, %arg1: i32) -> (i32, i32) {
    %c0_i32 = arith.constant 0 : i32
    %c0_i32_0 = arith.constant 0 : i32
    %c0_i32_1 = arith.constant 0 : i32
    return %c0_i32, %c0_i32_0 : i32, i32
  }
  func.func @transform_1(%arg0: i32, %arg1: i32) -> (i32, i32) {
    %c0_i32 = arith.constant 0 : i32
    %c0_i32_0 = arith.constant 0 : i32
    return %c0_i32, %arg1 : i32, i32
  }
  func.func @transform_2(%arg0: i32, %arg1: i32) -> (i32, i32) {
    %c0_i32 = arith.constant 0 : i32
    %c0_i32_0 = arith.constant 0 : i32
    %c0_i32_1 = arith.constant 0 : i32
    return %c0_i32, %c0_i32_0 : i32, i32
  }
  func.func @transform_3(%arg0: i32, %arg1: i32) -> (i32, i32) {
    %c0_i32 = arith.constant 0 : i32
    %c0_i32_0 = arith.constant 0 : i32
    %c0_i32_1 = arith.constant 0 : i32
    return %c0_i32, %c0_i32_0 : i32, i32
  }
  func.func @transform_4(%arg0: i32, %arg1: i32) -> (i32, i32) {
    %c0_i32 = arith.constant 0 : i32
    %c0_i32_0 = arith.constant 0 : i32
    %c0_i32_1 = arith.constant 0 : i32
    return %c0_i32, %c0_i32_0 : i32, i32
  }
  func.func @transform_5(%arg0: i32, %arg1: i32) -> (i32, i32) {
    %c0_i32 = arith.constant 0 : i32
    %c0_i32_0 = arith.constant 0 : i32
    %c0_i32_1 = arith.constant 0 : i32
    return %c0_i32, %c0_i32_0 : i32, i32
  }
  func.func @transform_6(%arg0: i32, %arg1: i32) -> (i32, i32) {
    %c0_i32 = arith.constant 0 : i32
    %c0_i32_0 = arith.constant 0 : i32
    %c0_i32_1 = arith.constant 0 : i32
    return %c0_i32, %c0_i32_0 : i32, i32
  }
  func.func @transform_7(%arg0: i32, %arg1: i32) -> (i32, i32) {
    %c0_i32 = arith.constant 0 : i32
    %c0_i32_0 = arith.constant 0 : i32
    %c0_i32_1 = arith.constant 0 : i32
    return %c0_i32, %c0_i32_0 : i32, i32
  }
  func.func @transform_8(%arg0: i32, %arg1: i32) -> (i32, i32) {
    %c0_i32 = arith.constant 0 : i32
    %c0_i32_0 = arith.constant 0 : i32
    %c0_i32_1 = arith.constant 0 : i32
    return %c0_i32, %c0_i32_0 : i32, i32
  }
  func.func @transform_9(%arg0: i32, %arg1: i32) -> (i32, i32) {
    %c0_i32 = arith.constant 0 : i32
    %c0_i32_0 = arith.constant 0 : i32
    %c0_i32_1 = arith.constant 0 : i32
    return %c0_i32, %c0_i32_0 : i32, i32
  }
  func.func @transform_10(%arg0: i32, %arg1: i32) -> (i32, i32) {
    %c0_i32 = arith.constant 0 : i32
    %c0_i32_0 = arith.constant 0 : i32
    %c0_i32_1 = arith.constant 0 : i32
    return %c0_i32, %c0_i32_0 : i32, i32
  }
  func.func @transform_11(%arg0: i32, %arg1: i32) -> (i32, i32) {
    %c0_i32 = arith.constant 0 : i32
    %c0_i32_0 = arith.constant 0 : i32
    %c0_i32_1 = arith.constant 0 : i32
    return %c0_i32, %c0_i32_0 : i32, i32
  }
  func.func @transform_12(%arg0: i32, %arg1: i32) -> (i32, i32) {
    %c0_i32 = arith.constant 0 : i32
    %c0_i32_0 = arith.constant 0 : i32
    %c0_i32_1 = arith.constant 0 : i32
    return %c0_i32, %c0_i32_0 : i32, i32
  }
  func.func @transform_13(%arg0: i32, %arg1: i32) -> (i32, i32) {
    %c0_i32 = arith.constant 0 : i32
    %c0_i32_0 = arith.constant 0 : i32
    %c0_i32_1 = arith.constant 0 : i32
    return %c0_i32, %c0_i32_0 : i32, i32
  }
  func.func @transform_14(%arg0: i32, %arg1: i32) -> (i32, i32) {
    %c0_i32 = arith.constant 0 : i32
    %c0_i32_0 = arith.constant 0 : i32
    %c0_i32_1 = arith.constant 0 : i32
    return %c0_i32, %c0_i32_0 : i32, i32
  }
  func.func @transform_15(%arg0: i32, %arg1: i32) -> (i32, i32) {
    %c0_i32 = arith.constant 0 : i32
    %c0_i32_0 = arith.constant 0 : i32
    %c0_i32_1 = arith.constant 0 : i32
    return %c0_i32, %c0_i32_0 : i32, i32
  }
}

</mosaic_0001>

<llo_original>
// kernel: tpu_custom_call.1
$region0: #{tpu_custom_call.1}
  #allocation0 [shape = 'u32[]', space=smem, size = 0x4, offset = 0x4, fixed_abs, tag = 'smem constant byte address 0x4 - core index']
  #allocation1 [shape = 'u32[144,128]{1,0:T(1,128)}', space=vmem, size = 0x12000, scoped, tag = 'internal scratch']
  #allocation2 [shape = 'f32[256,32]{1,0:T(8,128)}', space=vmem, size = 0x20000, scoped, tag = 'scratch operand']
  #allocation3 [shape = 'f32[256,32]{1,0:T(8,128)}', space=vmem, size = 0x20000, scoped, tag = 'scratch operand']
  %s0 = inlined_call_operand.vmem [shape: f32[256,16], index: 0, kind: input, shape index: {}]
  %s1 = inlined_call_operand.vmem [shape: bf16[256,256], index: 1, kind: input, shape index: {}]
  %s2 = inlined_call_operand.vmem [shape: s32[1,256], index: 2, kind: input, shape index: {}]
  %s3 = inlined_call_operand.vmem [shape: f32[256,1], index: 3, kind: input, shape index: {}]
  %s4 = inlined_call_operand.vmem [shape: f32[8,1], index: 4, kind: input, shape index: {}]
  %s5 = inlined_call_operand.vmem [shape: f32[16,32], index: 5, kind: input, shape index: {}]
  %s6 = inlined_call_operand.vmem [shape: f32[1,32], index: 6, kind: input, shape index: {}]
  %s7 = inlined_call_operand.vmem [shape: f32[16,32], index: 7, kind: input, shape index: {}]
  %s8 = inlined_call_operand.vmem [shape: f32[1,32], index: 8, kind: input, shape index: {}]
  %s9 = inlined_call_operand.vmem [shape: f32[32,32], index: 9, kind: input, shape index: {}]
  %s10 = inlined_call_operand.vmem [shape: f32[1,32], index: 10, kind: input, shape index: {}]
  %s11 = inlined_call_operand.vmem [shape: f32[32,32], index: 11, kind: input, shape index: {}]
  %s12 = inlined_call_operand.vmem [shape: f32[1,32], index: 12, kind: input, shape index: {}]
  %s13 = inlined_call_operand.vmem [shape: f32[32,8], index: 13, kind: input, shape index: {}]
  %s14 = inlined_call_operand.vmem [shape: f32[1,8], index: 14, kind: input, shape index: {}]
  %s15 = inlined_call_operand.hbm [shape: f32[8,8], index: 15, kind: output, shape index: {}]
  %s16 = sld [smem:[#allocation0]]
  $region154: #{tpu_custom_call.1} parent=0
    _
  %s18 = ssub.s32 1, %s16
  %s19 = scalar_select 0, %s18, %s16
  $region1: #{tpu_custom_call.1} parent=0
    #allocation4 [shape = 'u8[131072]{0}', space=vmem, size = 0x20000, scoped, tag = 'input window, operand 1']
    #allocation5 [shape = 'u8[4096]{0}', space=vmem, size = 0x1000, scoped, tag = 'output window, operand 0, single buffered']
    #allocation6 [shape = 's32[2]{0}', space=sflag, size = 0x8, scoped, tag = 'scoped memory for tpu_custom_call.1']
    %20 = vsyncpa [#allocation6], 0
    loop: start=0, step=1, limit=6
    $region2: #{tpu_custom_call.1} parent=1 // loop_pre_header
      _
    $region3: #{tpu_custom_call.1} parent=1 // loop_header
      %s22 = sphi 0, %s26
      %p23 = scmp.ge.s32.totalorder %s22, 6
      %s29 = sphi 0, %s41
      %s30 = sphi 0, %s37
      %s31 = sphi 0, %s29
      %s32 = sphi 0, %s30
      %s33 = sphi 0, %s31
      %s34 = sphi 0, %s32
      %s42 = sphi 0, %s42
      %s44 = sphi 0, %s42
      %s45 = sphi 0, %s44
      %s59 = sphi 0, %s45
      %s65 = sphi 0, %s67
      %s68 = sphi 0, %s65
      %s69 = sphi 0, %s68
      %s85 = sphi 0, %s69
      %s89 = sphi 0, %s89
      %s91 = sphi 0, %s89
      %s92 = sphi 0, %s91
      %s106 = sphi 0, %s92
      %s110 = sphi 0, %s110
      %s112 = sphi 0, %s110
      %s113 = sphi 0, %s112
      %s127 = sphi 0, %s113
      %s131 = sphi 0, %s131
      %s133 = sphi 0, %s131
      %s134 = sphi 0, %s133
      %s148 = sphi 0, %s134
      %s152 = sphi 0, %s152
      %s154 = sphi 0, %s152
      %s155 = sphi 0, %s154
      %s169 = sphi 0, %s155
      %s173 = sphi 0, %s173
      %s175 = sphi 0, %s173
      %s176 = sphi 0, %s175
      %s190 = sphi 0, %s176
      %s194 = sphi 0, %s194
      %s196 = sphi 0, %s194
      %s197 = sphi 0, %s196
      %s211 = sphi 0, %s197
      %s215 = sphi 0, %s215
      %s217 = sphi 0, %s215
      %s218 = sphi 0, %s217
      %s232 = sphi 0, %s218
      %s236 = sphi 0, %s236
      %s238 = sphi 0, %s236
      %s239 = sphi 0, %s238
      %s253 = sphi 0, %s239
      %s257 = sphi 0, %s257
      %s259 = sphi 0, %s257
      %s260 = sphi 0, %s259
      %s274 = sphi 0, %s260
      %s278 = sphi 0, %s278
      %s280 = sphi 0, %s278
      %s281 = sphi 0, %s280
      %s295 = sphi 0, %s281
      %s299 = sphi 0, %s299
      %s301 = sphi 0, %s299
      %s302 = sphi 0, %s301
      %s316 = sphi 0, %s302
      %s320 = sphi 0, %s320
      %s322 = sphi 0, %s320
      %s323 = sphi 0, %s322
      %s337 = sphi 0, %s323
      %s341 = sphi 0, %s341
      %s343 = sphi 0, %s341
      %s344 = sphi 0, %s343
      %s358 = sphi 0, %s344
      %s362 = sphi 0, %s362
      %s364 = sphi 0, %s362
      %s365 = sphi 0, %s364
      %s379 = sphi 0, %s365
    $region4: #{tpu_custom_call.1} parent=1 // loop_header_branch
      %25 = sbr.rel (%p23) target = $region8
    $region5: #{tpu_custom_call.1} parent=1 // loop_body
      %s27 = ssub.s32 %s22, 1
      %s28 = ssub.s32 %s22, 2
      %s35 = sadd.s32 1, %s30
      %p36 = scmp.ge.s32.totalorder %s35, 2
      %s37 = scalar_select %p36, 0, %s35
      %s38 = sadd.s32 1, %s29
      %s39 = scalar_select %p36, %s38, %s29
      %p40 = scmp.ge.s32.totalorder %s39, 2
      %s41 = scalar_select %p40, 0, %s39
      %s43 = sadd.s32 %s42, 1
      %p46 = scmp.eq.s32.totalorder %s22, 3
      %p47 = scmp.ne.s32.totalorder %s42, %s44
      %p48 = scmp.eq.s32.totalorder %s22, 0
      %p49 = por %p47, %p48
      %p50 = scmp.ne.s32.totalorder %s42, %s44
      %p51 = scmp.eq.s32.totalorder %s27, 3
      %p52 = por %p50, %p51
      %p53 = scmp.ne.s32.totalorder %s44, %s45
      %p54 = scmp.eq.s32.totalorder %s27, 0
      %p55 = por %p53, %p54
      %p56 = scmp.ne.s32.totalorder %s44, %s45
      %p57 = scmp.eq.s32.totalorder %s28, 3
      %p58 = por %p56, %p57
      %p60 = scmp.ne.s32.totalorder %s45, %s59
      %p61 = scmp.eq.s32.totalorder %s28, 0
      %p62 = por %p60, %p61
      %s63 = ssub.s32 %s30, %s37
      %p64 = scmp.eq.s32.totalorder %s63, 0
      %s66 = sadd.s32 %s65, 1
      %s67 = scalar_select %p64, %s65, %s66
      %p70 = pneg %p64
      %p71 = scmp.eq.s32.totalorder %s22, 3
      %p72 = por %p70, %p71
      %p73 = scmp.ne.s32.totalorder %s65, %s68
      %p74 = scmp.eq.s32.totalorder %s22, 0
      %p75 = por %p73, %p74
      %p76 = scmp.ne.s32.totalorder %s65, %s68
      %p77 = scmp.eq.s32.totalorder %s27, 3
      %p78 = por %p76, %p77
      %p79 = scmp.ne.s32.totalorder %s68, %s69
      %p80 = scmp.eq.s32.totalorder %s27, 0
      %p81 = por %p79, %p80
      %p82 = scmp.ne.s32.totalorder %s68, %s69
      %p83 = scmp.eq.s32.totalorder %s28, 3
      %p84 = por %p82, %p83
      %p86 = scmp.ne.s32.totalorder %s69, %s85
      %p87 = scmp.eq.s32.totalorder %s28, 0
      %p88 = por %p86, %p87
      %s90 = sadd.s32 %s89, 1
      %p93 = scmp.eq.s32.totalorder %s22, 3
      %p94 = scmp.ne.s32.totalorder %s89, %s91
      %p95 = scmp.eq.s32.totalorder %s22, 0
      %p96 = por %p94, %p95
      %p97 = scmp.ne.s32.totalorder %s89, %s91
      %p98 = scmp.eq.s32.totalorder %s27, 3
      %p99 = por %p97, %p98
      %p100 = scmp.ne.s32.totalorder %s91, %s92
      %p101 = scmp.eq.s32.totalorder %s27, 0
      %p102 = por %p100, %p101
      %p103 = scmp.ne.s32.totalorder %s91, %s92
      %p104 = scmp.eq.s32.totalorder %s28, 3
      %p105 = por %p103, %p104
      %p107 = scmp.ne.s32.totalorder %s92, %s106
      %p108 = scmp.eq.s32.totalorder %s28, 0
      %p109 = por %p107, %p108
      %s111 = sadd.s32 %s110, 1
      %p114 = scmp.eq.s32.totalorder %s22, 3
      %p115 = scmp.ne.s32.totalorder %s110, %s112
      %p116 = scmp.eq.s32.totalorder %s22, 0
      %p117 = por %p115, %p116
      %p118 = scmp.ne.s32.totalorder %s110, %s112
      %p119 = scmp.eq.s32.totalorder %s27, 3
      %p120 = por %p118, %p119
      %p121 = scmp.ne.s32.totalorder %s112, %s113
      %p122 = scmp.eq.s32.totalorder %s27, 0
      %p123 = por %p121, %p122
      %p124 = scmp.ne.s32.totalorder %s112, %s113
      %p125 = scmp.eq.s32.totalorder %s28, 3
      %p126 = por %p124, %p125
      %p128 = scmp.ne.s32.totalorder %s113, %s127
      %p129 = scmp.eq.s32.totalorder %s28, 0
      %p130 = por %p128, %p129
      %s132 = sadd.s32 %s131, 1
      %p135 = scmp.eq.s32.totalorder %s22, 3
      %p136 = scmp.ne.s32.totalorder %s131, %s133
      %p137 = scmp.eq.s32.totalorder %s22, 0
      %p138 = por %p136, %p137
      %p139 = scmp.ne.s32.totalorder %s131, %s133
      %p140 = scmp.eq.s32.totalorder %s27, 3
      %p141 = por %p139, %p140
      %p142 = scmp.ne.s32.totalorder %s133, %s134
      %p143 = scmp.eq.s32.totalorder %s27, 0
      %p144 = por %p142, %p143
      %p145 = scmp.ne.s32.totalorder %s133, %s134
      %p146 = scmp.eq.s32.totalorder %s28, 3
      %p147 = por %p145, %p146
      %p149 = scmp.ne.s32.totalorder %s134, %s148
      %p150 = scmp.eq.s32.totalorder %s28, 0
      %p151 = por %p149, %p150
      %s153 = sadd.s32 %s152, 1
      %p156 = scmp.eq.s32.totalorder %s22, 3
      %p157 = scmp.ne.s32.totalorder %s152, %s154
      %p158 = scmp.eq.s32.totalorder %s22, 0
      %p159 = por %p157, %p158
      %p160 = scmp.ne.s32.totalorder %s152, %s154
      %p161 = scmp.eq.s32.totalorder %s27, 3
      %p162 = por %p160, %p161
      %p163 = scmp.ne.s32.totalorder %s154, %s155
      %p164 = scmp.eq.s32.totalorder %s27, 0
      %p165 = por %p163, %p164
      %p166 = scmp.ne.s32.totalorder %s154, %s155
      %p167 = scmp.eq.s32.totalorder %s28, 3
      %p168 = por %p166, %p167
      %p170 = scmp.ne.s32.totalorder %s155, %s169
      %p171 = scmp.eq.s32.totalorder %s28, 0
      %p172 = por %p170, %p171
      %s174 = sadd.s32 %s173, 1
      %p177 = scmp.eq.s32.totalorder %s22, 3
      %p178 = scmp.ne.s32.totalorder %s173, %s175
      %p179 = scmp.eq.s32.totalorder %s22, 0
      %p180 = por %p178, %p179
      %p181 = scmp.ne.s32.totalorder %s173, %s175
      %p182 = scmp.eq.s32.totalorder %s27, 3
      %p183 = por %p181, %p182
      %p184 = scmp.ne.s32.totalorder %s175, %s176
      %p185 = scmp.eq.s32.totalorder %s27, 0
      %p186 = por %p184, %p185
      %p187 = scmp.ne.s32.totalorder %s175, %s176
      %p188 = scmp.eq.s32.totalorder %s28, 3
      %p189 = por %p187, %p188
      %p191 = scmp.ne.s32.totalorder %s176, %s190
      %p192 = scmp.eq.s32.totalorder %s28, 0
      %p193 = por %p191, %p192
      %s195 = sadd.s32 %s194, 1
      %p198 = scmp.eq.s32.totalorder %s22, 3
      %p199 = scmp.ne.s32.totalorder %s194, %s196
      %p200 = scmp.eq.s32.totalorder %s22, 0
      %p201 = por %p199, %p200
      %p202 = scmp.ne.s32.totalorder %s194, %s196
      %p203 = scmp.eq.s32.totalorder %s27, 3
      %p204 = por %p202, %p203
      %p205 = scmp.ne.s32.totalorder %s196, %s197
      %p206 = scmp.eq.s32.totalorder %s27, 0
      %p207 = por %p205, %p206
      %p208 = scmp.ne.s32.totalorder %s196, %s197
      %p209 = scmp.eq.s32.totalorder %s28, 3
      %p210 = por %p208, %p209
      %p212 = scmp.ne.s32.totalorder %s197, %s211
      %p213 = scmp.eq.s32.totalorder %s28, 0
      %p214 = por %p212, %p213
      %s216 = sadd.s32 %s215, 1
      %p219 = scmp.eq.s32.totalorder %s22, 3
      %p220 = scmp.ne.s32.totalorder %s215, %s217
      %p221 = scmp.eq.s32.totalorder %s22, 0
      %p222 = por %p220, %p221
      %p223 = scmp.ne.s32.totalorder %s215, %s217
      %p224 = scmp.eq.s32.totalorder %s27, 3
      %p225 = por %p223, %p224
      %p226 = scmp.ne.s32.totalorder %s217, %s218
      %p227 = scmp.eq.s32.totalorder %s27, 0
      %p228 = por %p226, %p227
      %p229 = scmp.ne.s32.totalorder %s217, %s218
      %p230 = scmp.eq.s32.totalorder %s28, 3
      %p231 = por %p229, %p230
      %p233 = scmp.ne.s32.totalorder %s218, %s232
      %p234 = scmp.eq.s32.totalorder %s28, 0
      %p235 = por %p233, %p234
      %s237 = sadd.s32 %s236, 1
      %p240 = scmp.eq.s32.totalorder %s22, 3
      %p241 = scmp.ne.s32.totalorder %s236, %s238
      %p242 = scmp.eq.s32.totalorder %s22, 0
      %p243 = por %p241, %p242
      %p244 = scmp.ne.s32.totalorder %s236, %s238
      %p245 = scmp.eq.s32.totalorder %s27, 3
      %p246 = por %p244, %p245
      %p247 = scmp.ne.s32.totalorder %s238, %s239
      %p248 = scmp.eq.s32.totalorder %s27, 0
      %p249 = por %p247, %p248
      %p250 = scmp.ne.s32.totalorder %s238, %s239
      %p251 = scmp.eq.s32.totalorder %s28, 3
      %p252 = por %p250, %p251
      %p254 = scmp.ne.s32.totalorder %s239, %s253
      %p255 = scmp.eq.s32.totalorder %s28, 0
      %p256 = por %p254, %p255
      %s258 = sadd.s32 %s257, 1
      %p261 = scmp.eq.s32.totalorder %s22, 3
      %p262 = scmp.ne.s32.totalorder %s257, %s259
      %p263 = scmp.eq.s32.totalorder %s22, 0
      %p264 = por %p262, %p263
      %p265 = scmp.ne.s32.totalorder %s257, %s259
      %p266 = scmp.eq.s32.totalorder %s27, 3
      %p267 = por %p265, %p266
      %p268 = scmp.ne.s32.totalorder %s259, %s260
      %p269 = scmp.eq.s32.totalorder %s27, 0
      %p270 = por %p268, %p269
      %p271 = scmp.ne.s32.totalorder %s259, %s260
      %p272 = scmp.eq.s32.totalorder %s28, 3
      %p273 = por %p271, %p272
      %p275 = scmp.ne.s32.totalorder %s260, %s274
      %p276 = scmp.eq.s32.totalorder %s28, 0
      %p277 = por %p275, %p276
      %s279 = sadd.s32 %s278, 1
      %p282 = scmp.eq.s32.totalorder %s22, 3
      %p283 = scmp.ne.s32.totalorder %s278, %s280
      %p284 = scmp.eq.s32.totalorder %s22, 0
      %p285 = por %p283, %p284
      %p286 = scmp.ne.s32.totalorder %s278, %s280
      %p287 = scmp.eq.s32.totalorder %s27, 3
      %p288 = por %p286, %p287
      %p289 = scmp.ne.s32.totalorder %s280, %s281
      %p290 = scmp.eq.s32.totalorder %s27, 0
      %p291 = por %p289, %p290
      %p292 = scmp.ne.s32.totalorder %s280, %s281
      %p293 = scmp.eq.s32.totalorder %s28, 3
      %p294 = por %p292, %p293
      %p296 = scmp.ne.s32.totalorder %s281, %s295
      %p297 = scmp.eq.s32.totalorder %s28, 0
      %p298 = por %p296, %p297
      %s300 = sadd.s32 %s299, 1
      %p303 = scmp.eq.s32.totalorder %s22, 3
      %p304 = scmp.ne.s32.totalorder %s299, %s301
      %p305 = scmp.eq.s32.totalorder %s22, 0
      %p306 = por %p304, %p305
      %p307 = scmp.ne.s32.totalorder %s299, %s301
      %p308 = scmp.eq.s32.totalorder %s27, 3
      %p309 = por %p307, %p308
      %p310 = scmp.ne.s32.totalorder %s301, %s302
      %p311 = scmp.eq.s32.totalorder %s27, 0
      %p312 = por %p310, %p311
      %p313 = scmp.ne.s32.totalorder %s301, %s302
      %p314 = scmp.eq.s32.totalorder %s28, 3
      %p315 = por %p313, %p314
      %p317 = scmp.ne.s32.totalorder %s302, %s316
      %p318 = scmp.eq.s32.totalorder %s28, 0
      %p319 = por %p317, %p318
      %s321 = sadd.s32 %s320, 1
      %p324 = scmp.eq.s32.totalorder %s22, 3
      %p325 = scmp.ne.s32.totalorder %s320, %s322
      %p326 = scmp.eq.s32.totalorder %s22, 0
      %p327 = por %p325, %p326
      %p328 = scmp.ne.s32.totalorder %s320, %s322
      %p329 = scmp.eq.s32.totalorder %s27, 3
      %p330 = por %p328, %p329
      %p331 = scmp.ne.s32.totalorder %s322, %s323
      %p332 = scmp.eq.s32.totalorder %s27, 0
      %p333 = por %p331, %p332
      %p334 = scmp.ne.s32.totalorder %s322, %s323
      %p335 = scmp.eq.s32.totalorder %s28, 3
      %p336 = por %p334, %p335
      %p338 = scmp.ne.s32.totalorder %s323, %s337
      %p339 = scmp.eq.s32.totalorder %s28, 0
      %p340 = por %p338, %p339
      %s342 = sadd.s32 %s341, 1
      %p345 = scmp.eq.s32.totalorder %s22, 3
      %p346 = scmp.ne.s32.totalorder %s341, %s343
      %p347 = scmp.eq.s32.totalorder %s22, 0
      %p348 = por %p346, %p347
      %p349 = scmp.ne.s32.totalorder %s341, %s343
      %p350 = scmp.eq.s32.totalorder %s27, 3
      %p351 = por %p349, %p350
      %p352 = scmp.ne.s32.totalorder %s343, %s344
      %p353 = scmp.eq.s32.totalorder %s27, 0
      %p354 = por %p352, %p353
      %p355 = scmp.ne.s32.totalorder %s343, %s344
      %p356 = scmp.eq.s32.totalorder %s28, 3
      %p357 = por %p355, %p356
      %p359 = scmp.ne.s32.totalorder %s344, %s358
      %p360 = scmp.eq.s32.totalorder %s28, 0
      %p361 = por %p359, %p360
      %s363 = sadd.s32 %s362, 1
      %p366 = scmp.eq.s32.totalorder %s22, 3
      %p367 = scmp.ne.s32.totalorder %s362, %s364
      %p368 = scmp.eq.s32.totalorder %s22, 0
      %p369 = por %p367, %p368
      %p370 = scmp.ne.s32.totalorder %s362, %s364
      %p371 = scmp.eq.s32.totalorder %s27, 3
      %p372 = por %p370, %p371
      %p373 = scmp.ne.s32.totalorder %s364, %s365
      %p374 = scmp.eq.s32.totalorder %s27, 0
      %p375 = por %p373, %p374
      %p376 = scmp.ne.s32.totalorder %s364, %s365
      %p377 = scmp.eq.s32.totalorder %s28, 3
      %p378 = por %p376, %p377
      %p380 = scmp.ne.s32.totalorder %s365, %s379
      %p381 = scmp.eq.s32.totalorder %s28, 0
      %p382 = por %p380, %p381
      %p383 = scmp.le.s32.totalorder 1, %s22
      %p384 = scmp.lt.s32.totalorder %s22, 5
      %p385 = pnand %p383, %p384
      %p386 = pneg %p385
      // Predicated region
      $region9: #{tpu_custom_call.1} parent=5 // pred_check
        _
      $region10: #{tpu_custom_call.1} parent=5 // pred_check_branch
        %388 = sbr.rel (%p385) target = $region12
      $region11: #{tpu_custom_call.1} parent=5 // pred_region
        %s389 = ssub.s32 %s22, 1
        // Predicated region
        $region13: #{tpu_custom_call.1} parent=11 // pred_check
          %p390 = pneg %p55
        $region14: #{tpu_custom_call.1} parent=11 // pred_check_branch
          %392 = sbr.rel (%p390) target = $region16
        $region15: #{tpu_custom_call.1} parent=11 // pred_region
          _
        $region16: #{tpu_custom_call.1} parent=11 // pred_fallthru
          _
        // Predicated region
        $region17: #{tpu_custom_call.1} parent=11 // pred_check
          %p393 = pneg %p102
        $region18: #{tpu_custom_call.1} parent=11 // pred_check_branch
          %395 = sbr.rel (%p393) target = $region20
        $region19: #{tpu_custom_call.1} parent=11 // pred_region
          _
        $region20: #{tpu_custom_call.1} parent=11 // pred_fallthru
          _
        // Predicated region
        $region21: #{tpu_custom_call.1} parent=11 // pred_check
          %p396 = pneg %p123
        $region22: #{tpu_custom_call.1} parent=11 // pred_check_branch
          %398 = sbr.rel (%p396) target = $region24
        $region23: #{tpu_custom_call.1} parent=11 // pred_region
          _
        $region24: #{tpu_custom_call.1} parent=11 // pred_fallthru
          _
        // Predicated region
        $region25: #{tpu_custom_call.1} parent=11 // pred_check
          %p399 = pneg %p144
        $region26: #{tpu_custom_call.1} parent=11 // pred_check_branch
          %401 = sbr.rel (%p399) target = $region28
        $region27: #{tpu_custom_call.1} parent=11 // pred_region
          _
        $region28: #{tpu_custom_call.1} parent=11 // pred_fallthru
          _
        // Predicated region
        $region29: #{tpu_custom_call.1} parent=11 // pred_check
          %p402 = pneg %p165
        $region30: #{tpu_custom_call.1} parent=11 // pred_check_branch
          %404 = sbr.rel (%p402) target = $region32
        $region31: #{tpu_custom_call.1} parent=11 // pred_region
          _
        $region32: #{tpu_custom_call.1} parent=11 // pred_fallthru
          _
        // Predicated region
        $region33: #{tpu_custom_call.1} parent=11 // pred_check
          %p405 = pneg %p186
        $region34: #{tpu_custom_call.1} parent=11 // pred_check_branch
          %407 = sbr.rel (%p405) target = $region36
        $region35: #{tpu_custom_call.1} parent=11 // pred_region
          _
        $region36: #{tpu_custom_call.1} parent=11 // pred_fallthru
          _
        // Predicated region
        $region37: #{tpu_custom_call.1} parent=11 // pred_check
          %p408 = pneg %p207
        $region38: #{tpu_custom_call.1} parent=11 // pred_check_branch
          %410 = sbr.rel (%p408) target = $region40
        $region39: #{tpu_custom_call.1} parent=11 // pred_region
          _
        $region40: #{tpu_custom_call.1} parent=11 // pred_fallthru
          _
        // Predicated region
        $region41: #{tpu_custom_call.1} parent=11 // pred_check
          %p411 = pneg %p228
        $region42: #{tpu_custom_call.1} parent=11 // pred_check_branch
          %413 = sbr.rel (%p411) target = $region44
        $region43: #{tpu_custom_call.1} parent=11 // pred_region
          _
        $region44: #{tpu_custom_call.1} parent=11 // pred_fallthru
          _
        // Predicated region
        $region45: #{tpu_custom_call.1} parent=11 // pred_check
          %p414 = pneg %p249
        $region46: #{tpu_custom_call.1} parent=11 // pred_check_branch
          %416 = sbr.rel (%p414) target = $region48
        $region47: #{tpu_custom_call.1} parent=11 // pred_region
          _
        $region48: #{tpu_custom_call.1} parent=11 // pred_fallthru
          _
        // Predicated region
        $region49: #{tpu_custom_call.1} parent=11 // pred_check
          %p417 = pneg %p270
        $region50: #{tpu_custom_call.1} parent=11 // pred_check_branch
          %419 = sbr.rel (%p417) target = $region52
        $region51: #{tpu_custom_call.1} parent=11 // pred_region
          _
        $region52: #{tpu_custom_call.1} parent=11 // pred_fallthru
          _
        // Predicated region
        $region53: #{tpu_custom_call.1} parent=11 // pred_check
          %p420 = pneg %p291
        $region54: #{tpu_custom_call.1} parent=11 // pred_check_branch
          %422 = sbr.rel (%p420) target = $region56
        $region55: #{tpu_custom_call.1} parent=11 // pred_region
          _
        $region56: #{tpu_custom_call.1} parent=11 // pred_fallthru
          _
        // Predicated region
        $region57: #{tpu_custom_call.1} parent=11 // pred_check
          %p423 = pneg %p312
        $region58: #{tpu_custom_call.1} parent=11 // pred_check_branch
          %425 = sbr.rel (%p423) target = $region60
        $region59: #{tpu_custom_call.1} parent=11 // pred_region
          _
        $region60: #{tpu_custom_call.1} parent=11 // pred_fallthru
          _
        // Predicated region
        $region61: #{tpu_custom_call.1} parent=11 // pred_check
          %p426 = pneg %p333
        $region62: #{tpu_custom_call.1} parent=11 // pred_check_branch
          %428 = sbr.rel (%p426) target = $region64
        $region63: #{tpu_custom_call.1} parent=11 // pred_region
          _
        $region64: #{tpu_custom_call.1} parent=11 // pred_fallthru
          _
        // Predicated region
        $region65: #{tpu_custom_call.1} parent=11 // pred_check
          %p429 = pneg %p354
        $region66: #{tpu_custom_call.1} parent=11 // pred_check_branch
          %431 = sbr.rel (%p429) target = $region68
        $region67: #{tpu_custom_call.1} parent=11 // pred_region
          _
        $region68: #{tpu_custom_call.1} parent=11 // pred_fallthru
          _
      $region12: #{tpu_custom_call.1} parent=5 // pred_fallthru
        _
      %p432 = scmp.lt.s32.totalorder %s22, 4
      // Predicated region
      $region69: #{tpu_custom_call.1} parent=5 // pred_check
        %p433 = pneg %p432
      $region70: #{tpu_custom_call.1} parent=5 // pred_check_branch
        %435 = sbr.rel (%p433) target = $region72
      $region71: #{tpu_custom_call.1} parent=5 // pred_region
        // Predicated region
        $region73: #{tpu_custom_call.1} parent=71 // pred_check
          %p436 = pneg %p75
        $region74: #{tpu_custom_call.1} parent=71 // pred_check_branch
          %438 = sbr.rel (%p436) target = $region76
        $region75: #{tpu_custom_call.1} parent=71 // pred_region
          %s439 = sand.u32 %s65, 1
          %s440 = sand.u32 %s65, 1
          %s441 = smul.addr %s440, 128
          %s442 = scalar_lea.vmem [#allocation4], %s441
          %s443 = smul.addr %s30, 4
          %s444 = scalar_lea.vmem %s1, %s443
          // Predicated region
          $region77: #{tpu_custom_call.1} parent=75 // pred_check
            _
          $region78: #{tpu_custom_call.1} parent=75 // pred_check_branch
            %446 = sbr.rel (0) target = $region80
          $region79: #{tpu_custom_call.1} parent=75 // pred_region
            // Predicated region
            $region81: #{tpu_custom_call.1} parent=79 // pred_check
              _
            $region82: #{tpu_custom_call.1} parent=79 // pred_check_branch
              %448 = sbr.rel target = $region84
            $region83: #{tpu_custom_call.1} parent=79 // pred_region
              // Predicated region
              $region96: #{tpu_custom_call.1} parent=83 // pred_check
                _
              $region97: #{tpu_custom_call.1} parent=83 // pred_check_branch
                %525 = sbr.rel (0) target = $region99
              $region98: #{tpu_custom_call.1} parent=83 // pred_region
                loop: start=0, step=1, limit=1
                $region100: #{tpu_custom_call.1} parent=98 // loop_pre_header
                  _
                $region101: #{tpu_custom_call.1} parent=98 // loop_header
                  %s527 = sphi 0, %s531
                  %p528 = scmp.ge.s32.totalorder %s527, 1
                  %s532 = sphi %s444, %s444
                  %s533 = sphi %s442, %s442
                $region102: #{tpu_custom_call.1} parent=98 // loop_header_branch
                  %530 = sbr.rel (%p528) target = $region106
                $region103: #{tpu_custom_call.1} parent=98 // loop_body
                  _
                $region104: #{tpu_custom_call.1} parent=98 // loop_footer
                  %s531 = sadd.s32 1, %s527
                $region105: #{tpu_custom_call.1} parent=98 // loop_footer_branch
                  %526 = sbr.rel target = $region101
                $region106: #{tpu_custom_call.1} parent=98 // loop_exit
                  _
                loop: start=0, step=1, limit=1
                $region107: #{tpu_custom_call.1} parent=98 // loop_pre_header
                  _
                $region108: #{tpu_custom_call.1} parent=98 // loop_header
                  %s536 = sphi 0, %s540
                  %p537 = scmp.ge.s32.totalorder %s536, 1
                  %s541 = sphi %s444, %s444
                  %s542 = sphi %s442, %s442
                $region109: #{tpu_custom_call.1} parent=98 // loop_header_branch
                  %539 = sbr.rel (%p537) target = $region113
                $region110: #{tpu_custom_call.1} parent=98 // loop_body
                  %v543 = vld [vmem:[%s541] sm:$0xf]
                  %544 = vst [vmem:[%s542] sm:$0xf] %v543
                  %v545 = vld [vmem:[%s541 + $0x8] sm:$0xf]
                  %546 = vst [vmem:[%s542 + $0x4] sm:$0xf] %v545
                  %v547 = vld [vmem:[%s541 + $0x10] sm:$0xf]
                  %548 = vst [vmem:[%s542 + $0x8] sm:$0xf] %v547
                  %v549 = vld [vmem:[%s541 + $0x18] sm:$0xf]
                  %550 = vst [vmem:[%s542 + $0xc] sm:$0xf] %v549
                  %v551 = vld [vmem:[%s541 + $0x20] sm:$0xf]
                  %552 = vst [vmem:[%s542 + $0x10] sm:$0xf] %v551
                  %v553 = vld [vmem:[%s541 + $0x28] sm:$0xf]
                  %554 = vst [vmem:[%s542 + $0x14] sm:$0xf] %v553
                  %v555 = vld [vmem:[%s541 + $0x30] sm:$0xf]
                  %556 = vst [vmem:[%s542 + $0x18] sm:$0xf] %v555
                  %v557 = vld [vmem:[%s541 + $0x38] sm:$0xf]
                  %558 = vst [vmem:[%s542 + $0x1c] sm:$0xf] %v557
                  %v559 = vld [vmem:[%s541 + $0x40] sm:$0xf]
                  %560 = vst [vmem:[%s542 + $0x20] sm:$0xf] %v559
                  %v561 = vld [vmem:[%s541 + $0x48] sm:$0xf]
                  %562 = vst [vmem:[%s542 + $0x24] sm:$0xf] %v561
                  %v563 = vld [vmem:[%s541 + $0x50] sm:$0xf]
                  %564 = vst [vmem:[%s542 + $0x28] sm:$0xf] %v563
                  %v565 = vld [vmem:[%s541 + $0x58] sm:$0xf]
                  %566 = vst [vmem:[%s542 + $0x2c] sm:$0xf] %v565
                  %v567 = vld [vmem:[%s541 + $0x60] sm:$0xf]
                  %568 = vst [vmem:[%s542 + $0x30] sm:$0xf] %v567
                  %v569 = vld [vmem:[%s541 + $0x68] sm:$0xf]
                  %570 = vst [vmem:[%s542 + $0x34] sm:$0xf] %v569
                  %v571 = vld [vmem:[%s541 + $0x70] sm:$0xf]
                  %572 = vst [vmem:[%s542 + $0x38] sm:$0xf] %v571
                  %v573 = vld [vmem:[%s541 + $0x78] sm:$0xf]
                  %574 = vst [vmem:[%s542 + $0x3c] sm:$0xf] %v573
                  %v575 = vld [vmem:[%s541 + $0x80] sm:$0xf]
                  %576 = vst [vmem:[%s542 + $0x40] sm:$0xf] %v575
                  %v577 = vld [vmem:[%s541 + $0x88] sm:$0xf]
                  %578 = vst [vmem:[%s542 + $0x44] sm:$0xf] %v577
                  %v579 = vld [vmem:[%s541 + $0x90] sm:$0xf]
                  %580 = vst [vmem:[%s542 + $0x48] sm:$0xf] %v579
                  %v581 = vld [vmem:[%s541 + $0x98] sm:$0xf]
                  %582 = vst [vmem:[%s542 + $0x4c] sm:$0xf] %v581
                  %v583 = vld [vmem:[%s541 + $0xa0] sm:$0xf]
                  %584 = vst [vmem:[%s542 + $0x50] sm:$0xf] %v583
                  %v585 = vld [vmem:[%s541 + $0xa8] sm:$0xf]
                  %586 = vst [vmem:[%s542 + $0x54] sm:$0xf] %v585
                  %v587 = vld [vmem:[%s541 + $0xb0] sm:$0xf]
                  %588 = vst [vmem:[%s542 + $0x58] sm:$0xf] %v587
                  %v589 = vld [vmem:[%s541 + $0xb8] sm:$0xf]
                  %590 = vst [vmem:[%s542 + $0x5c] sm:$0xf] %v589
                  %v591 = vld [vmem:[%s541 + $0xc0] sm:$0xf]
                  %592 = vst [vmem:[%s542 + $0x60] sm:$0xf] %v591
                  %v593 = vld [vmem:[%s541 + $0xc8] sm:$0xf]
                  %594 = vst [vmem:[%s542 + $0x64] sm:$0xf] %v593
                  %v595 = vld [vmem:[%s541 + $0xd0] sm:$0xf]
                  %596 = vst [vmem:[%s542 + $0x68] sm:$0xf] %v595
                  %v597 = vld [vmem:[%s541 + $0xd8] sm:$0xf]
                  %598 = vst [vmem:[%s542 + $0x6c] sm:$0xf] %v597
                  %v599 = vld [vmem:[%s541 + $0xe0] sm:$0xf]
                  %600 = vst [vmem:[%s542 + $0x70] sm:$0xf] %v599
                  %v601 = vld [vmem:[%s541 + $0xe8] sm:$0xf]
                  %602 = vst [vmem:[%s542 + $0x74] sm:$0xf] %v601
                  %v603 = vld [vmem:[%s541 + $0xf0] sm:$0xf]
                  %604 = vst [vmem:[%s542 + $0x78] sm:$0xf] %v603
                  %v605 = vld [vmem:[%s541 + $0xf8] sm:$0xf]
                  %606 = vst [vmem:[%s542 + $0x7c] sm:$0xf] %v605
                $region111: #{tpu_custom_call.1} parent=98 // loop_footer
                  %s540 = sadd.s32 1, %s536
                $region112: #{tpu_custom_call.1} parent=98 // loop_footer_branch
                  %535 = sbr.rel target = $region108
                $region113: #{tpu_custom_call.1} parent=98 // loop_exit
                  _
              $region99: #{tpu_custom_call.1} parent=83 // pred_fallthru
                _
            $region84: #{tpu_custom_call.1} parent=79 // pred_fallthru
              _
            // Predicated region
            $region85: #{tpu_custom_call.1} parent=79 // pred_check
              _
            $region86: #{tpu_custom_call.1} parent=79 // pred_check_branch
              %450 = sbr.rel (0) target = $region88
            $region87: #{tpu_custom_call.1} parent=79 // pred_region
              loop: start=0, step=1, limit=1
              $region89: #{tpu_custom_call.1} parent=87 // loop_pre_header
                _
              $region90: #{tpu_custom_call.1} parent=87 // loop_header
                %s453 = sphi 0, %s457
                %p454 = scmp.ge.s32.totalorder %s453, 1
                %s458 = sphi %s444, %s444
                %s459 = sphi %s442, %s442
              $region91: #{tpu_custom_call.1} parent=87 // loop_header_branch
                %456 = sbr.rel (%p454) target = $region95
              $region92: #{tpu_custom_call.1} parent=87 // loop_body
                %v460 = vld [vmem:[%s458] sm:$0xf]
                %461 = vst [vmem:[%s459] sm:$0xf] %v460
                %v462 = vld [vmem:[%s458 + $0x8] sm:$0xf]
                %463 = vst [vmem:[%s459 + $0x4] sm:$0xf] %v462
                %v464 = vld [vmem:[%s458 + $0x10] sm:$0xf]
                %465 = vst [vmem:[%s459 + $0x8] sm:$0xf] %v464
                %v466 = vld [vmem:[%s458 + $0x18] sm:$0xf]
                %467 = vst [vmem:[%s459 + $0xc] sm:$0xf] %v466
                %v468 = vld [vmem:[%s458 + $0x20] sm:$0xf]
                %469 = vst [vmem:[%s459 + $0x10] sm:$0xf] %v468
                %v470 = vld [vmem:[%s458 + $0x28] sm:$0xf]
                %471 = vst [vmem:[%s459 + $0x14] sm:$0xf] %v470
                %v472 = vld [vmem:[%s458 + $0x30] sm:$0xf]
                %473 = vst [vmem:[%s459 + $0x18] sm:$0xf] %v472
                %v474 = vld [vmem:[%s458 + $0x38] sm:$0xf]
                %475 = vst [vmem:[%s459 + $0x1c] sm:$0xf] %v474
                %v476 = vld [vmem:[%s458 + $0x40] sm:$0xf]
                %477 = vst [vmem:[%s459 + $0x20] sm:$0xf] %v476
                %v478 = vld [vmem:[%s458 + $0x48] sm:$0xf]
                %479 = vst [vmem:[%s459 + $0x24] sm:$0xf] %v478
                %v480 = vld [vmem:[%s458 + $0x50] sm:$0xf]
                %481 = vst [vmem:[%s459 + $0x28] sm:$0xf] %v480
                %v482 = vld [vmem:[%s458 + $0x58] sm:$0xf]
                %483 = vst [vmem:[%s459 + $0x2c] sm:$0xf] %v482
                %v484 = vld [vmem:[%s458 + $0x60] sm:$0xf]
                %485 = vst [vmem:[%s459 + $0x30] sm:$0xf] %v484
                %v486 = vld [vmem:[%s458 + $0x68] sm:$0xf]
                %487 = vst [vmem:[%s459 + $0x34] sm:$0xf] %v486
                %v488 = vld [vmem:[%s458 + $0x70] sm:$0xf]
                %489 = vst [vmem:[%s459 + $0x38] sm:$0xf] %v488
                %v490 = vld [vmem:[%s458 + $0x78] sm:$0xf]
                %491 = vst [vmem:[%s459 + $0x3c] sm:$0xf] %v490
                %v492 = vld [vmem:[%s458 + $0x80] sm:$0xf]
                %493 = vst [vmem:[%s459 + $0x40] sm:$0xf] %v492
                %v494 = vld [vmem:[%s458 + $0x88] sm:$0xf]
                %495 = vst [vmem:[%s459 + $0x44] sm:$0xf] %v494
                %v496 = vld [vmem:[%s458 + $0x90] sm:$0xf]
                %497 = vst [vmem:[%s459 + $0x48] sm:$0xf] %v496
                %v498 = vld [vmem:[%s458 + $0x98] sm:$0xf]
                %499 = vst [vmem:[%s459 + $0x4c] sm:$0xf] %v498
                %v500 = vld [vmem:[%s458 + $0xa0] sm:$0xf]
                %501 = vst [vmem:[%s459 + $0x50] sm:$0xf] %v500
                %v502 = vld [vmem:[%s458 + $0xa8] sm:$0xf]
                %503 = vst [vmem:[%s459 + $0x54] sm:$0xf] %v502
                %v504 = vld [vmem:[%s458 + $0xb0] sm:$0xf]
                %505 = vst [vmem:[%s459 + $0x58] sm:$0xf] %v504
                %v506 = vld [vmem:[%s458 + $0xb8] sm:$0xf]
                %507 = vst [vmem:[%s459 + $0x5c] sm:$0xf] %v506
                %v508 = vld [vmem:[%s458 + $0xc0] sm:$0xf]
                %509 = vst [vmem:[%s459 + $0x60] sm:$0xf] %v508
                %v510 = vld [vmem:[%s458 + $0xc8] sm:$0xf]
                %511 = vst [vmem:[%s459 + $0x64] sm:$0xf] %v510
                %v512 = vld [vmem:[%s458 + $0xd0] sm:$0xf]
                %513 = vst [vmem:[%s459 + $0x68] sm:$0xf] %v512
                %v514 = vld [vmem:[%s458 + $0xd8] sm:$0xf]
                %515 = vst [vmem:[%s459 + $0x6c] sm:$0xf] %v514
                %v516 = vld [vmem:[%s458 + $0xe0] sm:$0xf]
                %517 = vst [vmem:[%s459 + $0x70] sm:$0xf] %v516
                %v518 = vld [vmem:[%s458 + $0xe8] sm:$0xf]
                %519 = vst [vmem:[%s459 + $0x74] sm:$0xf] %v518
                %v520 = vld [vmem:[%s458 + $0xf0] sm:$0xf]
                %521 = vst [vmem:[%s459 + $0x78] sm:$0xf] %v520
                %v522 = vld [vmem:[%s458 + $0xf8] sm:$0xf]
                %523 = vst [vmem:[%s459 + $0x7c] sm:$0xf] %v522
              $region93: #{tpu_custom_call.1} parent=87 // loop_footer
                %s457 = sadd.s32 1, %s453
              $region94: #{tpu_custom_call.1} parent=87 // loop_footer_branch
                %452 = sbr.rel target = $region90
              $region95: #{tpu_custom_call.1} parent=87 // loop_exit
                _
            $region88: #{tpu_custom_call.1} parent=79 // pred_fallthru
              _
          $region80: #{tpu_custom_call.1} parent=75 // pred_fallthru
            _
          %607 = vnop
        $region76: #{tpu_custom_call.1} parent=71 // pred_fallthru
          _
      $region72: #{tpu_custom_call.1} parent=5 // pred_fallthru
        _
      %p608 = scmp.le.s32.totalorder 1, %s22
      %p609 = scmp.lt.s32.totalorder %s22, 5
      %p610 = pnand %p608, %p609
      %p611 = pneg %p610
      // Predicated region
      $region114: #{tpu_custom_call.1} parent=5 // pred_check
        _
      $region115: #{tpu_custom_call.1} parent=5 // pred_check_branch
        %613 = sbr.rel (%p610) target = $region117
      $region116: #{tpu_custom_call.1} parent=5 // pred_region
        %s614 = ssub.s32 %s22, 1
        %s615 = sand.u32 %s68, 1
        %s616 = sand.u32 %s68, 1
        %s617 = smul.addr %s616, 128
        %s618 = scalar_lea.vmem [#allocation4], %s617
        // Predicated region
        $region118: #{tpu_custom_call.1} parent=116 // pred_check
          %p619 = pneg %p81
        $region119: #{tpu_custom_call.1} parent=116 // pred_check_branch
          %621 = sbr.rel (%p619) target = $region121
        $region120: #{tpu_custom_call.1} parent=116 // pred_region
          _
        $region121: #{tpu_custom_call.1} parent=116 // pred_fallthru
          _
        %p622 = pneg %p55
        %p623 = pneg %p52
        %s624 = sand.u32 %s68, 1
        %s625 = sand.u32 %s68, 1
        %s626 = smul.addr %s625, 128
        %s627 = scalar_lea.vmem [#allocation4], %s626
        %p628 = pneg %p81
        %p629 = pneg %p78
        %p630 = pneg %p102
        %p631 = pneg %p99
        %p632 = pneg %p123
        %p633 = pneg %p120
        %p634 = pneg %p144
        %p635 = pneg %p141
        %p636 = pneg %p165
        %p637 = pneg %p162
        %p638 = pneg %p186
        %p639 = pneg %p183
        %p640 = pneg %p207
        %p641 = pneg %p204
        %p642 = pneg %p228
        %p643 = pneg %p225
        %p644 = pneg %p249
        %p645 = pneg %p246
        %p646 = pneg %p270
        %p647 = pneg %p267
        %p648 = pneg %p291
        %p649 = pneg %p288
        %p650 = pneg %p312
        %p651 = pneg %p309
        %p652 = pneg %p333
        %p653 = pneg %p330
        %p654 = pneg %p354
        %p655 = pneg %p351
        %p656 = pneg %p375
        %p657 = pneg %p372
        %v658 = vld [vmem:[%s618] sm:$0xf]
        %v659 = vld [vmem:[%s618 + $0x4] sm:$0xf]
        %v660 = vld [vmem:[%s618 + $0x8] sm:$0xf]
        %v661 = vld [vmem:[%s618 + $0xc] sm:$0xf]
        %v662 = vld [vmem:[%s618 + $0x10] sm:$0xf]
        %v663 = vld [vmem:[%s618 + $0x14] sm:$0xf]
        %v664 = vld [vmem:[%s618 + $0x18] sm:$0xf]
        %v665 = vld [vmem:[%s618 + $0x1c] sm:$0xf]
        %v666 = vld [vmem:[%s618 + $0x20] sm:$0xf]
        %v667 = vld [vmem:[%s618 + $0x24] sm:$0xf]
        %v668 = vld [vmem:[%s618 + $0x28] sm:$0xf]
        %v669 = vld [vmem:[%s618 + $0x2c] sm:$0xf]
        %v670 = vld [vmem:[%s618 + $0x30] sm:$0xf]
        %v671 = vld [vmem:[%s618 + $0x34] sm:$0xf]
        %v672 = vld [vmem:[%s618 + $0x38] sm:$0xf]
        %v673 = vld [vmem:[%s618 + $0x3c] sm:$0xf]
        %v674 = vld [vmem:[%s618 + $0x40] sm:$0xf]
        %v675 = vld [vmem:[%s618 + $0x44] sm:$0xf]
        %v676 = vld [vmem:[%s618 + $0x48] sm:$0xf]
        %v677 = vld [vmem:[%s618 + $0x4c] sm:$0xf]
        %v678 = vld [vmem:[%s618 + $0x50] sm:$0xf]
        %v679 = vld [vmem:[%s618 + $0x54] sm:$0xf]
        %v680 = vld [vmem:[%s618 + $0x58] sm:$0xf]
        %v681 = vld [vmem:[%s618 + $0x5c] sm:$0xf]
        %v682 = vld [vmem:[%s618 + $0x60] sm:$0xf]
        %v683 = vld [vmem:[%s618 + $0x64] sm:$0xf]
        %v684 = vld [vmem:[%s618 + $0x68] sm:$0xf]
        %v685 = vld [vmem:[%s618 + $0x6c] sm:$0xf]
        %v686 = vld [vmem:[%s618 + $0x70] sm:$0xf]
        %v687 = vld [vmem:[%s618 + $0x74] sm:$0xf]
        %v688 = vld [vmem:[%s618 + $0x78] sm:$0xf]
        %v689 = vld [vmem:[%s618 + $0x7c] sm:$0xf]
        %v690 = vunpack.c.l.bf16 %v658
        %v691 = vunpack.c.l.bf16 %v659
        %v692 = vunpack.c.l.bf16 %v660
        %v693 = vunpack.c.l.bf16 %v661
        %v694 = vunpack.c.l.bf16 %v662
        %v695 = vunpack.c.l.bf16 %v663
        %v696 = vunpack.c.l.bf16 %v664
        %v697 = vunpack.c.l.bf16 %v665
        %v698 = vunpack.c.l.bf16 %v666
        %v699 = vunpack.c.l.bf16 %v667
        %v700 = vunpack.c.l.bf16 %v668
        %v701 = vunpack.c.l.bf16 %v669
        %v702 = vunpack.c.l.bf16 %v670
        %v703 = vunpack.c.l.bf16 %v671
        %v704 = vunpack.c.l.bf16 %v672
        %v705 = vunpack.c.l.bf16 %v673
        %v706 = vunpack.c.l.bf16 %v674
        %v707 = vunpack.c.l.bf16 %v675
        %v708 = vunpack.c.l.bf16 %v676
        %v709 = vunpack.c.l.bf16 %v677
        %v710 = vunpack.c.l.bf16 %v678
        %v711 = vunpack.c.l.bf16 %v679
        %v712 = vunpack.c.l.bf16 %v680
        %v713 = vunpack.c.l.bf16 %v681
        %v714 = vunpack.c.l.bf16 %v682
        %v715 = vunpack.c.l.bf16 %v683
        %v716 = vunpack.c.l.bf16 %v684
        %v717 = vunpack.c.l.bf16 %v685
        %v718 = vunpack.c.l.bf16 %v686
        %v719 = vunpack.c.l.bf16 %v687
        %v720 = vunpack.c.l.bf16 %v688
        %v721 = vunpack.c.l.bf16 %v689
        %p722 = scmp.eq.s32.totalorder %s32, 0
        // Predicated region
        $region122: #{tpu_custom_call.1} parent=116 // pred_check
          %p723 = pneg %p722
        $region123: #{tpu_custom_call.1} parent=116 // pred_check_branch
          %725 = sbr.rel (%p723) target = $region125
        $region124: #{tpu_custom_call.1} parent=116 // pred_region
          %vm726 = vcmask 261120
          %727 = vst.msk [vmem:[#allocation3] sm:$0xff] %vm726, 0.0
          %728 = vst.msk [vmem:[#allocation3 + $0x8] sm:$0xff] %vm726, 0.0
          %729 = vst.msk [vmem:[#allocation3 + $0x10] sm:$0xff] %vm726, 0.0
          %730 = vst.msk [vmem:[#allocation3 + $0x18] sm:$0xff] %vm726, 0.0
          %731 = vst.msk [vmem:[#allocation3 + $0x20] sm:$0xff] %vm726, 0.0
          %732 = vst.msk [vmem:[#allocation3 + $0x28] sm:$0xff] %vm726, 0.0
          %733 = vst.msk [vmem:[#allocation3 + $0x30] sm:$0xff] %vm726, 0.0
          %734 = vst.msk [vmem:[#allocation3 + $0x38] sm:$0xff] %vm726, 0.0
          %735 = vst.msk [vmem:[#allocation3 + $0x40] sm:$0xff] %vm726, 0.0
          %736 = vst.msk [vmem:[#allocation3 + $0x48] sm:$0xff] %vm726, 0.0
          %737 = vst.msk [vmem:[#allocation3 + $0x50] sm:$0xff] %vm726, 0.0
          %738 = vst.msk [vmem:[#allocation3 + $0x58] sm:$0xff] %vm726, 0.0
          %739 = vst.msk [vmem:[#allocation3 + $0x60] sm:$0xff] %vm726, 0.0
          %740 = vst.msk [vmem:[#allocation3 + $0x68] sm:$0xff] %vm726, 0.0
          %741 = vst.msk [vmem:[#allocation3 + $0x70] sm:$0xff] %vm726, 0.0
          %742 = vst.msk [vmem:[#allocation3 + $0x78] sm:$0xff] %vm726, 0.0
          %743 = vst.msk [vmem:[#allocation3 + $0x80] sm:$0xff] %vm726, 0.0
          %744 = vst.msk [vmem:[#allocation3 + $0x88] sm:$0xff] %vm726, 0.0
          %745 = vst.msk [vmem:[#allocation3 + $0x90] sm:$0xff] %vm726, 0.0
          %746 = vst.msk [vmem:[#allocation3 + $0x98] sm:$0xff] %vm726, 0.0
          %747 = vst.msk [vmem:[#allocation3 + $0xa0] sm:$0xff] %vm726, 0.0
          %748 = vst.msk [vmem:[#allocation3 + $0xa8] sm:$0xff] %vm726, 0.0
          %749 = vst.msk [vmem:[#allocation3 + $0xb0] sm:$0xff] %vm726, 0.0
          %750 = vst.msk [vmem:[#allocation3 + $0xb8] sm:$0xff] %vm726, 0.0
          %751 = vst.msk [vmem:[#allocation3 + $0xc0] sm:$0xff] %vm726, 0.0
          %752 = vst.msk [vmem:[#allocation3 + $0xc8] sm:$0xff] %vm726, 0.0
          %753 = vst.msk [vmem:[#allocation3 + $0xd0] sm:$0xff] %vm726, 0.0
          %754 = vst.msk [vmem:[#allocation3 + $0xd8] sm:$0xff] %vm726, 0.0
          %755 = vst.msk [vmem:[#allocation3 + $0xe0] sm:$0xff] %vm726, 0.0
          %756 = vst.msk [vmem:[#allocation3 + $0xe8] sm:$0xff] %vm726, 0.0
          %757 = vst.msk [vmem:[#allocation3 + $0xf0] sm:$0xff] %vm726, 0.0
          %758 = vst.msk [vmem:[#allocation3 + $0xf8] sm:$0xff] %vm726, 0.0
        $region125: #{tpu_custom_call.1} parent=116 // pred_fallthru
          _
        %s759 = smul.u32 %s32, 128
        %p760 = scmp.eq.s32.totalorder %s31, 0
        // Predicated region
        $region126: #{tpu_custom_call.1} parent=116 // pred_check
          %p761 = pneg %p760
        $region127: #{tpu_custom_call.1} parent=116 // pred_check_branch
          %763 = sbr.rel (%p761) target = $region129
        $region128: #{tpu_custom_call.1} parent=116 // pred_region
          %s764 = scalar_lea.vmem %s0, %s759
          %v765 = vld [vmem:[%s764] sm:$0xff]
          %v766 = vld [vmem:[%s764 + $0x8] sm:$0xff]
          %v767 = vld [vmem:[%s764 + $0x10] sm:$0xff]
          %v768 = vld [vmem:[%s764 + $0x18] sm:$0xff]
          %v769 = vld [vmem:[%s764 + $0x20] sm:$0xff]
          %v770 = vld [vmem:[%s764 + $0x28] sm:$0xff]
          %v771 = vld [vmem:[%s764 + $0x30] sm:$0xff]
          %v772 = vld [vmem:[%s764 + $0x38] sm:$0xff]
          %v773 = vld [vmem:[%s764 + $0x40] sm:$0xff]
          %v774 = vld [vmem:[%s764 + $0x48] sm:$0xff]
          %v775 = vld [vmem:[%s764 + $0x50] sm:$0xff]
          %v776 = vld [vmem:[%s764 + $0x58] sm:$0xff]
          %v777 = vld [vmem:[%s764 + $0x60] sm:$0xff]
          %v778 = vld [vmem:[%s764 + $0x68] sm:$0xff]
          %v779 = vld [vmem:[%s764 + $0x70] sm:$0xff]
          %v780 = vld [vmem:[%s764 + $0x78] sm:$0xff]
          %v781 = vld [vmem:[%s7] sm:$0xff]
          %v782 = vld [vmem:[%s7 + $0x8] sm:$0xff]
          %v783 = vld [vmem:[%s8] sm:$0x1]
          %v785 = vlaneseq
          %v786 = vshrl.u32 %v785, 7
          %v787 = vsub.s32 0, %v786
          %v788 = vrot.slane %v783, %v787
          %vm790 = vcmask 130048
          %v792 = vsel %vm790, %v765, 0
          %v795 = vsel %vm790, %v766, 0
          %v798 = vsel %vm790, %v767, 0
          %v801 = vsel %vm790, %v768, 0
          %v804 = vsel %vm790, %v769, 0
          %v807 = vsel %vm790, %v770, 0
          %v810 = vsel %vm790, %v771, 0
          %v813 = vsel %vm790, %v772, 0
          %v816 = vsel %vm790, %v773, 0
          %v819 = vsel %vm790, %v774, 0
          %v822 = vsel %vm790, %v775, 0
          %v825 = vsel %vm790, %v776, 0
          %v828 = vsel %vm790, %v777, 0
          %v831 = vsel %vm790, %v778, 0
          %v834 = vsel %vm790, %v779, 0
          %v837 = vsel %vm790, %v780, 0
          %839 = vmatprep.subr.mxu0 0.0
          %840 = vmatpush1.msra.mxu0 %v781
          %841 = vmatprep.subr.mxu0 0.0
          %842 = vmatpush1.msra.mxu0 %v782
          %843 = vmatprep.subr.mxu0 0.0
          %844 = vmatpush1.msra.mxu0 0.0
          %845 = vmatprep.subr.mxu0 0.0
          %846 = vmatpush1.msra.mxu0 0.0
          %847 = vmatprep.subr.mxu0 0.0
          %848 = vmatpush1.msra.mxu0 0.0
          %849 = vmatprep.subr.mxu0 0.0
          %850 = vmatpush1.msra.mxu0 0.0
          %851 = vmatprep.subr.mxu0 0.0
          %852 = vmatpush1.msra.mxu0 0.0
          %853 = vmatprep.subr.mxu0 0.0
          %854 = vmatpush1.msra.mxu0 0.0
          %855 = vmatprep.subr.mxu0 0.0
          %856 = vmatpush1.msra.mxu0 0.0
          %857 = vmatprep.subr.mxu0 0.0
          %858 = vmatpush1.msra.mxu0 0.0
          %859 = vmatprep.subr.mxu0 0.0
          %860 = vmatpush1.msra.mxu0 0.0
          %861 = vmatprep.subr.mxu0 0.0
          %862 = vmatpush1.msra.mxu0 0.0
          %863 = vmatprep.subr.mxu0 0.0
          %864 = vmatpush1.msra.mxu0 0.0
          %865 = vmatprep.subr.mxu0 0.0
          %866 = vmatpush1.msra.mxu0 0.0
          %867 = vmatprep.subr.mxu0 0.0
          %868 = vmatpush1.msra.mxu0 0.0
          %869 = vmatprep.subr.mxu0 0.0
          %870 = vmatpush1.msra.mxu0 0.0
          %871 = vmatprep.subr.mxu0 0.0
          %872 = vmatpush1.msra.mxu0 0.0
          %873 = vmatprep.subr.mxu0 0.0
          %874 = vmatpush1.msra.mxu0 0.0
          %875 = vmatprep.subr.mxu0 0.0
          %876 = vmatpush1.msra.mxu0 0.0
          %877 = vmatprep.subr.mxu0 0.0
          %878 = vmatpush1.msra.mxu0 0.0
          %879 = vmatprep.subr.mxu0 0.0
          %880 = vmatpush1.msra.mxu0 0.0
          %881 = vmatprep.subr.mxu0 0.0
          %882 = vmatpush1.msra.mxu0 0.0
          %883 = vmatprep.subr.mxu0 0.0
          %884 = vmatpush1.msra.mxu0 0.0
          %885 = vmatprep.subr.mxu0 0.0
          %886 = vmatpush1.msra.mxu0 0.0
          %887 = vmatprep.subr.mxu0 0.0
          %888 = vmatpush1.msra.mxu0 0.0
          %889 = vmatprep.subr.mxu0 0.0
          %890 = vmatpush1.msra.mxu0 0.0
          %891 = vmatprep.subr.mxu0 0.0
          %892 = vmatpush1.msra.mxu0 0.0
          %893 = vmatprep.subr.mxu0 0.0
          %894 = vmatpush1.msra.mxu0 0.0
          %895 = vmatprep.subr.mxu0 0.0
          %896 = vmatpush1.msra.mxu0 0.0
          %897 = vmatprep.subr.mxu0 0.0
          %898 = vmatpush1.msra.mxu0 0.0
          %899 = vmatprep.subr.mxu0 0.0
          %900 = vmatpush1.msra.mxu0 0.0
          %901 = vmatprep.subr.mxu0 0.0
          %902 = vmatpush1.msra.mxu0 0.0
          %903 = vmatprep.mubr.f32.mxu0 0.0
          %904 = vmatmul.mubr.f32.gmra.mrb[0].mxu0 %v792
          %v905 = vpop.f32.mrb[0].mxu0
          %v906 = vadd.f32 %v788, %v905
          %v907 = vpop.f32.mrb[0].mxu0
          %908 = vmatprep.mubr.f32.mxu0 0.0
          %909 = vmatmul.mubr.f32.gmra.mrb[0].mxu0 %v795
          %v910 = vpop.f32.mrb[0].mxu0
          %v911 = vadd.f32 %v788, %v910
          %v912 = vpop.f32.mrb[0].mxu0
          %913 = vmatprep.mubr.f32.mxu0 0.0
          %914 = vmatmul.mubr.f32.gmra.mrb[0].mxu0 %v798
          %v915 = vpop.f32.mrb[0].mxu0
          %v916 = vadd.f32 %v788, %v915
          %v917 = vpop.f32.mrb[0].mxu0
          %918 = vmatprep.mubr.f32.mxu0 0.0
          %919 = vmatmul.mubr.f32.gmra.mrb[0].mxu0 %v801
          %v920 = vpop.f32.mrb[0].mxu0
          %v921 = vadd.f32 %v788, %v920
          %v922 = vpop.f32.mrb[0].mxu0
          %923 = vmatprep.mubr.f32.mxu0 0.0
          %924 = vmatmul.mubr.f32.gmra.mrb[0].mxu0 %v804
          %v925 = vpop.f32.mrb[0].mxu0
          %v926 = vadd.f32 %v788, %v925
          %v927 = vpop.f32.mrb[0].mxu0
          %928 = vmatprep.mubr.f32.mxu0 0.0
          %929 = vmatmul.mubr.f32.gmra.mrb[0].mxu0 %v807
          %v930 = vpop.f32.mrb[0].mxu0
          %v931 = vadd.f32 %v788, %v930
          %v932 = vpop.f32.mrb[0].mxu0
          %933 = vmatprep.mubr.f32.mxu0 0.0
          %934 = vmatmul.mubr.f32.gmra.mrb[0].mxu0 %v810
          %v935 = vpop.f32.mrb[0].mxu0
          %v936 = vadd.f32 %v788, %v935
          %v937 = vpop.f32.mrb[0].mxu0
          %938 = vmatprep.mubr.f32.mxu0 0.0
          %939 = vmatmul.mubr.f32.gmra.mrb[0].mxu0 %v813
          %v940 = vpop.f32.mrb[0].mxu0
          %v941 = vadd.f32 %v788, %v940
          %v942 = vpop.f32.mrb[0].mxu0
          %943 = vmatprep.mubr.f32.mxu0 0.0
          %944 = vmatmul.mubr.f32.gmra.mrb[0].mxu0 %v816
          %v945 = vpop.f32.mrb[0].mxu0
          %v946 = vadd.f32 %v788, %v945
          %v947 = vpop.f32.mrb[0].mxu0
          %948 = vmatprep.mubr.f32.mxu0 0.0
          %949 = vmatmul.mubr.f32.gmra.mrb[0].mxu0 %v819
          %v950 = vpop.f32.mrb[0].mxu0
          %v951 = vadd.f32 %v788, %v950
          %v952 = vpop.f32.mrb[0].mxu0
          %953 = vmatprep.mubr.f32.mxu0 0.0
          %954 = vmatmul.mubr.f32.gmra.mrb[0].mxu0 %v822
          %v955 = vpop.f32.mrb[0].mxu0
          %v956 = vadd.f32 %v788, %v955
          %v957 = vpop.f32.mrb[0].mxu0
          %958 = vmatprep.mubr.f32.mxu0 0.0
          %959 = vmatmul.mubr.f32.gmra.mrb[0].mxu0 %v825
          %v960 = vpop.f32.mrb[0].mxu0
          %v961 = vadd.f32 %v788, %v960
          %v962 = vpop.f32.mrb[0].mxu0
          %963 = vmatprep.mubr.f32.mxu0 0.0
          %964 = vmatmul.mubr.f32.gmra.mrb[0].mxu0 %v828
          %v965 = vpop.f32.mrb[0].mxu0
          %v966 = vadd.f32 %v788, %v965
          %v967 = vpop.f32.mrb[0].mxu0
          %968 = vmatprep.mubr.f32.mxu0 0.0
          %969 = vmatmul.mubr.f32.gmra.mrb[0].mxu0 %v831
          %v970 = vpop.f32.mrb[0].mxu0
          %v971 = vadd.f32 %v788, %v970
          %v972 = vpop.f32.mrb[0].mxu0
          %973 = vmatprep.mubr.f32.mxu0 0.0
          %974 = vmatmul.mubr.f32.gmra.mrb[0].mxu0 %v834
          %v975 = vpop.f32.mrb[0].mxu0
          %v976 = vadd.f32 %v788, %v975
          %v977 = vpop.f32.mrb[0].mxu0
          %978 = vmatprep.mubr.f32.mxu0 0.0
          %979 = vmatmul.mubr.f32.gmra.mrb[0].mxu0 %v837
          %v980 = vpop.f32.mrb[0].mxu0
          %v981 = vadd.f32 %v788, %v980
          %v982 = vpop.f32.mrb[0].mxu0
          %983 = vdwg.mxu0
          %v984 = vld [vmem:[#allocation3] sm:$0xff]
          %v985 = vld [vmem:[#allocation3 + $0x8] sm:$0xff]
          %v986 = vld [vmem:[#allocation3 + $0x10] sm:$0xff]
          %v987 = vld [vmem:[#allocation3 + $0x18] sm:$0xff]
          %v988 = vld [vmem:[#allocation3 + $0x20] sm:$0xff]
          %v989 = vld [vmem:[#allocation3 + $0x28] sm:$0xff]
          %v990 = vld [vmem:[#allocation3 + $0x30] sm:$0xff]
          %v991 = vld [vmem:[#allocation3 + $0x38] sm:$0xff]
          %v992 = vld [vmem:[#allocation3 + $0x40] sm:$0xff]
          %v993 = vld [vmem:[#allocation3 + $0x48] sm:$0xff]
          %v994 = vld [vmem:[#allocation3 + $0x50] sm:$0xff]
          %v995 = vld [vmem:[#allocation3 + $0x58] sm:$0xff]
          %v996 = vld [vmem:[#allocation3 + $0x60] sm:$0xff]
          %v997 = vld [vmem:[#allocation3 + $0x68] sm:$0xff]
          %v998 = vld [vmem:[#allocation3 + $0x70] sm:$0xff]
          %v999 = vld [vmem:[#allocation3 + $0x78] sm:$0xff]
          %v1000 = vld [vmem:[#allocation3 + $0x80] sm:$0xff]
          %v1001 = vld [vmem:[#allocation3 + $0x88] sm:$0xff]
          %v1002 = vld [vmem:[#allocation3 + $0x90] sm:$0xff]
          %v1003 = vld [vmem:[#allocation3 + $0x98] sm:$0xff]
          %v1004 = vld [vmem:[#allocation3 + $0xa0] sm:$0xff]
          %v1005 = vld [vmem:[#allocation3 + $0xa8] sm:$0xff]
          %v1006 = vld [vmem:[#allocation3 + $0xb0] sm:$0xff]
          %v1007 = vld [vmem:[#allocation3 + $0xb8] sm:$0xff]
          %v1008 = vld [vmem:[#allocation3 + $0xc0] sm:$0xff]
          %v1009 = vld [vmem:[#allocation3 + $0xc8] sm:$0xff]
          %v1010 = vld [vmem:[#allocation3 + $0xd0] sm:$0xff]
          %v1011 = vld [vmem:[#allocation3 + $0xd8] sm:$0xff]
          %v1012 = vld [vmem:[#allocation3 + $0xe0] sm:$0xff]
          %v1013 = vld [vmem:[#allocation3 + $0xe8] sm:$0xff]
          %v1014 = vld [vmem:[#allocation3 + $0xf0] sm:$0xff]
          %v1015 = vld [vmem:[#allocation3 + $0xf8] sm:$0xff]
          %1016 = vmatprep.subr.mxu0 0.0
          %1017 = vmatpush1.msra.mxu0 %v906
          %1018 = vmatprep.subr.mxu0 0.0
          %1019 = vmatpush1.msra.mxu0 %v911
          %1020 = vmatprep.subr.mxu0 0.0
          %1021 = vmatpush1.msra.mxu0 %v916
          %1022 = vmatprep.subr.mxu0 0.0
          %1023 = vmatpush1.msra.mxu0 %v921
          %1024 = vmatprep.subr.mxu0 0.0
          %1025 = vmatpush1.msra.mxu0 %v926
          %1026 = vmatprep.subr.mxu0 0.0
          %1027 = vmatpush1.msra.mxu0 %v931
          %1028 = vmatprep.subr.mxu0 0.0
          %1029 = vmatpush1.msra.mxu0 %v936
          %1030 = vmatprep.subr.mxu0 0.0
          %1031 = vmatpush1.msra.mxu0 %v941
          %1032 = vmatprep.subr.mxu0 0.0
          %1033 = vmatpush1.msra.mxu0 %v946
          %1034 = vmatprep.subr.mxu0 0.0
          %1035 = vmatpush1.msra.mxu0 %v951
          %1036 = vmatprep.subr.mxu0 0.0
          %1037 = vmatpush1.msra.mxu0 %v956
          %1038 = vmatprep.subr.mxu0 0.0
          %1039 = vmatpush1.msra.mxu0 %v961
          %1040 = vmatprep.subr.mxu0 0.0
          %1041 = vmatpush1.msra.mxu0 %v966
          %1042 = vmatprep.subr.mxu0 0.0
          %1043 = vmatpush1.msra.mxu0 %v971
          %1044 = vmatprep.subr.mxu0 0.0
          %1045 = vmatpush1.msra.mxu0 %v976
          %1046 = vmatprep.subr.mxu0 0.0
          %1047 = vmatpush1.msra.mxu0 %v981
          %1048 = vmatprep.subr.mxu0 0.0
          %1049 = vmatpush1.msra.mxu0 0.0
          %1050 = vmatprep.subr.mxu0 0.0
          %1051 = vmatpush1.msra.mxu0 0.0
          %1052 = vmatprep.subr.mxu0 0.0
          %1053 = vmatpush1.msra.mxu0 0.0
          %1054 = vmatprep.subr.mxu0 0.0
          %1055 = vmatpush1.msra.mxu0 0.0
          %1056 = vmatprep.subr.mxu0 0.0
          %1057 = vmatpush1.msra.mxu0 0.0
          %1058 = vmatprep.subr.mxu0 0.0
          %1059 = vmatpush1.msra.mxu0 0.0
          %1060 = vmatprep.subr.mxu0 0.0
          %1061 = vmatpush1.msra.mxu0 0.0
          %1062 = vmatprep.subr.mxu0 0.0
          %1063 = vmatpush1.msra.mxu0 0.0
          %1064 = vmatprep.subr.mxu0 0.0
          %1065 = vmatpush1.msra.mxu0 0.0
          %1066 = vmatprep.subr.mxu0 0.0
          %1067 = vmatpush1.msra.mxu0 0.0
          %1068 = vmatprep.subr.mxu0 0.0
          %1069 = vmatpush1.msra.mxu0 0.0
          %1070 = vmatprep.subr.mxu0 0.0
          %1071 = vmatpush1.msra.mxu0 0.0
          %1072 = vmatprep.subr.mxu0 0.0
          %1073 = vmatpush1.msra.mxu0 0.0
          %1074 = vmatprep.subr.mxu0 0.0
          %1075 = vmatpush1.msra.mxu0 0.0
          %1076 = vmatprep.subr.mxu0 0.0
          %1077 = vmatpush1.msra.mxu0 0.0
          %1078 = vmatprep.subr.mxu0 0.0
          %1079 = vmatpush1.msra.mxu0 0.0
          %1080 = vmatprep.mubr.f32.mxu0 0.0
          %1081 = vmatmul.mubr.f32.gmra.mrb[0].mxu0 %v690
          %v1082 = vpop.f32.mrb[0].mxu0
          %v1083 = vadd.f32 0.0, %v1082
          %v1084 = vpop.f32.mrb[0].mxu0
          %1085 = vmatprep.mubr.f32.mxu0 0.0
          %1086 = vmatmul.mubr.f32.gmra.mrb[0].mxu0 %v691
          %v1087 = vpop.f32.mrb[0].mxu0
          %v1088 = vadd.f32 0.0, %v1087
          %v1089 = vpop.f32.mrb[0].mxu0
          %1090 = vmatprep.mubr.f32.mxu0 0.0
          %1091 = vmatmul.mubr.f32.gmra.mrb[0].mxu0 %v692
          %v1092 = vpop.f32.mrb[0].mxu0
          %v1093 = vadd.f32 0.0, %v1092
          %v1094 = vpop.f32.mrb[0].mxu0
          %1095 = vmatprep.mubr.f32.mxu0 0.0
          %1096 = vmatmul.mubr.f32.gmra.mrb[0].mxu0 %v693
          %v1097 = vpop.f32.mrb[0].mxu0
          %v1098 = vadd.f32 0.0, %v1097
          %v1099 = vpop.f32.mrb[0].mxu0
          %1100 = vmatprep.mubr.f32.mxu0 0.0
          %1101 = vmatmul.mubr.f32.gmra.mrb[0].mxu0 %v694
          %v1102 = vpop.f32.mrb[0].mxu0
          %v1103 = vadd.f32 0.0, %v1102
          %v1104 = vpop.f32.mrb[0].mxu0
          %1105 = vmatprep.mubr.f32.mxu0 0.0
          %1106 = vmatmul.mubr.f32.gmra.mrb[0].mxu0 %v695
          %v1107 = vpop.f32.mrb[0].mxu0
          %v1108 = vadd.f32 0.0, %v1107
          %v1109 = vpop.f32.mrb[0].mxu0
          %1110 = vmatprep.mubr.f32.mxu0 0.0
          %1111 = vmatmul.mubr.f32.gmra.mrb[0].mxu0 %v696
          %v1112 = vpop.f32.mrb[0].mxu0
          %v1113 = vadd.f32 0.0, %v1112
          %v1114 = vpop.f32.mrb[0].mxu0
          %1115 = vmatprep.mubr.f32.mxu0 0.0
          %1116 = vmatmul.mubr.f32.gmra.mrb[0].mxu0 %v697
          %v1117 = vpop.f32.mrb[0].mxu0
          %v1118 = vadd.f32 0.0, %v1117
          %v1119 = vpop.f32.mrb[0].mxu0
          %1120 = vmatprep.mubr.f32.mxu0 0.0
          %1121 = vmatmul.mubr.f32.gmra.mrb[0].mxu0 %v698
          %v1122 = vpop.f32.mrb[0].mxu0
          %v1123 = vadd.f32 0.0, %v1122
          %v1124 = vpop.f32.mrb[0].mxu0
          %1125 = vmatprep.mubr.f32.mxu0 0.0
          %1126 = vmatmul.mubr.f32.gmra.mrb[0].mxu0 %v699
          %v1127 = vpop.f32.mrb[0].mxu0
          %v1128 = vadd.f32 0.0, %v1127
          %v1129 = vpop.f32.mrb[0].mxu0
          %1130 = vmatprep.mubr.f32.mxu0 0.0
          %1131 = vmatmul.mubr.f32.gmra.mrb[0].mxu0 %v700
          %v1132 = vpop.f32.mrb[0].mxu0
          %v1133 = vadd.f32 0.0, %v1132
          %v1134 = vpop.f32.mrb[0].mxu0
          %1135 = vmatprep.mubr.f32.mxu0 0.0
          %1136 = vmatmul.mubr.f32.gmra.mrb[0].mxu0 %v701
          %v1137 = vpop.f32.mrb[0].mxu0
          %v1138 = vadd.f32 0.0, %v1137
          %v1139 = vpop.f32.mrb[0].mxu0
          %1140 = vmatprep.mubr.f32.mxu0 0.0
          %1141 = vmatmul.mubr.f32.gmra.mrb[0].mxu0 %v702
          %v1142 = vpop.f32.mrb[0].mxu0
          %v1143 = vadd.f32 0.0, %v1142
          %v1144 = vpop.f32.mrb[0].mxu0
          %1145 = vmatprep.mubr.f32.mxu0 0.0
          %1146 = vmatmul.mubr.f32.gmra.mrb[0].mxu0 %v703
          %v1147 = vpop.f32.mrb[0].mxu0
          %v1148 = vadd.f32 0.0, %v1147
          %v1149 = vpop.f32.mrb[0].mxu0
          %1150 = vmatprep.mubr.f32.mxu0 0.0
          %1151 = vmatmul.mubr.f32.gmra.mrb[0].mxu0 %v704
          %v1152 = vpop.f32.mrb[0].mxu0
          %v1153 = vadd.f32 0.0, %v1152
          %v1154 = vpop.f32.mrb[0].mxu0
          %1155 = vmatprep.mubr.f32.mxu0 0.0
          %1156 = vmatmul.mubr.f32.gmra.mrb[0].mxu0 %v705
          %v1157 = vpop.f32.mrb[0].mxu0
          %v1158 = vadd.f32 0.0, %v1157
          %v1159 = vpop.f32.mrb[0].mxu0
          %1160 = vmatprep.mubr.f32.mxu0 0.0
          %1161 = vmatmul.mubr.f32.gmra.mrb[0].mxu0 %v706
          %v1162 = vpop.f32.mrb[0].mxu0
          %v1163 = vadd.f32 0.0, %v1162
          %v1164 = vpop.f32.mrb[0].mxu0
          %1165 = vmatprep.mubr.f32.mxu0 0.0
          %1166 = vmatmul.mubr.f32.gmra.mrb[0].mxu0 %v707
          %v1167 = vpop.f32.mrb[0].mxu0
          %v1168 = vadd.f32 0.0, %v1167
          %v1169 = vpop.f32.mrb[0].mxu0
          %1170 = vmatprep.mubr.f32.mxu0 0.0
          %1171 = vmatmul.mubr.f32.gmra.mrb[0].mxu0 %v708
          %v1172 = vpop.f32.mrb[0].mxu0
          %v1173 = vadd.f32 0.0, %v1172
          %v1174 = vpop.f32.mrb[0].mxu0
          %1175 = vmatprep.mubr.f32.mxu0 0.0
          %1176 = vmatmul.mubr.f32.gmra.mrb[0].mxu0 %v709
          %v1177 = vpop.f32.mrb[0].mxu0
          %v1178 = vadd.f32 0.0, %v1177
          %v1179 = vpop.f32.mrb[0].mxu0
          %1180 = vmatprep.mubr.f32.mxu0 0.0
          %1181 = vmatmul.mubr.f32.gmra.mrb[0].mxu0 %v710
          %v1182 = vpop.f32.mrb[0].mxu0
          %v1183 = vadd.f32 0.0, %v1182
          %v1184 = vpop.f32.mrb[0].mxu0
          %1185 = vmatprep.mubr.f32.mxu0 0.0
          %1186 = vmatmul.mubr.f32.gmra.mrb[0].mxu0 %v711
          %v1187 = vpop.f32.mrb[0].mxu0
          %v1188 = vadd.f32 0.0, %v1187
          %v1189 = vpop.f32.mrb[0].mxu0
          %1190 = vmatprep.mubr.f32.mxu0 0.0
          %1191 = vmatmul.mubr.f32.gmra.mrb[0].mxu0 %v712
          %v1192 = vpop.f32.mrb[0].mxu0
          %v1193 = vadd.f32 0.0, %v1192
          %v1194 = vpop.f32.mrb[0].mxu0
          %1195 = vmatprep.mubr.f32.mxu0 0.0
          %1196 = vmatmul.mubr.f32.gmra.mrb[0].mxu0 %v713
          %v1197 = vpop.f32.mrb[0].mxu0
          %v1198 = vadd.f32 0.0, %v1197
          %v1199 = vpop.f32.mrb[0].mxu0
          %1200 = vmatprep.mubr.f32.mxu0 0.0
          %1201 = vmatmul.mubr.f32.gmra.mrb[0].mxu0 %v714
          %v1202 = vpop.f32.mrb[0].mxu0
          %v1203 = vadd.f32 0.0, %v1202
          %v1204 = vpop.f32.mrb[0].mxu0
          %1205 = vmatprep.mubr.f32.mxu0 0.0
          %1206 = vmatmul.mubr.f32.gmra.mrb[0].mxu0 %v715
          %v1207 = vpop.f32.mrb[0].mxu0
          %v1208 = vadd.f32 0.0, %v1207
          %v1209 = vpop.f32.mrb[0].mxu0
          %1210 = vmatprep.mubr.f32.mxu0 0.0
          %1211 = vmatmul.mubr.f32.gmra.mrb[0].mxu0 %v716
          %v1212 = vpop.f32.mrb[0].mxu0
          %v1213 = vadd.f32 0.0, %v1212
          %v1214 = vpop.f32.mrb[0].mxu0
          %1215 = vmatprep.mubr.f32.mxu0 0.0
          %1216 = vmatmul.mubr.f32.gmra.mrb[0].mxu0 %v717
          %v1217 = vpop.f32.mrb[0].mxu0
          %v1218 = vadd.f32 0.0, %v1217
          %v1219 = vpop.f32.mrb[0].mxu0
          %1220 = vmatprep.mubr.f32.mxu0 0.0
          %1221 = vmatmul.mubr.f32.gmra.mrb[0].mxu0 %v718
          %v1222 = vpop.f32.mrb[0].mxu0
          %v1223 = vadd.f32 0.0, %v1222
          %v1224 = vpop.f32.mrb[0].mxu0
          %1225 = vmatprep.mubr.f32.mxu0 0.0
          %1226 = vmatmul.mubr.f32.gmra.mrb[0].mxu0 %v719
          %v1227 = vpop.f32.mrb[0].mxu0
          %v1228 = vadd.f32 0.0, %v1227
          %v1229 = vpop.f32.mrb[0].mxu0
          %1230 = vmatprep.mubr.f32.mxu0 0.0
          %1231 = vmatmul.mubr.f32.gmra.mrb[0].mxu0 %v720
          %v1232 = vpop.f32.mrb[0].mxu0
          %v1233 = vadd.f32 0.0, %v1232
          %v1234 = vpop.f32.mrb[0].mxu0
          %1235 = vmatprep.mubr.f32.mxu0 0.0
          %1236 = vmatmul.mubr.f32.gmra.mrb[0].mxu0 %v721
          %v1237 = vpop.f32.mrb[0].mxu0
          %v1238 = vadd.f32 0.0, %v1237
          %v1239 = vpop.f32.mrb[0].mxu0
          %1240 = vdwg.mxu0
          %v1241 = vadd.f32 %v984, %v1083
          %v1242 = vadd.f32 %v985, %v1088
          %v1243 = vadd.f32 %v986, %v1093
          %v1244 = vadd.f32 %v987, %v1098
          %v1245 = vadd.f32 %v988, %v1103
          %v1246 = vadd.f32 %v989, %v1108
          %v1247 = vadd.f32 %v990, %v1113
          %v1248 = vadd.f32 %v991, %v1118
          %v1249 = vadd.f32 %v992, %v1123
          %v1250 = vadd.f32 %v993, %v1128
          %v1251 = vadd.f32 %v994, %v1133
          %v1252 = vadd.f32 %v995, %v1138
          %v1253 = vadd.f32 %v996, %v1143
          %v1254 = vadd.f32 %v997, %v1148
          %v1255 = vadd.f32 %v998, %v1153
          %v1256 = vadd.f32 %v999, %v1158
          %v1257 = vadd.f32 %v1000, %v1163
          %v1258 = vadd.f32 %v1001, %v1168
          %v1259 = vadd.f32 %v1002, %v1173
          %v1260 = vadd.f32 %v1003, %v1178
          %v1261 = vadd.f32 %v1004, %v1183
          %v1262 = vadd.f32 %v1005, %v1188
          %v1263 = vadd.f32 %v1006, %v1193
          %v1264 = vadd.f32 %v1007, %v1198
          %v1265 = vadd.f32 %v1008, %v1203
          %v1266 = vadd.f32 %v1009, %v1208
          %v1267 = vadd.f32 %v1010, %v1213
          %v1268 = vadd.f32 %v1011, %v1218
          %v1269 = vadd.f32 %v1012, %v1223
          %v1270 = vadd.f32 %v1013, %v1228
          %v1271 = vadd.f32 %v1014, %v1233
          %v1272 = vadd.f32 %v1015, %v1238
          %vm1273 = vcmask 261120
          %1274 = vst.msk [vmem:[#allocation3] sm:$0xff] %vm1273, %v1241
          %1275 = vst.msk [vmem:[#allocation3 + $0x8] sm:$0xff] %vm1273, %v1242
          %1276 = vst.msk [vmem:[#allocation3 + $0x10] sm:$0xff] %vm1273, %v1243
          %1277 = vst.msk [vmem:[#allocation3 + $0x18] sm:$0xff] %vm1273, %v1244
          %1278 = vst.msk [vmem:[#allocation3 + $0x20] sm:$0xff] %vm1273, %v1245
          %1279 = vst.msk [vmem:[#allocation3 + $0x28] sm:$0xff] %vm1273, %v1246
          %1280 = vst.msk [vmem:[#allocation3 + $0x30] sm:$0xff] %vm1273, %v1247
          %1281 = vst.msk [vmem:[#allocation3 + $0x38] sm:$0xff] %vm1273, %v1248
          %1282 = vst.msk [vmem:[#allocation3 + $0x40] sm:$0xff] %vm1273, %v1249
          %1283 = vst.msk [vmem:[#allocation3 + $0x48] sm:$0xff] %vm1273, %v1250
          %1284 = vst.msk [vmem:[#allocation3 + $0x50] sm:$0xff] %vm1273, %v1251
          %1285 = vst.msk [vmem:[#allocation3 + $0x58] sm:$0xff] %vm1273, %v1252
          %1286 = vst.msk [vmem:[#allocation3 + $0x60] sm:$0xff] %vm1273, %v1253
          %1287 = vst.msk [vmem:[#allocation3 + $0x68] sm:$0xff] %vm1273, %v1254
          %1288 = vst.msk [vmem:[#allocation3 + $0x70] sm:$0xff] %vm1273, %v1255
          %1289 = vst.msk [vmem:[#allocation3 + $0x78] sm:$0xff] %vm1273, %v1256
          %1290 = vst.msk [vmem:[#allocation3 + $0x80] sm:$0xff] %vm1273, %v1257
          %1291 = vst.msk [vmem:[#allocation3 + $0x88] sm:$0xff] %vm1273, %v1258
          %1292 = vst.msk [vmem:[#allocation3 + $0x90] sm:$0xff] %vm1273, %v1259
          %1293 = vst.msk [vmem:[#allocation3 + $0x98] sm:$0xff] %vm1273, %v1260
          %1294 = vst.msk [vmem:[#allocation3 + $0xa0] sm:$0xff] %vm1273, %v1261
          %1295 = vst.msk [vmem:[#allocation3 + $0xa8] sm:$0xff] %vm1273, %v1262
          %1296 = vst.msk [vmem:[#allocation3 + $0xb0] sm:$0xff] %vm1273, %v1263
          %1297 = vst.msk [vmem:[#allocation3 + $0xb8] sm:$0xff] %vm1273, %v1264
          %1298 = vst.msk [vmem:[#allocation3 + $0xc0] sm:$0xff] %vm1273, %v1265
          %1299 = vst.msk [vmem:[#allocation3 + $0xc8] sm:$0xff] %vm1273, %v1266
          %1300 = vst.msk [vmem:[#allocation3 + $0xd0] sm:$0xff] %vm1273, %v1267
          %1301 = vst.msk [vmem:[#allocation3 + $0xd8] sm:$0xff] %vm1273, %v1268
          %1302 = vst.msk [vmem:[#allocation3 + $0xe0] sm:$0xff] %vm1273, %v1269
          %1303 = vst.msk [vmem:[#allocation3 + $0xe8] sm:$0xff] %vm1273, %v1270
          %1304 = vst.msk [vmem:[#allocation3 + $0xf0] sm:$0xff] %vm1273, %v1271
          %1305 = vst.msk [vmem:[#allocation3 + $0xf8] sm:$0xff] %vm1273, %v1272
        $region129: #{tpu_custom_call.1} parent=116 // pred_fallthru
          _
        %p1306 = scmp.eq.s32.totalorder %s31, 1
        // Predicated region
        $region130: #{tpu_custom_call.1} parent=116 // pred_check
          %p1307 = pneg %p1306
        $region131: #{tpu_custom_call.1} parent=116 // pred_check_branch
          %1309 = sbr.rel (%p1307) target = $region133
        $region132: #{tpu_custom_call.1} parent=116 // pred_region
          %s1310 = scalar_lea.vmem [#allocation2], %s759
          %v1311 = vld [vmem:[%s1310] sm:$0xff]
          %v1312 = vld [vmem:[%s1310 + $0x8] sm:$0xff]
          %v1313 = vld [vmem:[%s1310 + $0x10] sm:$0xff]
          %v1314 = vld [vmem:[%s1310 + $0x18] sm:$0xff]
          %v1315 = vld [vmem:[%s1310 + $0x20] sm:$0xff]
          %v1316 = vld [vmem:[%s1310 + $0x28] sm:$0xff]
          %v1317 = vld [vmem:[%s1310 + $0x30] sm:$0xff]
          %v1318 = vld [vmem:[%s1310 + $0x38] sm:$0xff]
          %v1319 = vld [vmem:[%s1310 + $0x40] sm:$0xff]
          %v1320 = vld [vmem:[%s1310 + $0x48] sm:$0xff]
          %v1321 = vld [vmem:[%s1310 + $0x50] sm:$0xff]
          %v1322 = vld [vmem:[%s1310 + $0x58] sm:$0xff]
          %v1323 = vld [vmem:[%s1310 + $0x60] sm:$0xff]
          %v1324 = vld [vmem:[%s1310 + $0x68] sm:$0xff]
          %v1325 = vld [vmem:[%s1310 + $0x70] sm:$0xff]
          %v1326 = vld [vmem:[%s1310 + $0x78] sm:$0xff]
          %v1327 = vld [vmem:[%s11] sm:$0xff]
          %v1328 = vld [vmem:[%s11 + $0x8] sm:$0xff]
          %v1329 = vld [vmem:[%s11 + $0x10] sm:$0xff]
          %v1330 = vld [vmem:[%s11 + $0x18] sm:$0xff]
          %v1331 = vld [vmem:[%s12] sm:$0x1]
          %v1333 = vlaneseq
          %v1334 = vshrl.u32 %v1333, 7
          %v1335 = vsub.s32 0, %v1334
          %v1336 = vrot.slane %v1331, %v1335
          %vm1338 = vcmask 261120
          %v1340 = vsel %vm1338, %v1311, 0
          %v1343 = vsel %vm1338, %v1312, 0
          %v1346 = vsel %vm1338, %v1313, 0
          %v1349 = vsel %vm1338, %v1314, 0
          %v1352 = vsel %vm1338, %v1315, 0
          %v1355 = vsel %vm1338, %v1316, 0
          %v1358 = vsel %vm1338, %v1317, 0
          %v1361 = vsel %vm1338, %v1318, 0
          %v1364 = vsel %vm1338, %v1319, 0
          %v1367 = vsel %vm1338, %v1320, 0
          %v1370 = vsel %vm1338, %v1321, 0
          %v1373 = vsel %vm1338, %v1322, 0
          %v1376 = vsel %vm1338, %v1323, 0
          %v1379 = vsel %vm1338, %v1324, 0
          %v1382 = vsel %vm1338, %v1325, 0
          %v1385 = vsel %vm1338, %v1326, 0
          %1387 = vmatprep.subr.mxu0 0.0
          %1388 = vmatpush1.msra.mxu0 %v1327
          %1389 = vmatprep.subr.mxu0 0.0
          %1390 = vmatpush1.msra.mxu0 %v1328
          %1391 = vmatprep.subr.mxu0 0.0
          %1392 = vmatpush1.msra.mxu0 %v1329
          %1393 = vmatprep.subr.mxu0 0.0
          %1394 = vmatpush1.msra.mxu0 %v1330
          %1395 = vmatprep.subr.mxu0 0.0
          %1396 = vmatpush1.msra.mxu0 0.0
          %1397 = vmatprep.subr.mxu0 0.0
          %1398 = vmatpush1.msra.mxu0 0.0
          %1399 = vmatprep.subr.mxu0 0.0
          %1400 = vmatpush1.msra.mxu0 0.0
          %1401 = vmatprep.subr.mxu0 0.0
          %1402 = vmatpush1.msra.mxu0 0.0
          %1403 = vmatprep.subr.mxu0 0.0
          %1404 = vmatpush1.msra.mxu0 0.0
          %1405 = vmatprep.subr.mxu0 0.0
          %1406 = vmatpush1.msra.mxu0 0.0
          %1407 = vmatprep.subr.mxu0 0.0
          %1408 = vmatpush1.msra.mxu0 0.0
          %1409 = vmatprep.subr.mxu0 0.0
          %1410 = vmatpush1.msra.mxu0 0.0
          %1411 = vmatprep.subr.mxu0 0.0
          %1412 = vmatpush1.msra.mxu0 0.0
          %1413 = vmatprep.subr.mxu0 0.0
          %1414 = vmatpush1.msra.mxu0 0.0
          %1415 = vmatprep.subr.mxu0 0.0
          %1416 = vmatpush1.msra.mxu0 0.0
          %1417 = vmatprep.subr.mxu0 0.0
          %1418 = vmatpush1.msra.mxu0 0.0
          %1419 = vmatprep.subr.mxu0 0.0
          %1420 = vmatpush1.msra.mxu0 0.0
          %1421 = vmatprep.subr.mxu0 0.0
          %1422 = vmatpush1.msra.mxu0 0.0
          %1423 = vmatprep.subr.mxu0 0.0
          %1424 = vmatpush1.msra.mxu0 0.0
          %1425 = vmatprep.subr.mxu0 0.0
          %1426 = vmatpush1.msra.mxu0 0.0
          %1427 = vmatprep.subr.mxu0 0.0
          %1428 = vmatpush1.msra.mxu0 0.0
          %1429 = vmatprep.subr.mxu0 0.0
          %1430 = vmatpush1.msra.mxu0 0.0
          %1431 = vmatprep.subr.mxu0 0.0
          %1432 = vmatpush1.msra.mxu0 0.0
          %1433 = vmatprep.subr.mxu0 0.0
          %1434 = vmatpush1.msra.mxu0 0.0
          %1435 = vmatprep.subr.mxu0 0.0
          %1436 = vmatpush1.msra.mxu0 0.0
          %1437 = vmatprep.subr.mxu0 0.0
          %1438 = vmatpush1.msra.mxu0 0.0
          %1439 = vmatprep.subr.mxu0 0.0
          %1440 = vmatpush1.msra.mxu0 0.0
          %1441 = vmatprep.subr.mxu0 0.0
          %1442 = vmatpush1.msra.mxu0 0.0
          %1443 = vmatprep.subr.mxu0 0.0
          %1444 = vmatpush1.msra.mxu0 0.0
          %1445 = vmatprep.subr.mxu0 0.0
          %1446 = vmatpush1.msra.mxu0 0.0
          %1447 = vmatprep.subr.mxu0 0.0
          %1448 = vmatpush1.msra.mxu0 0.0
          %1449 = vmatprep.subr.mxu0 0.0
          %1450 = vmatpush1.msra.mxu0 0.0
          %1451 = vmatprep.mubr.f32.mxu0 0.0
          %1452 = vmatmul.mubr.f32.gmra.mrb[0].mxu0 %v1340
          %v1453 = vpop.f32.mrb[0].mxu0
          %v1454 = vadd.f32 %v1336, %v1453
          %v1455 = vpop.f32.mrb[0].mxu0
          %1456 = vmatprep.mubr.f32.mxu0 0.0
          %1457 = vmatmul.mubr.f32.gmra.mrb[0].mxu0 %v1343
          %v1458 = vpop.f32.mrb[0].mxu0
          %v1459 = vadd.f32 %v1336, %v1458
          %v1460 = vpop.f32.mrb[0].mxu0
          %1461 = vmatprep.mubr.f32.mxu0 0.0
          %1462 = vmatmul.mubr.f32.gmra.mrb[0].mxu0 %v1346
          %v1463 = vpop.f32.mrb[0].mxu0
          %v1464 = vadd.f32 %v1336, %v1463
          %v1465 = vpop.f32.mrb[0].mxu0
          %1466 = vmatprep.mubr.f32.mxu0 0.0
          %1467 = vmatmul.mubr.f32.gmra.mrb[0].mxu0 %v1349
          %v1468 = vpop.f32.mrb[0].mxu0
          %v1469 = vadd.f32 %v1336, %v1468
          %v1470 = vpop.f32.mrb[0].mxu0
          %1471 = vmatprep.mubr.f32.mxu0 0.0
          %1472 = vmatmul.mubr.f32.gmra.mrb[0].mxu0 %v1352
          %v1473 = vpop.f32.mrb[0].mxu0
          %v1474 = vadd.f32 %v1336, %v1473
          %v1475 = vpop.f32.mrb[0].mxu0
          %1476 = vmatprep.mubr.f32.mxu0 0.0
          %1477 = vmatmul.mubr.f32.gmra.mrb[0].mxu0 %v1355
          %v1478 = vpop.f32.mrb[0].mxu0
          %v1479 = vadd.f32 %v1336, %v1478
          %v1480 = vpop.f32.mrb[0].mxu0
          %1481 = vmatprep.mubr.f32.mxu0 0.0
          %1482 = vmatmul.mubr.f32.gmra.mrb[0].mxu0 %v1358
          %v1483 = vpop.f32.mrb[0].mxu0
          %v1484 = vadd.f32 %v1336, %v1483
          %v1485 = vpop.f32.mrb[0].mxu0
          %1486 = vmatprep.mubr.f32.mxu0 0.0
          %1487 = vmatmul.mubr.f32.gmra.mrb[0].mxu0 %v1361
          %v1488 = vpop.f32.mrb[0].mxu0
          %v1489 = vadd.f32 %v1336, %v1488
          %v1490 = vpop.f32.mrb[0].mxu0
          %1491 = vmatprep.mubr.f32.mxu0 0.0
          %1492 = vmatmul.mubr.f32.gmra.mrb[0].mxu0 %v1364
          %v1493 = vpop.f32.mrb[0].mxu0
          %v1494 = vadd.f32 %v1336, %v1493
          %v1495 = vpop.f32.mrb[0].mxu0
          %1496 = vmatprep.mubr.f32.mxu0 0.0
          %1497 = vmatmul.mubr.f32.gmra.mrb[0].mxu0 %v1367
          %v1498 = vpop.f32.mrb[0].mxu0
          %v1499 = vadd.f32 %v1336, %v1498
          %v1500 = vpop.f32.mrb[0].mxu0
          %1501 = vmatprep.mubr.f32.mxu0 0.0
          %1502 = vmatmul.mubr.f32.gmra.mrb[0].mxu0 %v1370
          %v1503 = vpop.f32.mrb[0].mxu0
          %v1504 = vadd.f32 %v1336, %v1503
          %v1505 = vpop.f32.mrb[0].mxu0
          %1506 = vmatprep.mubr.f32.mxu0 0.0
          %1507 = vmatmul.mubr.f32.gmra.mrb[0].mxu0 %v1373
          %v1508 = vpop.f32.mrb[0].mxu0
          %v1509 = vadd.f32 %v1336, %v1508
          %v1510 = vpop.f32.mrb[0].mxu0
          %1511 = vmatprep.mubr.f32.mxu0 0.0
          %1512 = vmatmul.mubr.f32.gmra.mrb[0].mxu0 %v1376
          %v1513 = vpop.f32.mrb[0].mxu0
          %v1514 = vadd.f32 %v1336, %v1513
          %v1515 = vpop.f32.mrb[0].mxu0
          %1516 = vmatprep.mubr.f32.mxu0 0.0
          %1517 = vmatmul.mubr.f32.gmra.mrb[0].mxu0 %v1379
          %v1518 = vpop.f32.mrb[0].mxu0
          %v1519 = vadd.f32 %v1336, %v1518
          %v1520 = vpop.f32.mrb[0].mxu0
          %1521 = vmatprep.mubr.f32.mxu0 0.0
          %1522 = vmatmul.mubr.f32.gmra.mrb[0].mxu0 %v1382
          %v1523 = vpop.f32.mrb[0].mxu0
          %v1524 = vadd.f32 %v1336, %v1523
          %v1525 = vpop.f32.mrb[0].mxu0
          %1526 = vmatprep.mubr.f32.mxu0 0.0
          %1527 = vmatmul.mubr.f32.gmra.mrb[0].mxu0 %v1385
          %v1528 = vpop.f32.mrb[0].mxu0
          %v1529 = vadd.f32 %v1336, %v1528
          %v1530 = vpop.f32.mrb[0].mxu0
          %1531 = vdwg.mxu0
          %v1532 = vld [vmem:[#allocation3] sm:$0xff]
          %v1533 = vld [vmem:[#allocation3 + $0x8] sm:$0xff]
          %v1534 = vld [vmem:[#allocation3 + $0x10] sm:$0xff]
          %v1535 = vld [vmem:[#allocation3 + $0x18] sm:$0xff]
          %v1536 = vld [vmem:[#allocation3 + $0x20] sm:$0xff]
          %v1537 = vld [vmem:[#allocation3 + $0x28] sm:$0xff]
          %v1538 = vld [vmem:[#allocation3 + $0x30] sm:$0xff]
          %v1539 = vld [vmem:[#allocation3 + $0x38] sm:$0xff]
          %v1540 = vld [vmem:[#allocation3 + $0x40] sm:$0xff]
          %v1541 = vld [vmem:[#allocation3 + $0x48] sm:$0xff]
          %v1542 = vld [vmem:[#allocation3 + $0x50] sm:$0xff]
          %v1543 = vld [vmem:[#allocation3 + $0x58] sm:$0xff]
          %v1544 = vld [vmem:[#allocation3 + $0x60] sm:$0xff]
          %v1545 = vld [vmem:[#allocation3 + $0x68] sm:$0xff]
          %v1546 = vld [vmem:[#allocation3 + $0x70] sm:$0xff]
          %v1547 = vld [vmem:[#allocation3 + $0x78] sm:$0xff]
          %v1548 = vld [vmem:[#allocation3 + $0x80] sm:$0xff]
          %v1549 = vld [vmem:[#allocation3 + $0x88] sm:$0xff]
          %v1550 = vld [vmem:[#allocation3 + $0x90] sm:$0xff]
          %v1551 = vld [vmem:[#allocation3 + $0x98] sm:$0xff]
          %v1552 = vld [vmem:[#allocation3 + $0xa0] sm:$0xff]
          %v1553 = vld [vmem:[#allocation3 + $0xa8] sm:$0xff]
          %v1554 = vld [vmem:[#allocation3 + $0xb0] sm:$0xff]
          %v1555 = vld [vmem:[#allocation3 + $0xb8] sm:$0xff]
          %v1556 = vld [vmem:[#allocation3 + $0xc0] sm:$0xff]
          %v1557 = vld [vmem:[#allocation3 + $0xc8] sm:$0xff]
          %v1558 = vld [vmem:[#allocation3 + $0xd0] sm:$0xff]
          %v1559 = vld [vmem:[#allocation3 + $0xd8] sm:$0xff]
          %v1560 = vld [vmem:[#allocation3 + $0xe0] sm:$0xff]
          %v1561 = vld [vmem:[#allocation3 + $0xe8] sm:$0xff]
          %v1562 = vld [vmem:[#allocation3 + $0xf0] sm:$0xff]
          %v1563 = vld [vmem:[#allocation3 + $0xf8] sm:$0xff]
          %1564 = vmatprep.subr.mxu0 0.0
          %1565 = vmatpush1.msra.mxu0 %v1454
          %1566 = vmatprep.subr.mxu0 0.0
          %1567 = vmatpush1.msra.mxu0 %v1459
          %1568 = vmatprep.subr.mxu0 0.0
          %1569 = vmatpush1.msra.mxu0 %v1464
          %1570 = vmatprep.subr.mxu0 0.0
          %1571 = vmatpush1.msra.mxu0 %v1469
          %1572 = vmatprep.subr.mxu0 0.0
          %1573 = vmatpush1.msra.mxu0 %v1474
          %1574 = vmatprep.subr.mxu0 0.0
          %1575 = vmatpush1.msra.mxu0 %v1479
          %1576 = vmatprep.subr.mxu0 0.0
          %1577 = vmatpush1.msra.mxu0 %v1484
          %1578 = vmatprep.subr.mxu0 0.0
          %1579 = vmatpush1.msra.mxu0 %v1489
          %1580 = vmatprep.subr.mxu0 0.0
          %1581 = vmatpush1.msra.mxu0 %v1494
          %1582 = vmatprep.subr.mxu0 0.0
          %1583 = vmatpush1.msra.mxu0 %v1499
          %1584 = vmatprep.subr.mxu0 0.0
          %1585 = vmatpush1.msra.mxu0 %v1504
          %1586 = vmatprep.subr.mxu0 0.0
          %1587 = vmatpush1.msra.mxu0 %v1509
          %1588 = vmatprep.subr.mxu0 0.0
          %1589 = vmatpush1.msra.mxu0 %v1514
          %1590 = vmatprep.subr.mxu0 0.0
          %1591 = vmatpush1.msra.mxu0 %v1519
          %1592 = vmatprep.subr.mxu0 0.0
          %1593 = vmatpush1.msra.mxu0 %v1524
          %1594 = vmatprep.subr.mxu0 0.0
          %1595 = vmatpush1.msra.mxu0 %v1529
          %1596 = vmatprep.subr.mxu0 0.0
          %1597 = vmatpush1.msra.mxu0 0.0
          %1598 = vmatprep.subr.mxu0 0.0
          %1599 = vmatpush1.msra.mxu0 0.0
          %1600 = vmatprep.subr.mxu0 0.0
          %1601 = vmatpush1.msra.mxu0 0.0
          %1602 = vmatprep.subr.mxu0 0.0
          %1603 = vmatpush1.msra.mxu0 0.0
          %1604 = vmatprep.subr.mxu0 0.0
          %1605 = vmatpush1.msra.mxu0 0.0
          %1606 = vmatprep.subr.mxu0 0.0
          %1607 = vmatpush1.msra.mxu0 0.0
          %1608 = vmatprep.subr.mxu0 0.0
          %1609 = vmatpush1.msra.mxu0 0.0
          %1610 = vmatprep.subr.mxu0 0.0
          %1611 = vmatpush1.msra.mxu0 0.0
          %1612 = vmatprep.subr.mxu0 0.0
          %1613 = vmatpush1.msra.mxu0 0.0
          %1614 = vmatprep.subr.mxu0 0.0
          %1615 = vmatpush1.msra.mxu0 0.0
          %1616 = vmatprep.subr.mxu0 0.0
          %1617 = vmatpush1.msra.mxu0 0.0
          %1618 = vmatprep.subr.mxu0 0.0
          %1619 = vmatpush1.msra.mxu0 0.0
          %1620 = vmatprep.subr.mxu0 0.0
          %1621 = vmatpush1.msra.mxu0 0.0
          %1622 = vmatprep.subr.mxu0 0.0
          %1623 = vmatpush1.msra.mxu0 0.0
          %1624 = vmatprep.subr.mxu0 0.0
          %1625 = vmatpush1.msra.mxu0 0.0
          %1626 = vmatprep.subr.mxu0 0.0
          %1627 = vmatpush1.msra.mxu0 0.0
          %1628 = vmatprep.mubr.f32.mxu0 0.0
          %1629 = vmatmul.mubr.f32.gmra.mrb[0].mxu0 %v690
          %v1630 = vpop.f32.mrb[0].mxu0
          %v1631 = vadd.f32 0.0, %v1630
          %v1632 = vpop.f32.mrb[0].mxu0
          %1633 = vmatprep.mubr.f32.mxu0 0.0
          %1634 = vmatmul.mubr.f32.gmra.mrb[0].mxu0 %v691
          %v1635 = vpop.f32.mrb[0].mxu0
          %v1636 = vadd.f32 0.0, %v1635
          %v1637 = vpop.f32.mrb[0].mxu0
          %1638 = vmatprep.mubr.f32.mxu0 0.0
          %1639 = vmatmul.mubr.f32.gmra.mrb[0].mxu0 %v692
          %v1640 = vpop.f32.mrb[0].mxu0
          %v1641 = vadd.f32 0.0, %v1640
          %v1642 = vpop.f32.mrb[0].mxu0
          %1643 = vmatprep.mubr.f32.mxu0 0.0
          %1644 = vmatmul.mubr.f32.gmra.mrb[0].mxu0 %v693
          %v1645 = vpop.f32.mrb[0].mxu0
          %v1646 = vadd.f32 0.0, %v1645
          %v1647 = vpop.f32.mrb[0].mxu0
          %1648 = vmatprep.mubr.f32.mxu0 0.0
          %1649 = vmatmul.mubr.f32.gmra.mrb[0].mxu0 %v694
          %v1650 = vpop.f32.mrb[0].mxu0
          %v1651 = vadd.f32 0.0, %v1650
          %v1652 = vpop.f32.mrb[0].mxu0
          %1653 = vmatprep.mubr.f32.mxu0 0.0
          %1654 = vmatmul.mubr.f32.gmra.mrb[0].mxu0 %v695
          %v1655 = vpop.f32.mrb[0].mxu0
          %v1656 = vadd.f32 0.0, %v1655
          %v1657 = vpop.f32.mrb[0].mxu0
          %1658 = vmatprep.mubr.f32.mxu0 0.0
          %1659 = vmatmul.mubr.f32.gmra.mrb[0].mxu0 %v696
          %v1660 = vpop.f32.mrb[0].mxu0
          %v1661 = vadd.f32 0.0, %v1660
          %v1662 = vpop.f32.mrb[0].mxu0
          %1663 = vmatprep.mubr.f32.mxu0 0.0
          %1664 = vmatmul.mubr.f32.gmra.mrb[0].mxu0 %v697
          %v1665 = vpop.f32.mrb[0].mxu0
          %v1666 = vadd.f32 0.0, %v1665
          %v1667 = vpop.f32.mrb[0].mxu0
          %1668 = vmatprep.mubr.f32.mxu0 0.0
          %1669 = vmatmul.mubr.f32.gmra.mrb[0].mxu0 %v698
          %v1670 = vpop.f32.mrb[0].mxu0
          %v1671 = vadd.f32 0.0, %v1670
          %v1672 = vpop.f32.mrb[0].mxu0
          %1673 = vmatprep.mubr.f32.mxu0 0.0
          %1674 = vmatmul.mubr.f32.gmra.mrb[0].mxu0 %v699
          %v1675 = vpop.f32.mrb[0].mxu0
          %v1676 = vadd.f32 0.0, %v1675
          %v1677 = vpop.f32.mrb[0].mxu0
          %1678 = vmatprep.mubr.f32.mxu0 0.0
          %1679 = vmatmul.mubr.f32.gmra.mrb[0].mxu0 %v700
          %v1680 = vpop.f32.mrb[0].mxu0
          %v1681 = vadd.f32 0.0, %v1680
          %v1682 = vpop.f32.mrb[0].mxu0
          %1683 = vmatprep.mubr.f32.mxu0 0.0
          %1684 = vmatmul.mubr.f32.gmra.mrb[0].mxu0 %v701
          %v1685 = vpop.f32.mrb[0].mxu0
          %v1686 = vadd.f32 0.0, %v1685
          %v1687 = vpop.f32.mrb[0].mxu0
          %1688 = vmatprep.mubr.f32.mxu0 0.0
          %1689 = vmatmul.mubr.f32.gmra.mrb[0].mxu0 %v702
          %v1690 = vpop.f32.mrb[0].mxu0
          %v1691 = vadd.f32 0.0, %v1690
          %v1692 = vpop.f32.mrb[0].mxu0
          %1693 = vmatprep.mubr.f32.mxu0 0.0
          %1694 = vmatmul.mubr.f32.gmra.mrb[0].mxu0 %v703
          %v1695 = vpop.f32.mrb[0].mxu0
          %v1696 = vadd.f32 0.0, %v1695
          %v1697 = vpop.f32.mrb[0].mxu0
          %1698 = vmatprep.mubr.f32.mxu0 0.0
          %1699 = vmatmul.mubr.f32.gmra.mrb[0].mxu0 %v704
          %v1700 = vpop.f32.mrb[0].mxu0
          %v1701 = vadd.f32 0.0, %v1700
          %v1702 = vpop.f32.mrb[0].mxu0
          %1703 = vmatprep.mubr.f32.mxu0 0.0
          %1704 = vmatmul.mubr.f32.gmra.mrb[0].mxu0 %v705
          %v1705 = vpop.f32.mrb[0].mxu0
          %v1706 = vadd.f32 0.0, %v1705
          %v1707 = vpop.f32.mrb[0].mxu0
          %1708 = vmatprep.mubr.f32.mxu0 0.0
          %1709 = vmatmul.mubr.f32.gmra.mrb[0].mxu0 %v706
          %v1710 = vpop.f32.mrb[0].mxu0
          %v1711 = vadd.f32 0.0, %v1710
          %v1712 = vpop.f32.mrb[0].mxu0
          %1713 = vmatprep.mubr.f32.mxu0 0.0
          %1714 = vmatmul.mubr.f32.gmra.mrb[0].mxu0 %v707
          %v1715 = vpop.f32.mrb[0].mxu0
          %v1716 = vadd.f32 0.0, %v1715
          %v1717 = vpop.f32.mrb[0].mxu0
          %1718 = vmatprep.mubr.f32.mxu0 0.0
          %1719 = vmatmul.mubr.f32.gmra.mrb[0].mxu0 %v708
          %v1720 = vpop.f32.mrb[0].mxu0
          %v1721 = vadd.f32 0.0, %v1720
          %v1722 = vpop.f32.mrb[0].mxu0
          %1723 = vmatprep.mubr.f32.mxu0 0.0
          %1724 = vmatmul.mubr.f32.gmra.mrb[0].mxu0 %v709
          %v1725 = vpop.f32.mrb[0].mxu0
          %v1726 = vadd.f32 0.0, %v1725
          %v1727 = vpop.f32.mrb[0].mxu0
          %1728 = vmatprep.mubr.f32.mxu0 0.0
          %1729 = vmatmul.mubr.f32.gmra.mrb[0].mxu0 %v710
          %v1730 = vpop.f32.mrb[0].mxu0
          %v1731 = vadd.f32 0.0, %v1730
          %v1732 = vpop.f32.mrb[0].mxu0
          %1733 = vmatprep.mubr.f32.mxu0 0.0
          %1734 = vmatmul.mubr.f32.gmra.mrb[0].mxu0 %v711
          %v1735 = vpop.f32.mrb[0].mxu0
          %v1736 = vadd.f32 0.0, %v1735
          %v1737 = vpop.f32.mrb[0].mxu0
          %1738 = vmatprep.mubr.f32.mxu0 0.0
          %1739 = vmatmul.mubr.f32.gmra.mrb[0].mxu0 %v712
          %v1740 = vpop.f32.mrb[0].mxu0
          %v1741 = vadd.f32 0.0, %v1740
          %v1742 = vpop.f32.mrb[0].mxu0
          %1743 = vmatprep.mubr.f32.mxu0 0.0
          %1744 = vmatmul.mubr.f32.gmra.mrb[0].mxu0 %v713
          %v1745 = vpop.f32.mrb[0].mxu0
          %v1746 = vadd.f32 0.0, %v1745
          %v1747 = vpop.f32.mrb[0].mxu0
          %1748 = vmatprep.mubr.f32.mxu0 0.0
          %1749 = vmatmul.mubr.f32.gmra.mrb[0].mxu0 %v714
          %v1750 = vpop.f32.mrb[0].mxu0
          %v1751 = vadd.f32 0.0, %v1750
          %v1752 = vpop.f32.mrb[0].mxu0
          %1753 = vmatprep.mubr.f32.mxu0 0.0
          %1754 = vmatmul.mubr.f32.gmra.mrb[0].mxu0 %v715
          %v1755 = vpop.f32.mrb[0].mxu0
          %v1756 = vadd.f32 0.0, %v1755
          %v1757 = vpop.f32.mrb[0].mxu0
          %1758 = vmatprep.mubr.f32.mxu0 0.0
          %1759 = vmatmul.mubr.f32.gmra.mrb[0].mxu0 %v716
          %v1760 = vpop.f32.mrb[0].mxu0
          %v1761 = vadd.f32 0.0, %v1760
          %v1762 = vpop.f32.mrb[0].mxu0
          %1763 = vmatprep.mubr.f32.mxu0 0.0
          %1764 = vmatmul.mubr.f32.gmra.mrb[0].mxu0 %v717
          %v1765 = vpop.f32.mrb[0].mxu0
          %v1766 = vadd.f32 0.0, %v1765
          %v1767 = vpop.f32.mrb[0].mxu0
          %1768 = vmatprep.mubr.f32.mxu0 0.0
          %1769 = vmatmul.mubr.f32.gmra.mrb[0].mxu0 %v718
          %v1770 = vpop.f32.mrb[0].mxu0
          %v1771 = vadd.f32 0.0, %v1770
          %v1772 = vpop.f32.mrb[0].mxu0
          %1773 = vmatprep.mubr.f32.mxu0 0.0
          %1774 = vmatmul.mubr.f32.gmra.mrb[0].mxu0 %v719
          %v1775 = vpop.f32.mrb[0].mxu0
          %v1776 = vadd.f32 0.0, %v1775
          %v1777 = vpop.f32.mrb[0].mxu0
          %1778 = vmatprep.mubr.f32.mxu0 0.0
          %1779 = vmatmul.mubr.f32.gmra.mrb[0].mxu0 %v720
          %v1780 = vpop.f32.mrb[0].mxu0
          %v1781 = vadd.f32 0.0, %v1780
          %v1782 = vpop.f32.mrb[0].mxu0
          %1783 = vmatprep.mubr.f32.mxu0 0.0
          %1784 = vmatmul.mubr.f32.gmra.mrb[0].mxu0 %v721
          %v1785 = vpop.f32.mrb[0].mxu0
          %v1786 = vadd.f32 0.0, %v1785
          %v1787 = vpop.f32.mrb[0].mxu0
          %1788 = vdwg.mxu0
          %v1789 = vadd.f32 %v1532, %v1631
          %v1790 = vadd.f32 %v1533, %v1636
          %v1791 = vadd.f32 %v1534, %v1641
          %v1792 = vadd.f32 %v1535, %v1646
          %v1793 = vadd.f32 %v1536, %v1651
          %v1794 = vadd.f32 %v1537, %v1656
          %v1795 = vadd.f32 %v1538, %v1661
          %v1796 = vadd.f32 %v1539, %v1666
          %v1797 = vadd.f32 %v1540, %v1671
          %v1798 = vadd.f32 %v1541, %v1676
          %v1799 = vadd.f32 %v1542, %v1681
          %v1800 = vadd.f32 %v1543, %v1686
          %v1801 = vadd.f32 %v1544, %v1691
          %v1802 = vadd.f32 %v1545, %v1696
          %v1803 = vadd.f32 %v1546, %v1701
          %v1804 = vadd.f32 %v1547, %v1706
          %v1805 = vadd.f32 %v1548, %v1711
          %v1806 = vadd.f32 %v1549, %v1716
          %v1807 = vadd.f32 %v1550, %v1721
          %v1808 = vadd.f32 %v1551, %v1726
          %v1809 = vadd.f32 %v1552, %v1731
          %v1810 = vadd.f32 %v1553, %v1736
          %v1811 = vadd.f32 %v1554, %v1741
          %v1812 = vadd.f32 %v1555, %v1746
          %v1813 = vadd.f32 %v1556, %v1751
          %v1814 = vadd.f32 %v1557, %v1756
          %v1815 = vadd.f32 %v1558, %v1761
          %v1816 = vadd.f32 %v1559, %v1766
          %v1817 = vadd.f32 %v1560, %v1771
          %v1818 = vadd.f32 %v1561, %v1776
          %v1819 = vadd.f32 %v1562, %v1781
          %v1820 = vadd.f32 %v1563, %v1786
          %1821 = vst.msk [vmem:[#allocation3] sm:$0xff] %vm1338, %v1789
          %1822 = vst.msk [vmem:[#allocation3 + $0x8] sm:$0xff] %vm1338, %v1790
          %1823 = vst.msk [vmem:[#allocation3 + $0x10] sm:$0xff] %vm1338, %v1791
          %1824 = vst.msk [vmem:[#allocation3 + $0x18] sm:$0xff] %vm1338, %v1792
          %1825 = vst.msk [vmem:[#allocation3 + $0x20] sm:$0xff] %vm1338, %v1793
          %1826 = vst.msk [vmem:[#allocation3 + $0x28] sm:$0xff] %vm1338, %v1794
          %1827 = vst.msk [vmem:[#allocation3 + $0x30] sm:$0xff] %vm1338, %v1795
          %1828 = vst.msk [vmem:[#allocation3 + $0x38] sm:$0xff] %vm1338, %v1796
          %1829 = vst.msk [vmem:[#allocation3 + $0x40] sm:$0xff] %vm1338, %v1797
          %1830 = vst.msk [vmem:[#allocation3 + $0x48] sm:$0xff] %vm1338, %v1798
          %1831 = vst.msk [vmem:[#allocation3 + $0x50] sm:$0xff] %vm1338, %v1799
          %1832 = vst.msk [vmem:[#allocation3 + $0x58] sm:$0xff] %vm1338, %v1800
          %1833 = vst.msk [vmem:[#allocation3 + $0x60] sm:$0xff] %vm1338, %v1801
          %1834 = vst.msk [vmem:[#allocation3 + $0x68] sm:$0xff] %vm1338, %v1802
          %1835 = vst.msk [vmem:[#allocation3 + $0x70] sm:$0xff] %vm1338, %v1803
          %1836 = vst.msk [vmem:[#allocation3 + $0x78] sm:$0xff] %vm1338, %v1804
          %1837 = vst.msk [vmem:[#allocation3 + $0x80] sm:$0xff] %vm1338, %v1805
          %1838 = vst.msk [vmem:[#allocation3 + $0x88] sm:$0xff] %vm1338, %v1806
          %1839 = vst.msk [vmem:[#allocation3 + $0x90] sm:$0xff] %vm1338, %v1807
          %1840 = vst.msk [vmem:[#allocation3 + $0x98] sm:$0xff] %vm1338, %v1808
          %1841 = vst.msk [vmem:[#allocation3 + $0xa0] sm:$0xff] %vm1338, %v1809
          %1842 = vst.msk [vmem:[#allocation3 + $0xa8] sm:$0xff] %vm1338, %v1810
          %1843 = vst.msk [vmem:[#allocation3 + $0xb0] sm:$0xff] %vm1338, %v1811
          %1844 = vst.msk [vmem:[#allocation3 + $0xb8] sm:$0xff] %vm1338, %v1812
          %1845 = vst.msk [vmem:[#allocation3 + $0xc0] sm:$0xff] %vm1338, %v1813
          %1846 = vst.msk [vmem:[#allocation3 + $0xc8] sm:$0xff] %vm1338, %v1814
          %1847 = vst.msk [vmem:[#allocation3 + $0xd0] sm:$0xff] %vm1338, %v1815
          %1848 = vst.msk [vmem:[#allocation3 + $0xd8] sm:$0xff] %vm1338, %v1816
          %1849 = vst.msk [vmem:[#allocation3 + $0xe0] sm:$0xff] %vm1338, %v1817
          %1850 = vst.msk [vmem:[#allocation3 + $0xe8] sm:$0xff] %vm1338, %v1818
          %1851 = vst.msk [vmem:[#allocation3 + $0xf0] sm:$0xff] %vm1338, %v1819
          %1852 = vst.msk [vmem:[#allocation3 + $0xf8] sm:$0xff] %vm1338, %v1820
        $region133: #{tpu_custom_call.1} parent=116 // pred_fallthru
          _
        %p1853 = scmp.eq.s32.totalorder %s32, 1
        %p1854 = pnand %p760, %p1853
        %p1855 = pneg %p1854
        // Predicated region
        $region134: #{tpu_custom_call.1} parent=116 // pred_check
          _
        $region135: #{tpu_custom_call.1} parent=116 // pred_check_branch
          %1857 = sbr.rel (%p1854) target = $region137
        $region136: #{tpu_custom_call.1} parent=116 // pred_region
          %v1858 = vld [vmem:[%s0] sm:$0xff]
          %v1859 = vld [vmem:[%s0 + $0x8] sm:$0xff]
          %v1860 = vld [vmem:[%s0 + $0x10] sm:$0xff]
          %v1861 = vld [vmem:[%s0 + $0x18] sm:$0xff]
          %v1862 = vld [vmem:[%s0 + $0x20] sm:$0xff]
          %v1863 = vld [vmem:[%s0 + $0x28] sm:$0xff]
          %v1864 = vld [vmem:[%s0 + $0x30] sm:$0xff]
          %v1865 = vld [vmem:[%s0 + $0x38] sm:$0xff]
          %v1866 = vld [vmem:[%s0 + $0x40] sm:$0xff]
          %v1867 = vld [vmem:[%s0 + $0x48] sm:$0xff]
          %v1868 = vld [vmem:[%s0 + $0x50] sm:$0xff]
          %v1869 = vld [vmem:[%s0 + $0x58] sm:$0xff]
          %v1870 = vld [vmem:[%s0 + $0x60] sm:$0xff]
          %v1871 = vld [vmem:[%s0 + $0x68] sm:$0xff]
          %v1872 = vld [vmem:[%s0 + $0x70] sm:$0xff]
          %v1873 = vld [vmem:[%s0 + $0x78] sm:$0xff]
          %v1874 = vld [vmem:[%s0 + $0x80] sm:$0xff]
          %v1875 = vld [vmem:[%s0 + $0x88] sm:$0xff]
          %v1876 = vld [vmem:[%s0 + $0x90] sm:$0xff]
          %v1877 = vld [vmem:[%s0 + $0x98] sm:$0xff]
          %v1878 = vld [vmem:[%s0 + $0xa0] sm:$0xff]
          %v1879 = vld [vmem:[%s0 + $0xa8] sm:$0xff]
          %v1880 = vld [vmem:[%s0 + $0xb0] sm:$0xff]
          %v1881 = vld [vmem:[%s0 + $0xb8] sm:$0xff]
          %v1882 = vld [vmem:[%s0 + $0xc0] sm:$0xff]
          %v1883 = vld [vmem:[%s0 + $0xc8] sm:$0xff]
          %v1884 = vld [vmem:[%s0 + $0xd0] sm:$0xff]
          %v1885 = vld [vmem:[%s0 + $0xd8] sm:$0xff]
          %v1886 = vld [vmem:[%s0 + $0xe0] sm:$0xff]
          %v1887 = vld [vmem:[%s0 + $0xe8] sm:$0xff]
          %v1888 = vld [vmem:[%s0 + $0xf0] sm:$0xff]
          %v1889 = vld [vmem:[%s0 + $0xf8] sm:$0xff]
          %v1890 = vld [vmem:[%s5] sm:$0xff]
          %v1891 = vld [vmem:[%s5 + $0x8] sm:$0xff]
          %v1892 = vld [vmem:[%s6] sm:$0x1]
          %v1894 = vlaneseq
          %v1895 = vshrl.u32 %v1894, 7
          %v1896 = vsub.s32 0, %v1895
          %v1897 = vrot.slane %v1892, %v1896
          %vm1899 = vcmask 130048
          %v1901 = vsel %vm1899, %v1858, 0
          %v1904 = vsel %vm1899, %v1859, 0
          %v1907 = vsel %vm1899, %v1860, 0
          %v1910 = vsel %vm1899, %v1861, 0
          %v1913 = vsel %vm1899, %v1862, 0
          %v1916 = vsel %vm1899, %v1863, 0
          %v1919 = vsel %vm1899, %v1864, 0
          %v1922 = vsel %vm1899, %v1865, 0
          %v1925 = vsel %vm1899, %v1866, 0
          %v1928 = vsel %vm1899, %v1867, 0
          %v1931 = vsel %vm1899, %v1868, 0
          %v1934 = vsel %vm1899, %v1869, 0
          %v1937 = vsel %vm1899, %v1870, 0
          %v1940 = vsel %vm1899, %v1871, 0
          %v1943 = vsel %vm1899, %v1872, 0
          %v1946 = vsel %vm1899, %v1873, 0
          %v1949 = vsel %vm1899, %v1874, 0
          %v1952 = vsel %vm1899, %v1875, 0
          %v1955 = vsel %vm1899, %v1876, 0
          %v1958 = vsel %vm1899, %v1877, 0
          %v1961 = vsel %vm1899, %v1878, 0
          %v1964 = vsel %vm1899, %v1879, 0
          %v1967 = vsel %vm1899, %v1880, 0
          %v1970 = vsel %vm1899, %v1881, 0
          %v1973 = vsel %vm1899, %v1882, 0
          %v1976 = vsel %vm1899, %v1883, 0
          %v1979 = vsel %vm1899, %v1884, 0
          %v1982 = vsel %vm1899, %v1885, 0
          %v1985 = vsel %vm1899, %v1886, 0
          %v1988 = vsel %vm1899, %v1887, 0
          %v1991 = vsel %vm1899, %v1888, 0
          %v1994 = vsel %vm1899, %v1889, 0
          %1996 = vmatprep.subr.mxu0 0.0
          %1997 = vmatpush1.msra.mxu0 %v1890
          %1998 = vmatprep.subr.mxu0 0.0
          %1999 = vmatpush1.msra.mxu0 %v1891
          %2000 = vmatprep.subr.mxu0 0.0
          %2001 = vmatpush1.msra.mxu0 0.0
          %2002 = vmatprep.subr.mxu0 0.0
          %2003 = vmatpush1.msra.mxu0 0.0
          %2004 = vmatprep.subr.mxu0 0.0
          %2005 = vmatpush1.msra.mxu0 0.0
          %2006 = vmatprep.subr.mxu0 0.0
          %2007 = vmatpush1.msra.mxu0 0.0
          %2008 = vmatprep.subr.mxu0 0.0
          %2009 = vmatpush1.msra.mxu0 0.0
          %2010 = vmatprep.subr.mxu0 0.0
          %2011 = vmatpush1.msra.mxu0 0.0
          %2012 = vmatprep.subr.mxu0 0.0
          %2013 = vmatpush1.msra.mxu0 0.0
          %2014 = vmatprep.subr.mxu0 0.0
          %2015 = vmatpush1.msra.mxu0 0.0
          %2016 = vmatprep.subr.mxu0 0.0
          %2017 = vmatpush1.msra.mxu0 0.0
          %2018 = vmatprep.subr.mxu0 0.0
          %2019 = vmatpush1.msra.mxu0 0.0
          %2020 = vmatprep.subr.mxu0 0.0
          %2021 = vmatpush1.msra.mxu0 0.0
          %2022 = vmatprep.subr.mxu0 0.0
          %2023 = vmatpush1.msra.mxu0 0.0
          %2024 = vmatprep.subr.mxu0 0.0
          %2025 = vmatpush1.msra.mxu0 0.0
          %2026 = vmatprep.subr.mxu0 0.0
          %2027 = vmatpush1.msra.mxu0 0.0
          %2028 = vmatprep.subr.mxu0 0.0
          %2029 = vmatpush1.msra.mxu0 0.0
          %2030 = vmatprep.subr.mxu0 0.0
          %2031 = vmatpush1.msra.mxu0 0.0
          %2032 = vmatprep.subr.mxu0 0.0
          %2033 = vmatpush1.msra.mxu0 0.0
          %2034 = vmatprep.subr.mxu0 0.0
          %2035 = vmatpush1.msra.mxu0 0.0
          %2036 = vmatprep.subr.mxu0 0.0
          %2037 = vmatpush1.msra.mxu0 0.0
          %2038 = vmatprep.subr.mxu0 0.0
          %2039 = vmatpush1.msra.mxu0 0.0
          %2040 = vmatprep.subr.mxu0 0.0
          %2041 = vmatpush1.msra.mxu0 0.0
          %2042 = vmatprep.subr.mxu0 0.0
          %2043 = vmatpush1.msra.mxu0 0.0
          %2044 = vmatprep.subr.mxu0 0.0
          %2045 = vmatpush1.msra.mxu0 0.0
          %2046 = vmatprep.subr.mxu0 0.0
          %2047 = vmatpush1.msra.mxu0 0.0
          %2048 = vmatprep.subr.mxu0 0.0
          %2049 = vmatpush1.msra.mxu0 0.0
          %2050 = vmatprep.subr.mxu0 0.0
          %2051 = vmatpush1.msra.mxu0 0.0
          %2052 = vmatprep.subr.mxu0 0.0
          %2053 = vmatpush1.msra.mxu0 0.0
          %2054 = vmatprep.subr.mxu0 0.0
          %2055 = vmatpush1.msra.mxu0 0.0
          %2056 = vmatprep.subr.mxu0 0.0
          %2057 = vmatpush1.msra.mxu0 0.0
          %2058 = vmatprep.subr.mxu0 0.0
          %2059 = vmatpush1.msra.mxu0 0.0
          %2060 = vmatprep.mubr.f32.mxu0 0.0
          %2061 = vmatmul.mubr.f32.gmra.mrb[0].mxu0 %v1901
          %v2062 = vpop.f32.mrb[0].mxu0
          %v2063 = vadd.f32 %v1897, %v2062
          %v2064 = vpop.f32.mrb[0].mxu0
          %2065 = vmatprep.mubr.f32.mxu0 0.0
          %2066 = vmatmul.mubr.f32.gmra.mrb[0].mxu0 %v1904
          %v2067 = vpop.f32.mrb[0].mxu0
          %v2068 = vadd.f32 %v1897, %v2067
          %v2069 = vpop.f32.mrb[0].mxu0
          %2070 = vmatprep.mubr.f32.mxu0 0.0
          %2071 = vmatmul.mubr.f32.gmra.mrb[0].mxu0 %v1907
          %v2072 = vpop.f32.mrb[0].mxu0
          %v2073 = vadd.f32 %v1897, %v2072
          %v2074 = vpop.f32.mrb[0].mxu0
          %2075 = vmatprep.mubr.f32.mxu0 0.0
          %2076 = vmatmul.mubr.f32.gmra.mrb[0].mxu0 %v1910
          %v2077 = vpop.f32.mrb[0].mxu0
          %v2078 = vadd.f32 %v1897, %v2077
          %v2079 = vpop.f32.mrb[0].mxu0
          %2080 = vmatprep.mubr.f32.mxu0 0.0
          %2081 = vmatmul.mubr.f32.gmra.mrb[0].mxu0 %v1913
          %v2082 = vpop.f32.mrb[0].mxu0
          %v2083 = vadd.f32 %v1897, %v2082
          %v2084 = vpop.f32.mrb[0].mxu0
          %2085 = vmatprep.mubr.f32.mxu0 0.0
          %2086 = vmatmul.mubr.f32.gmra.mrb[0].mxu0 %v1916
          %v2087 = vpop.f32.mrb[0].mxu0
          %v2088 = vadd.f32 %v1897, %v2087
          %v2089 = vpop.f32.mrb[0].mxu0
          %2090 = vmatprep.mubr.f32.mxu0 0.0
          %2091 = vmatmul.mubr.f32.gmra.mrb[0].mxu0 %v1919
          %v2092 = vpop.f32.mrb[0].mxu0
          %v2093 = vadd.f32 %v1897, %v2092
          %v2094 = vpop.f32.mrb[0].mxu0
          %2095 = vmatprep.mubr.f32.mxu0 0.0
          %2096 = vmatmul.mubr.f32.gmra.mrb[0].mxu0 %v1922
          %v2097 = vpop.f32.mrb[0].mxu0
          %v2098 = vadd.f32 %v1897, %v2097
          %v2099 = vpop.f32.mrb[0].mxu0
          %2100 = vmatprep.mubr.f32.mxu0 0.0
          %2101 = vmatmul.mubr.f32.gmra.mrb[0].mxu0 %v1925
          %v2102 = vpop.f32.mrb[0].mxu0
          %v2103 = vadd.f32 %v1897, %v2102
          %v2104 = vpop.f32.mrb[0].mxu0
          %2105 = vmatprep.mubr.f32.mxu0 0.0
          %2106 = vmatmul.mubr.f32.gmra.mrb[0].mxu0 %v1928
          %v2107 = vpop.f32.mrb[0].mxu0
          %v2108 = vadd.f32 %v1897, %v2107
          %v2109 = vpop.f32.mrb[0].mxu0
          %2110 = vmatprep.mubr.f32.mxu0 0.0
          %2111 = vmatmul.mubr.f32.gmra.mrb[0].mxu0 %v1931
          %v2112 = vpop.f32.mrb[0].mxu0
          %v2113 = vadd.f32 %v1897, %v2112
          %v2114 = vpop.f32.mrb[0].mxu0
          %2115 = vmatprep.mubr.f32.mxu0 0.0
          %2116 = vmatmul.mubr.f32.gmra.mrb[0].mxu0 %v1934
          %v2117 = vpop.f32.mrb[0].mxu0
          %v2118 = vadd.f32 %v1897, %v2117
          %v2119 = vpop.f32.mrb[0].mxu0
          %2120 = vmatprep.mubr.f32.mxu0 0.0
          %2121 = vmatmul.mubr.f32.gmra.mrb[0].mxu0 %v1937
          %v2122 = vpop.f32.mrb[0].mxu0
          %v2123 = vadd.f32 %v1897, %v2122
          %v2124 = vpop.f32.mrb[0].mxu0
          %2125 = vmatprep.mubr.f32.mxu0 0.0
          %2126 = vmatmul.mubr.f32.gmra.mrb[0].mxu0 %v1940
          %v2127 = vpop.f32.mrb[0].mxu0
          %v2128 = vadd.f32 %v1897, %v2127
          %v2129 = vpop.f32.mrb[0].mxu0
          %2130 = vmatprep.mubr.f32.mxu0 0.0
          %2131 = vmatmul.mubr.f32.gmra.mrb[0].mxu0 %v1943
          %v2132 = vpop.f32.mrb[0].mxu0
          %v2133 = vadd.f32 %v1897, %v2132
          %v2134 = vpop.f32.mrb[0].mxu0
          %2135 = vmatprep.mubr.f32.mxu0 0.0
          %2136 = vmatmul.mubr.f32.gmra.mrb[0].mxu0 %v1946
          %v2137 = vpop.f32.mrb[0].mxu0
          %v2138 = vadd.f32 %v1897, %v2137
          %v2139 = vpop.f32.mrb[0].mxu0
          %2140 = vmatprep.mubr.f32.mxu0 0.0
          %2141 = vmatmul.mubr.f32.gmra.mrb[0].mxu0 %v1949
          %v2142 = vpop.f32.mrb[0].mxu0
          %v2143 = vadd.f32 %v1897, %v2142
          %v2144 = vpop.f32.mrb[0].mxu0
          %2145 = vmatprep.mubr.f32.mxu0 0.0
          %2146 = vmatmul.mubr.f32.gmra.mrb[0].mxu0 %v1952
          %v2147 = vpop.f32.mrb[0].mxu0
          %v2148 = vadd.f32 %v1897, %v2147
          %v2149 = vpop.f32.mrb[0].mxu0
          %2150 = vmatprep.mubr.f32.mxu0 0.0
          %2151 = vmatmul.mubr.f32.gmra.mrb[0].mxu0 %v1955
          %v2152 = vpop.f32.mrb[0].mxu0
          %v2153 = vadd.f32 %v1897, %v2152
          %v2154 = vpop.f32.mrb[0].mxu0
          %2155 = vmatprep.mubr.f32.mxu0 0.0
          %2156 = vmatmul.mubr.f32.gmra.mrb[0].mxu0 %v1958
          %v2157 = vpop.f32.mrb[0].mxu0
          %v2158 = vadd.f32 %v1897, %v2157
          %v2159 = vpop.f32.mrb[0].mxu0
          %2160 = vmatprep.mubr.f32.mxu0 0.0
          %2161 = vmatmul.mubr.f32.gmra.mrb[0].mxu0 %v1961
          %v2162 = vpop.f32.mrb[0].mxu0
          %v2163 = vadd.f32 %v1897, %v2162
          %v2164 = vpop.f32.mrb[0].mxu0
          %2165 = vmatprep.mubr.f32.mxu0 0.0
          %2166 = vmatmul.mubr.f32.gmra.mrb[0].mxu0 %v1964
          %v2167 = vpop.f32.mrb[0].mxu0
          %v2168 = vadd.f32 %v1897, %v2167
          %v2169 = vpop.f32.mrb[0].mxu0
          %2170 = vmatprep.mubr.f32.mxu0 0.0
          %2171 = vmatmul.mubr.f32.gmra.mrb[0].mxu0 %v1967
          %v2172 = vpop.f32.mrb[0].mxu0
          %v2173 = vadd.f32 %v1897, %v2172
          %v2174 = vpop.f32.mrb[0].mxu0
          %2175 = vmatprep.mubr.f32.mxu0 0.0
          %2176 = vmatmul.mubr.f32.gmra.mrb[0].mxu0 %v1970
          %v2177 = vpop.f32.mrb[0].mxu0
          %v2178 = vadd.f32 %v1897, %v2177
          %v2179 = vpop.f32.mrb[0].mxu0
          %2180 = vmatprep.mubr.f32.mxu0 0.0
          %2181 = vmatmul.mubr.f32.gmra.mrb[0].mxu0 %v1973
          %v2182 = vpop.f32.mrb[0].mxu0
          %v2183 = vadd.f32 %v1897, %v2182
          %v2184 = vpop.f32.mrb[0].mxu0
          %2185 = vmatprep.mubr.f32.mxu0 0.0
          %2186 = vmatmul.mubr.f32.gmra.mrb[0].mxu0 %v1976
          %v2187 = vpop.f32.mrb[0].mxu0
          %v2188 = vadd.f32 %v1897, %v2187
          %v2189 = vpop.f32.mrb[0].mxu0
          %2190 = vmatprep.mubr.f32.mxu0 0.0
          %2191 = vmatmul.mubr.f32.gmra.mrb[0].mxu0 %v1979
          %v2192 = vpop.f32.mrb[0].mxu0
          %v2193 = vadd.f32 %v1897, %v2192
          %v2194 = vpop.f32.mrb[0].mxu0
          %2195 = vmatprep.mubr.f32.mxu0 0.0
          %2196 = vmatmul.mubr.f32.gmra.mrb[0].mxu0 %v1982
          %v2197 = vpop.f32.mrb[0].mxu0
          %v2198 = vadd.f32 %v1897, %v2197
          %v2199 = vpop.f32.mrb[0].mxu0
          %2200 = vmatprep.mubr.f32.mxu0 0.0
          %2201 = vmatmul.mubr.f32.gmra.mrb[0].mxu0 %v1985
          %v2202 = vpop.f32.mrb[0].mxu0
          %v2203 = vadd.f32 %v1897, %v2202
          %v2204 = vpop.f32.mrb[0].mxu0
          %2205 = vmatprep.mubr.f32.mxu0 0.0
          %2206 = vmatmul.mubr.f32.gmra.mrb[0].mxu0 %v1988
          %v2207 = vpop.f32.mrb[0].mxu0
          %v2208 = vadd.f32 %v1897, %v2207
          %v2209 = vpop.f32.mrb[0].mxu0
          %2210 = vmatprep.mubr.f32.mxu0 0.0
          %2211 = vmatmul.mubr.f32.gmra.mrb[0].mxu0 %v1991
          %v2212 = vpop.f32.mrb[0].mxu0
          %v2213 = vadd.f32 %v1897, %v2212
          %v2214 = vpop.f32.mrb[0].mxu0
          %2215 = vmatprep.mubr.f32.mxu0 0.0
          %2216 = vmatmul.mubr.f32.gmra.mrb[0].mxu0 %v1994
          %v2217 = vpop.f32.mrb[0].mxu0
          %v2218 = vadd.f32 %v1897, %v2217
          %v2219 = vpop.f32.mrb[0].mxu0
          %2220 = vdwg.mxu0
          %v2221 = vld [vmem:[#allocation3] sm:$0xff]
          %v2222 = vld [vmem:[#allocation3 + $0x8] sm:$0xff]
          %v2223 = vld [vmem:[#allocation3 + $0x10] sm:$0xff]
          %v2224 = vld [vmem:[#allocation3 + $0x18] sm:$0xff]
          %v2225 = vld [vmem:[#allocation3 + $0x20] sm:$0xff]
          %v2226 = vld [vmem:[#allocation3 + $0x28] sm:$0xff]
          %v2227 = vld [vmem:[#allocation3 + $0x30] sm:$0xff]
          %v2228 = vld [vmem:[#allocation3 + $0x38] sm:$0xff]
          %v2229 = vld [vmem:[#allocation3 + $0x40] sm:$0xff]
          %v2230 = vld [vmem:[#allocation3 + $0x48] sm:$0xff]
          %v2231 = vld [vmem:[#allocation3 + $0x50] sm:$0xff]
          %v2232 = vld [vmem:[#allocation3 + $0x58] sm:$0xff]
          %v2233 = vld [vmem:[#allocation3 + $0x60] sm:$0xff]
          %v2234 = vld [vmem:[#allocation3 + $0x68] sm:$0xff]
          %v2235 = vld [vmem:[#allocation3 + $0x70] sm:$0xff]
          %v2236 = vld [vmem:[#allocation3 + $0x78] sm:$0xff]
          %v2237 = vld [vmem:[#allocation3 + $0x80] sm:$0xff]
          %v2238 = vld [vmem:[#allocation3 + $0x88] sm:$0xff]
          %v2239 = vld [vmem:[#allocation3 + $0x90] sm:$0xff]
          %v2240 = vld [vmem:[#allocation3 + $0x98] sm:$0xff]
          %v2241 = vld [vmem:[#allocation3 + $0xa0] sm:$0xff]
          %v2242 = vld [vmem:[#allocation3 + $0xa8] sm:$0xff]
          %v2243 = vld [vmem:[#allocation3 + $0xb0] sm:$0xff]
          %v2244 = vld [vmem:[#allocation3 + $0xb8] sm:$0xff]
          %v2245 = vld [vmem:[#allocation3 + $0xc0] sm:$0xff]
          %v2246 = vld [vmem:[#allocation3 + $0xc8] sm:$0xff]
          %v2247 = vld [vmem:[#allocation3 + $0xd0] sm:$0xff]
          %v2248 = vld [vmem:[#allocation3 + $0xd8] sm:$0xff]
          %v2249 = vld [vmem:[#allocation3 + $0xe0] sm:$0xff]
          %v2250 = vld [vmem:[#allocation3 + $0xe8] sm:$0xff]
          %v2251 = vld [vmem:[#allocation3 + $0xf0] sm:$0xff]
          %v2252 = vld [vmem:[#allocation3 + $0xf8] sm:$0xff]
          %v2253 = vadd.f32 %v2063, %v2221
          %v2254 = vadd.f32 %v2068, %v2222
          %v2255 = vadd.f32 %v2073, %v2223
          %v2256 = vadd.f32 %v2078, %v2224
          %v2257 = vadd.f32 %v2083, %v2225
          %v2258 = vadd.f32 %v2088, %v2226
          %v2259 = vadd.f32 %v2093, %v2227
          %v2260 = vadd.f32 %v2098, %v2228
          %v2261 = vadd.f32 %v2103, %v2229
          %v2262 = vadd.f32 %v2108, %v2230
          %v2263 = vadd.f32 %v2113, %v2231
          %v2264 = vadd.f32 %v2118, %v2232
          %v2265 = vadd.f32 %v2123, %v2233
          %v2266 = vadd.f32 %v2128, %v2234
          %v2267 = vadd.f32 %v2133, %v2235
          %v2268 = vadd.f32 %v2138, %v2236
          %v2269 = vadd.f32 %v2143, %v2237
          %v2270 = vadd.f32 %v2148, %v2238
          %v2271 = vadd.f32 %v2153, %v2239
          %v2272 = vadd.f32 %v2158, %v2240
          %v2273 = vadd.f32 %v2163, %v2241
          %v2274 = vadd.f32 %v2168, %v2242
          %v2275 = vadd.f32 %v2173, %v2243
          %v2276 = vadd.f32 %v2178, %v2244
          %v2277 = vadd.f32 %v2183, %v2245
          %v2278 = vadd.f32 %v2188, %v2246
          %v2279 = vadd.f32 %v2193, %v2247
          %v2280 = vadd.f32 %v2198, %v2248
          %v2281 = vadd.f32 %v2203, %v2249
          %v2282 = vadd.f32 %v2208, %v2250
          %v2283 = vadd.f32 %v2213, %v2251
          %v2284 = vadd.f32 %v2218, %v2252
          %v2285 = vmax.f32 %v2253, 0.0
          %v2286 = vmax.f32 %v2254, 0.0
          %v2287 = vmax.f32 %v2255, 0.0
          %v2288 = vmax.f32 %v2256, 0.0
          %v2289 = vmax.f32 %v2257, 0.0
          %v2290 = vmax.f32 %v2258, 0.0
          %v2291 = vmax.f32 %v2259, 0.0
          %v2292 = vmax.f32 %v2260, 0.0
          %v2293 = vmax.f32 %v2261, 0.0
          %v2294 = vmax.f32 %v2262, 0.0
          %v2295 = vmax.f32 %v2263, 0.0
          %v2296 = vmax.f32 %v2264, 0.0
          %v2297 = vmax.f32 %v2265, 0.0
          %v2298 = vmax.f32 %v2266, 0.0
          %v2299 = vmax.f32 %v2267, 0.0
          %v2300 = vmax.f32 %v2268, 0.0
          %v2301 = vmax.f32 %v2269, 0.0
          %v2302 = vmax.f32 %v2270, 0.0
          %v2303 = vmax.f32 %v2271, 0.0
          %v2304 = vmax.f32 %v2272, 0.0
          %v2305 = vmax.f32 %v2273, 0.0
          %v2306 = vmax.f32 %v2274, 0.0
          %v2307 = vmax.f32 %v2275, 0.0
          %v2308 = vmax.f32 %v2276, 0.0
          %v2309 = vmax.f32 %v2277, 0.0
          %v2310 = vmax.f32 %v2278, 0.0
          %v2311 = vmax.f32 %v2279, 0.0
          %v2312 = vmax.f32 %v2280, 0.0
          %v2313 = vmax.f32 %v2281, 0.0
          %v2314 = vmax.f32 %v2282, 0.0
          %v2315 = vmax.f32 %v2283, 0.0
          %v2316 = vmax.f32 %v2284, 0.0
          %vm2317 = vcmask 261120
          %2318 = vst.msk [vmem:[#allocation2] sm:$0xff] %vm2317, %v2285
          %2319 = vst.msk [vmem:[#allocation2 + $0x8] sm:$0xff] %vm2317, %v2286
          %2320 = vst.msk [vmem:[#allocation2 + $0x10] sm:$0xff] %vm2317, %v2287
          %2321 = vst.msk [vmem:[#allocation2 + $0x18] sm:$0xff] %vm2317, %v2288
          %2322 = vst.msk [vmem:[#allocation2 + $0x20] sm:$0xff] %vm2317, %v2289
          %2323 = vst.msk [vmem:[#allocation2 + $0x28] sm:$0xff] %vm2317, %v2290
          %2324 = vst.msk [vmem:[#allocation2 + $0x30] sm:$0xff] %vm2317, %v2291
          %2325 = vst.msk [vmem:[#allocation2 + $0x38] sm:$0xff] %vm2317, %v2292
          %2326 = vst.msk [vmem:[#allocation2 + $0x40] sm:$0xff] %vm2317, %v2293
          %2327 = vst.msk [vmem:[#allocation2 + $0x48] sm:$0xff] %vm2317, %v2294
          %2328 = vst.msk [vmem:[#allocation2 + $0x50] sm:$0xff] %vm2317, %v2295
          %2329 = vst.msk [vmem:[#allocation2 + $0x58] sm:$0xff] %vm2317, %v2296
          %2330 = vst.msk [vmem:[#allocation2 + $0x60] sm:$0xff] %vm2317, %v2297
          %2331 = vst.msk [vmem:[#allocation2 + $0x68] sm:$0xff] %vm2317, %v2298
          %2332 = vst.msk [vmem:[#allocation2 + $0x70] sm:$0xff] %vm2317, %v2299
          %2333 = vst.msk [vmem:[#allocation2 + $0x78] sm:$0xff] %vm2317, %v2300
          %2334 = vst.msk [vmem:[#allocation2 + $0x80] sm:$0xff] %vm2317, %v2301
          %2335 = vst.msk [vmem:[#allocation2 + $0x88] sm:$0xff] %vm2317, %v2302
          %2336 = vst.msk [vmem:[#allocation2 + $0x90] sm:$0xff] %vm2317, %v2303
          %2337 = vst.msk [vmem:[#allocation2 + $0x98] sm:$0xff] %vm2317, %v2304
          %2338 = vst.msk [vmem:[#allocation2 + $0xa0] sm:$0xff] %vm2317, %v2305
          %2339 = vst.msk [vmem:[#allocation2 + $0xa8] sm:$0xff] %vm2317, %v2306
          %2340 = vst.msk [vmem:[#allocation2 + $0xb0] sm:$0xff] %vm2317, %v2307
          %2341 = vst.msk [vmem:[#allocation2 + $0xb8] sm:$0xff] %vm2317, %v2308
          %2342 = vst.msk [vmem:[#allocation2 + $0xc0] sm:$0xff] %vm2317, %v2309
          %2343 = vst.msk [vmem:[#allocation2 + $0xc8] sm:$0xff] %vm2317, %v2310
          %2344 = vst.msk [vmem:[#allocation2 + $0xd0] sm:$0xff] %vm2317, %v2311
          %2345 = vst.msk [vmem:[#allocation2 + $0xd8] sm:$0xff] %vm2317, %v2312
          %2346 = vst.msk [vmem:[#allocation2 + $0xe0] sm:$0xff] %vm2317, %v2313
          %2347 = vst.msk [vmem:[#allocation2 + $0xe8] sm:$0xff] %vm2317, %v2314
          %2348 = vst.msk [vmem:[#allocation2 + $0xf0] sm:$0xff] %vm2317, %v2315
          %2349 = vst.msk [vmem:[#allocation2 + $0xf8] sm:$0xff] %vm2317, %v2316
        $region137: #{tpu_custom_call.1} parent=116 // pred_fallthru
          _
        %p2350 = pnand %p1306, %p1853
        %p2351 = pneg %p2350
        // Predicated region
        $region138: #{tpu_custom_call.1} parent=116 // pred_check
          _
        $region139: #{tpu_custom_call.1} parent=116 // pred_check_branch
          %2353 = sbr.rel (%p2350) target = $region141
        $region140: #{tpu_custom_call.1} parent=116 // pred_region
          %v2354 = vld [vmem:[#allocation2] sm:$0xff]
          %v2355 = vld [vmem:[#allocation2 + $0x8] sm:$0xff]
          %v2356 = vld [vmem:[#allocation2 + $0x10] sm:$0xff]
          %v2357 = vld [vmem:[#allocation2 + $0x18] sm:$0xff]
          %v2358 = vld [vmem:[#allocation2 + $0x20] sm:$0xff]
          %v2359 = vld [vmem:[#allocation2 + $0x28] sm:$0xff]
          %v2360 = vld [vmem:[#allocation2 + $0x30] sm:$0xff]
          %v2361 = vld [vmem:[#allocation2 + $0x38] sm:$0xff]
          %v2362 = vld [vmem:[#allocation2 + $0x40] sm:$0xff]
          %v2363 = vld [vmem:[#allocation2 + $0x48] sm:$0xff]
          %v2364 = vld [vmem:[#allocation2 + $0x50] sm:$0xff]
          %v2365 = vld [vmem:[#allocation2 + $0x58] sm:$0xff]
          %v2366 = vld [vmem:[#allocation2 + $0x60] sm:$0xff]
          %v2367 = vld [vmem:[#allocation2 + $0x68] sm:$0xff]
          %v2368 = vld [vmem:[#allocation2 + $0x70] sm:$0xff]
          %v2369 = vld [vmem:[#allocation2 + $0x78] sm:$0xff]
          %v2370 = vld [vmem:[#allocation2 + $0x80] sm:$0xff]
          %v2371 = vld [vmem:[#allocation2 + $0x88] sm:$0xff]
          %v2372 = vld [vmem:[#allocation2 + $0x90] sm:$0xff]
          %v2373 = vld [vmem:[#allocation2 + $0x98] sm:$0xff]
          %v2374 = vld [vmem:[#allocation2 + $0xa0] sm:$0xff]
          %v2375 = vld [vmem:[#allocation2 + $0xa8] sm:$0xff]
          %v2376 = vld [vmem:[#allocation2 + $0xb0] sm:$0xff]
          %v2377 = vld [vmem:[#allocation2 + $0xb8] sm:$0xff]
          %v2378 = vld [vmem:[#allocation2 + $0xc0] sm:$0xff]
          %v2379 = vld [vmem:[#allocation2 + $0xc8] sm:$0xff]
          %v2380 = vld [vmem:[#allocation2 + $0xd0] sm:$0xff]
          %v2381 = vld [vmem:[#allocation2 + $0xd8] sm:$0xff]
          %v2382 = vld [vmem:[#allocation2 + $0xe0] sm:$0xff]
          %v2383 = vld [vmem:[#allocation2 + $0xe8] sm:$0xff]
          %v2384 = vld [vmem:[#allocation2 + $0xf0] sm:$0xff]
          %v2385 = vld [vmem:[#allocation2 + $0xf8] sm:$0xff]
          %v2386 = vld [vmem:[%s9] sm:$0xff]
          %v2387 = vld [vmem:[%s9 + $0x8] sm:$0xff]
          %v2388 = vld [vmem:[%s9 + $0x10] sm:$0xff]
          %v2389 = vld [vmem:[%s9 + $0x18] sm:$0xff]
          %v2390 = vld [vmem:[%s10] sm:$0x1]
          %v2392 = vlaneseq
          %v2393 = vshrl.u32 %v2392, 7
          %v2394 = vsub.s32 0, %v2393
          %v2395 = vrot.slane %v2390, %v2394
          %vm2397 = vcmask 261120
          %v2399 = vsel %vm2397, %v2354, 0
          %v2402 = vsel %vm2397, %v2355, 0
          %v2405 = vsel %vm2397, %v2356, 0
          %v2408 = vsel %vm2397, %v2357, 0
          %v2411 = vsel %vm2397, %v2358, 0
          %v2414 = vsel %vm2397, %v2359, 0
          %v2417 = vsel %vm2397, %v2360, 0
          %v2420 = vsel %vm2397, %v2361, 0
          %v2423 = vsel %vm2397, %v2362, 0
          %v2426 = vsel %vm2397, %v2363, 0
          %v2429 = vsel %vm2397, %v2364, 0
          %v2432 = vsel %vm2397, %v2365, 0
          %v2435 = vsel %vm2397, %v2366, 0
          %v2438 = vsel %vm2397, %v2367, 0
          %v2441 = vsel %vm2397, %v2368, 0
          %v2444 = vsel %vm2397, %v2369, 0
          %v2447 = vsel %vm2397, %v2370, 0
          %v2450 = vsel %vm2397, %v2371, 0
          %v2453 = vsel %vm2397, %v2372, 0
          %v2456 = vsel %vm2397, %v2373, 0
          %v2459 = vsel %vm2397, %v2374, 0
          %v2462 = vsel %vm2397, %v2375, 0
          %v2465 = vsel %vm2397, %v2376, 0
          %v2468 = vsel %vm2397, %v2377, 0
          %v2471 = vsel %vm2397, %v2378, 0
          %v2474 = vsel %vm2397, %v2379, 0
          %v2477 = vsel %vm2397, %v2380, 0
          %v2480 = vsel %vm2397, %v2381, 0
          %v2483 = vsel %vm2397, %v2382, 0
          %v2486 = vsel %vm2397, %v2383, 0
          %v2489 = vsel %vm2397, %v2384, 0
          %v2492 = vsel %vm2397, %v2385, 0
          %2494 = vmatprep.subr.mxu0 0.0
          %2495 = vmatpush1.msra.mxu0 %v2386
          %2496 = vmatprep.subr.mxu0 0.0
          %2497 = vmatpush1.msra.mxu0 %v2387
          %2498 = vmatprep.subr.mxu0 0.0
          %2499 = vmatpush1.msra.mxu0 %v2388
          %2500 = vmatprep.subr.mxu0 0.0
          %2501 = vmatpush1.msra.mxu0 %v2389
          %2502 = vmatprep.subr.mxu0 0.0
          %2503 = vmatpush1.msra.mxu0 0.0
          %2504 = vmatprep.subr.mxu0 0.0
          %2505 = vmatpush1.msra.mxu0 0.0
          %2506 = vmatprep.subr.mxu0 0.0
          %2507 = vmatpush1.msra.mxu0 0.0
          %2508 = vmatprep.subr.mxu0 0.0
          %2509 = vmatpush1.msra.mxu0 0.0
          %2510 = vmatprep.subr.mxu0 0.0
          %2511 = vmatpush1.msra.mxu0 0.0
          %2512 = vmatprep.subr.mxu0 0.0
          %2513 = vmatpush1.msra.mxu0 0.0
          %2514 = vmatprep.subr.mxu0 0.0
          %2515 = vmatpush1.msra.mxu0 0.0
          %2516 = vmatprep.subr.mxu0 0.0
          %2517 = vmatpush1.msra.mxu0 0.0
          %2518 = vmatprep.subr.mxu0 0.0
          %2519 = vmatpush1.msra.mxu0 0.0
          %2520 = vmatprep.subr.mxu0 0.0
          %2521 = vmatpush1.msra.mxu0 0.0
          %2522 = vmatprep.subr.mxu0 0.0
          %2523 = vmatpush1.msra.mxu0 0.0
          %2524 = vmatprep.subr.mxu0 0.0
          %2525 = vmatpush1.msra.mxu0 0.0
          %2526 = vmatprep.subr.mxu0 0.0
          %2527 = vmatpush1.msra.mxu0 0.0
          %2528 = vmatprep.subr.mxu0 0.0
          %2529 = vmatpush1.msra.mxu0 0.0
          %2530 = vmatprep.subr.mxu0 0.0
          %2531 = vmatpush1.msra.mxu0 0.0
          %2532 = vmatprep.subr.mxu0 0.0
          %2533 = vmatpush1.msra.mxu0 0.0
          %2534 = vmatprep.subr.mxu0 0.0
          %2535 = vmatpush1.msra.mxu0 0.0
          %2536 = vmatprep.subr.mxu0 0.0
          %2537 = vmatpush1.msra.mxu0 0.0
          %2538 = vmatprep.subr.mxu0 0.0
          %2539 = vmatpush1.msra.mxu0 0.0
          %2540 = vmatprep.subr.mxu0 0.0
          %2541 = vmatpush1.msra.mxu0 0.0
          %2542 = vmatprep.subr.mxu0 0.0
          %2543 = vmatpush1.msra.mxu0 0.0
          %2544 = vmatprep.subr.mxu0 0.0
          %2545 = vmatpush1.msra.mxu0 0.0
          %2546 = vmatprep.subr.mxu0 0.0
          %2547 = vmatpush1.msra.mxu0 0.0
          %2548 = vmatprep.subr.mxu0 0.0
          %2549 = vmatpush1.msra.mxu0 0.0
          %2550 = vmatprep.subr.mxu0 0.0
          %2551 = vmatpush1.msra.mxu0 0.0
          %2552 = vmatprep.subr.mxu0 0.0
          %2553 = vmatpush1.msra.mxu0 0.0
          %2554 = vmatprep.subr.mxu0 0.0
          %2555 = vmatpush1.msra.mxu0 0.0
          %2556 = vmatprep.subr.mxu0 0.0
          %2557 = vmatpush1.msra.mxu0 0.0
          %2558 = vmatprep.mubr.f32.mxu0 0.0
          %2559 = vmatmul.mubr.f32.gmra.mrb[0].mxu0 %v2399
          %v2560 = vpop.f32.mrb[0].mxu0
          %v2561 = vadd.f32 %v2395, %v2560
          %v2562 = vpop.f32.mrb[0].mxu0
          %2563 = vmatprep.mubr.f32.mxu0 0.0
          %2564 = vmatmul.mubr.f32.gmra.mrb[0].mxu0 %v2402
          %v2565 = vpop.f32.mrb[0].mxu0
          %v2566 = vadd.f32 %v2395, %v2565
          %v2567 = vpop.f32.mrb[0].mxu0
          %2568 = vmatprep.mubr.f32.mxu0 0.0
          %2569 = vmatmul.mubr.f32.gmra.mrb[0].mxu0 %v2405
          %v2570 = vpop.f32.mrb[0].mxu0
          %v2571 = vadd.f32 %v2395, %v2570
          %v2572 = vpop.f32.mrb[0].mxu0
          %2573 = vmatprep.mubr.f32.mxu0 0.0
          %2574 = vmatmul.mubr.f32.gmra.mrb[0].mxu0 %v2408
          %v2575 = vpop.f32.mrb[0].mxu0
          %v2576 = vadd.f32 %v2395, %v2575
          %v2577 = vpop.f32.mrb[0].mxu0
          %2578 = vmatprep.mubr.f32.mxu0 0.0
          %2579 = vmatmul.mubr.f32.gmra.mrb[0].mxu0 %v2411
          %v2580 = vpop.f32.mrb[0].mxu0
          %v2581 = vadd.f32 %v2395, %v2580
          %v2582 = vpop.f32.mrb[0].mxu0
          %2583 = vmatprep.mubr.f32.mxu0 0.0
          %2584 = vmatmul.mubr.f32.gmra.mrb[0].mxu0 %v2414
          %v2585 = vpop.f32.mrb[0].mxu0
          %v2586 = vadd.f32 %v2395, %v2585
          %v2587 = vpop.f32.mrb[0].mxu0
          %2588 = vmatprep.mubr.f32.mxu0 0.0
          %2589 = vmatmul.mubr.f32.gmra.mrb[0].mxu0 %v2417
          %v2590 = vpop.f32.mrb[0].mxu0
          %v2591 = vadd.f32 %v2395, %v2590
          %v2592 = vpop.f32.mrb[0].mxu0
          %2593 = vmatprep.mubr.f32.mxu0 0.0
          %2594 = vmatmul.mubr.f32.gmra.mrb[0].mxu0 %v2420
          %v2595 = vpop.f32.mrb[0].mxu0
          %v2596 = vadd.f32 %v2395, %v2595
          %v2597 = vpop.f32.mrb[0].mxu0
          %2598 = vmatprep.mubr.f32.mxu0 0.0
          %2599 = vmatmul.mubr.f32.gmra.mrb[0].mxu0 %v2423
          %v2600 = vpop.f32.mrb[0].mxu0
          %v2601 = vadd.f32 %v2395, %v2600
          %v2602 = vpop.f32.mrb[0].mxu0
          %2603 = vmatprep.mubr.f32.mxu0 0.0
          %2604 = vmatmul.mubr.f32.gmra.mrb[0].mxu0 %v2426
          %v2605 = vpop.f32.mrb[0].mxu0
          %v2606 = vadd.f32 %v2395, %v2605
          %v2607 = vpop.f32.mrb[0].mxu0
          %2608 = vmatprep.mubr.f32.mxu0 0.0
          %2609 = vmatmul.mubr.f32.gmra.mrb[0].mxu0 %v2429
          %v2610 = vpop.f32.mrb[0].mxu0
          %v2611 = vadd.f32 %v2395, %v2610
          %v2612 = vpop.f32.mrb[0].mxu0
          %2613 = vmatprep.mubr.f32.mxu0 0.0
          %2614 = vmatmul.mubr.f32.gmra.mrb[0].mxu0 %v2432
          %v2615 = vpop.f32.mrb[0].mxu0
          %v2616 = vadd.f32 %v2395, %v2615
          %v2617 = vpop.f32.mrb[0].mxu0
          %2618 = vmatprep.mubr.f32.mxu0 0.0
          %2619 = vmatmul.mubr.f32.gmra.mrb[0].mxu0 %v2435
          %v2620 = vpop.f32.mrb[0].mxu0
          %v2621 = vadd.f32 %v2395, %v2620
          %v2622 = vpop.f32.mrb[0].mxu0
          %2623 = vmatprep.mubr.f32.mxu0 0.0
          %2624 = vmatmul.mubr.f32.gmra.mrb[0].mxu0 %v2438
          %v2625 = vpop.f32.mrb[0].mxu0
          %v2626 = vadd.f32 %v2395, %v2625
          %v2627 = vpop.f32.mrb[0].mxu0
          %2628 = vmatprep.mubr.f32.mxu0 0.0
          %2629 = vmatmul.mubr.f32.gmra.mrb[0].mxu0 %v2441
          %v2630 = vpop.f32.mrb[0].mxu0
          %v2631 = vadd.f32 %v2395, %v2630
          %v2632 = vpop.f32.mrb[0].mxu0
          %2633 = vmatprep.mubr.f32.mxu0 0.0
          %2634 = vmatmul.mubr.f32.gmra.mrb[0].mxu0 %v2444
          %v2635 = vpop.f32.mrb[0].mxu0
          %v2636 = vadd.f32 %v2395, %v2635
          %v2637 = vpop.f32.mrb[0].mxu0
          %2638 = vmatprep.mubr.f32.mxu0 0.0
          %2639 = vmatmul.mubr.f32.gmra.mrb[0].mxu0 %v2447
          %v2640 = vpop.f32.mrb[0].mxu0
          %v2641 = vadd.f32 %v2395, %v2640
          %v2642 = vpop.f32.mrb[0].mxu0
          %2643 = vmatprep.mubr.f32.mxu0 0.0
          %2644 = vmatmul.mubr.f32.gmra.mrb[0].mxu0 %v2450
          %v2645 = vpop.f32.mrb[0].mxu0
          %v2646 = vadd.f32 %v2395, %v2645
          %v2647 = vpop.f32.mrb[0].mxu0
          %2648 = vmatprep.mubr.f32.mxu0 0.0
          %2649 = vmatmul.mubr.f32.gmra.mrb[0].mxu0 %v2453
          %v2650 = vpop.f32.mrb[0].mxu0
          %v2651 = vadd.f32 %v2395, %v2650
          %v2652 = vpop.f32.mrb[0].mxu0
          %2653 = vmatprep.mubr.f32.mxu0 0.0
          %2654 = vmatmul.mubr.f32.gmra.mrb[0].mxu0 %v2456
          %v2655 = vpop.f32.mrb[0].mxu0
          %v2656 = vadd.f32 %v2395, %v2655
          %v2657 = vpop.f32.mrb[0].mxu0
          %2658 = vmatprep.mubr.f32.mxu0 0.0
          %2659 = vmatmul.mubr.f32.gmra.mrb[0].mxu0 %v2459
          %v2660 = vpop.f32.mrb[0].mxu0
          %v2661 = vadd.f32 %v2395, %v2660
          %v2662 = vpop.f32.mrb[0].mxu0
          %2663 = vmatprep.mubr.f32.mxu0 0.0
          %2664 = vmatmul.mubr.f32.gmra.mrb[0].mxu0 %v2462
          %v2665 = vpop.f32.mrb[0].mxu0
          %v2666 = vadd.f32 %v2395, %v2665
          %v2667 = vpop.f32.mrb[0].mxu0
          %2668 = vmatprep.mubr.f32.mxu0 0.0
          %2669 = vmatmul.mubr.f32.gmra.mrb[0].mxu0 %v2465
          %v2670 = vpop.f32.mrb[0].mxu0
          %v2671 = vadd.f32 %v2395, %v2670
          %v2672 = vpop.f32.mrb[0].mxu0
          %2673 = vmatprep.mubr.f32.mxu0 0.0
          %2674 = vmatmul.mubr.f32.gmra.mrb[0].mxu0 %v2468
          %v2675 = vpop.f32.mrb[0].mxu0
          %v2676 = vadd.f32 %v2395, %v2675
          %v2677 = vpop.f32.mrb[0].mxu0
          %2678 = vmatprep.mubr.f32.mxu0 0.0
          %2679 = vmatmul.mubr.f32.gmra.mrb[0].mxu0 %v2471
          %v2680 = vpop.f32.mrb[0].mxu0
          %v2681 = vadd.f32 %v2395, %v2680
          %v2682 = vpop.f32.mrb[0].mxu0
          %2683 = vmatprep.mubr.f32.mxu0 0.0
          %2684 = vmatmul.mubr.f32.gmra.mrb[0].mxu0 %v2474
          %v2685 = vpop.f32.mrb[0].mxu0
          %v2686 = vadd.f32 %v2395, %v2685
          %v2687 = vpop.f32.mrb[0].mxu0
          %2688 = vmatprep.mubr.f32.mxu0 0.0
          %2689 = vmatmul.mubr.f32.gmra.mrb[0].mxu0 %v2477
          %v2690 = vpop.f32.mrb[0].mxu0
          %v2691 = vadd.f32 %v2395, %v2690
          %v2692 = vpop.f32.mrb[0].mxu0
          %2693 = vmatprep.mubr.f32.mxu0 0.0
          %2694 = vmatmul.mubr.f32.gmra.mrb[0].mxu0 %v2480
          %v2695 = vpop.f32.mrb[0].mxu0
          %v2696 = vadd.f32 %v2395, %v2695
          %v2697 = vpop.f32.mrb[0].mxu0
          %2698 = vmatprep.mubr.f32.mxu0 0.0
          %2699 = vmatmul.mubr.f32.gmra.mrb[0].mxu0 %v2483
          %v2700 = vpop.f32.mrb[0].mxu0
          %v2701 = vadd.f32 %v2395, %v2700
          %v2702 = vpop.f32.mrb[0].mxu0
          %2703 = vmatprep.mubr.f32.mxu0 0.0
          %2704 = vmatmul.mubr.f32.gmra.mrb[0].mxu0 %v2486
          %v2705 = vpop.f32.mrb[0].mxu0
          %v2706 = vadd.f32 %v2395, %v2705
          %v2707 = vpop.f32.mrb[0].mxu0
          %2708 = vmatprep.mubr.f32.mxu0 0.0
          %2709 = vmatmul.mubr.f32.gmra.mrb[0].mxu0 %v2489
          %v2710 = vpop.f32.mrb[0].mxu0
          %v2711 = vadd.f32 %v2395, %v2710
          %v2712 = vpop.f32.mrb[0].mxu0
          %2713 = vmatprep.mubr.f32.mxu0 0.0
          %2714 = vmatmul.mubr.f32.gmra.mrb[0].mxu0 %v2492
          %v2715 = vpop.f32.mrb[0].mxu0
          %v2716 = vadd.f32 %v2395, %v2715
          %v2717 = vpop.f32.mrb[0].mxu0
          %2718 = vdwg.mxu0
          %v2719 = vld [vmem:[#allocation3] sm:$0xff]
          %v2720 = vld [vmem:[#allocation3 + $0x8] sm:$0xff]
          %v2721 = vld [vmem:[#allocation3 + $0x10] sm:$0xff]
          %v2722 = vld [vmem:[#allocation3 + $0x18] sm:$0xff]
          %v2723 = vld [vmem:[#allocation3 + $0x20] sm:$0xff]
          %v2724 = vld [vmem:[#allocation3 + $0x28] sm:$0xff]
          %v2725 = vld [vmem:[#allocation3 + $0x30] sm:$0xff]
          %v2726 = vld [vmem:[#allocation3 + $0x38] sm:$0xff]
          %v2727 = vld [vmem:[#allocation3 + $0x40] sm:$0xff]
          %v2728 = vld [vmem:[#allocation3 + $0x48] sm:$0xff]
          %v2729 = vld [vmem:[#allocation3 + $0x50] sm:$0xff]
          %v2730 = vld [vmem:[#allocation3 + $0x58] sm:$0xff]
          %v2731 = vld [vmem:[#allocation3 + $0x60] sm:$0xff]
          %v2732 = vld [vmem:[#allocation3 + $0x68] sm:$0xff]
          %v2733 = vld [vmem:[#allocation3 + $0x70] sm:$0xff]
          %v2734 = vld [vmem:[#allocation3 + $0x78] sm:$0xff]
          %v2735 = vld [vmem:[#allocation3 + $0x80] sm:$0xff]
          %v2736 = vld [vmem:[#allocation3 + $0x88] sm:$0xff]
          %v2737 = vld [vmem:[#allocation3 + $0x90] sm:$0xff]
          %v2738 = vld [vmem:[#allocation3 + $0x98] sm:$0xff]
          %v2739 = vld [vmem:[#allocation3 + $0xa0] sm:$0xff]
          %v2740 = vld [vmem:[#allocation3 + $0xa8] sm:$0xff]
          %v2741 = vld [vmem:[#allocation3 + $0xb0] sm:$0xff]
          %v2742 = vld [vmem:[#allocation3 + $0xb8] sm:$0xff]
          %v2743 = vld [vmem:[#allocation3 + $0xc0] sm:$0xff]
          %v2744 = vld [vmem:[#allocation3 + $0xc8] sm:$0xff]
          %v2745 = vld [vmem:[#allocation3 + $0xd0] sm:$0xff]
          %v2746 = vld [vmem:[#allocation3 + $0xd8] sm:$0xff]
          %v2747 = vld [vmem:[#allocation3 + $0xe0] sm:$0xff]
          %v2748 = vld [vmem:[#allocation3 + $0xe8] sm:$0xff]
          %v2749 = vld [vmem:[#allocation3 + $0xf0] sm:$0xff]
          %v2750 = vld [vmem:[#allocation3 + $0xf8] sm:$0xff]
          %v2751 = vadd.f32 %v2561, %v2719
          %v2752 = vadd.f32 %v2566, %v2720
          %v2753 = vadd.f32 %v2571, %v2721
          %v2754 = vadd.f32 %v2576, %v2722
          %v2755 = vadd.f32 %v2581, %v2723
          %v2756 = vadd.f32 %v2586, %v2724
          %v2757 = vadd.f32 %v2591, %v2725
          %v2758 = vadd.f32 %v2596, %v2726
          %v2759 = vadd.f32 %v2601, %v2727
          %v2760 = vadd.f32 %v2606, %v2728
          %v2761 = vadd.f32 %v2611, %v2729
          %v2762 = vadd.f32 %v2616, %v2730
          %v2763 = vadd.f32 %v2621, %v2731
          %v2764 = vadd.f32 %v2626, %v2732
          %v2765 = vadd.f32 %v2631, %v2733
          %v2766 = vadd.f32 %v2636, %v2734
          %v2767 = vadd.f32 %v2641, %v2735
          %v2768 = vadd.f32 %v2646, %v2736
          %v2769 = vadd.f32 %v2651, %v2737
          %v2770 = vadd.f32 %v2656, %v2738
          %v2771 = vadd.f32 %v2661, %v2739
          %v2772 = vadd.f32 %v2666, %v2740
          %v2773 = vadd.f32 %v2671, %v2741
          %v2774 = vadd.f32 %v2676, %v2742
          %v2775 = vadd.f32 %v2681, %v2743
          %v2776 = vadd.f32 %v2686, %v2744
          %v2777 = vadd.f32 %v2691, %v2745
          %v2778 = vadd.f32 %v2696, %v2746
          %v2779 = vadd.f32 %v2701, %v2747
          %v2780 = vadd.f32 %v2706, %v2748
          %v2781 = vadd.f32 %v2711, %v2749
          %v2782 = vadd.f32 %v2716, %v2750
          %v2783 = vmax.f32 %v2751, 0.0
          %v2784 = vmax.f32 %v2752, 0.0
          %v2785 = vmax.f32 %v2753, 0.0
          %v2786 = vmax.f32 %v2754, 0.0
          %v2787 = vmax.f32 %v2755, 0.0
          %v2788 = vmax.f32 %v2756, 0.0
          %v2789 = vmax.f32 %v2757, 0.0
          %v2790 = vmax.f32 %v2758, 0.0
          %v2791 = vmax.f32 %v2759, 0.0
          %v2792 = vmax.f32 %v2760, 0.0
          %v2793 = vmax.f32 %v2761, 0.0
          %v2794 = vmax.f32 %v2762, 0.0
          %v2795 = vmax.f32 %v2763, 0.0
          %v2796 = vmax.f32 %v2764, 0.0
          %v2797 = vmax.f32 %v2765, 0.0
          %v2798 = vmax.f32 %v2766, 0.0
          %v2799 = vmax.f32 %v2767, 0.0
          %v2800 = vmax.f32 %v2768, 0.0
          %v2801 = vmax.f32 %v2769, 0.0
          %v2802 = vmax.f32 %v2770, 0.0
          %v2803 = vmax.f32 %v2771, 0.0
          %v2804 = vmax.f32 %v2772, 0.0
          %v2805 = vmax.f32 %v2773, 0.0
          %v2806 = vmax.f32 %v2774, 0.0
          %v2807 = vmax.f32 %v2775, 0.0
          %v2808 = vmax.f32 %v2776, 0.0
          %v2809 = vmax.f32 %v2777, 0.0
          %v2810 = vmax.f32 %v2778, 0.0
          %v2811 = vmax.f32 %v2779, 0.0
          %v2812 = vmax.f32 %v2780, 0.0
          %v2813 = vmax.f32 %v2781, 0.0
          %v2814 = vmax.f32 %v2782, 0.0
          %v2815 = vld [vmem:[%s2] sm:$0x3]
          %v2816 = vlaneseq
          %v2817 = vshrl.u32 %v2816, 7
          %v2818 = vlaneseq
          %v2819 = vshrl.u32 %v2818, 7
          %v2820 = vsub.s32 0, %v2819
          %v2821 = vrot.slane %v2815, %v2820
          %v2822 = vlaneseq
          %v2823 = vshrl.u32 %v2822, 7
          %v2824 = vsub.s32 1, %v2823
          %v2825 = vrot.slane %v2815, %v2824
          %vm2826 = vcmp.eq.s32.totalorder %v2817, %v2821
          %vm2827 = vcmp.eq.s32.totalorder %v2817, %v2825
          %v2828 = vsel %vm2826, 1, 0
          %v2829 = vsel %vm2827, 1, 0
          %v2830 = vcvt.s32.f32 %v2828
          %v2831 = vcvt.s32.f32 %v2829
          %2832 = vmatprep.subr.mxu0 0.0
          %2833 = vmatpush1.msra.mxu0 %v2783
          %2834 = vmatprep.subr.mxu0 0.0
          %2835 = vmatpush1.msra.mxu0 %v2784
          %2836 = vmatprep.subr.mxu0 0.0
          %2837 = vmatpush1.msra.mxu0 %v2785
          %2838 = vmatprep.subr.mxu0 0.0
          %2839 = vmatpush1.msra.mxu0 %v2786
          %2840 = vmatprep.subr.mxu0 0.0
          %2841 = vmatpush1.msra.mxu0 %v2787
          %2842 = vmatprep.subr.mxu0 0.0
          %2843 = vmatpush1.msra.mxu0 %v2788
          %2844 = vmatprep.subr.mxu0 0.0
          %2845 = vmatpush1.msra.mxu0 %v2789
          %2846 = vmatprep.subr.mxu0 0.0
          %2847 = vmatpush1.msra.mxu0 %v2790
          %2848 = vmatprep.subr.mxu0 0.0
          %2849 = vmatpush1.msra.mxu0 %v2791
          %2850 = vmatprep.subr.mxu0 0.0
          %2851 = vmatpush1.msra.mxu0 %v2792
          %2852 = vmatprep.subr.mxu0 0.0
          %2853 = vmatpush1.msra.mxu0 %v2793
          %2854 = vmatprep.subr.mxu0 0.0
          %2855 = vmatpush1.msra.mxu0 %v2794
          %2856 = vmatprep.subr.mxu0 0.0
          %2857 = vmatpush1.msra.mxu0 %v2795
          %2858 = vmatprep.subr.mxu0 0.0
          %2859 = vmatpush1.msra.mxu0 %v2796
          %2860 = vmatprep.subr.mxu0 0.0
          %2861 = vmatpush1.msra.mxu0 %v2797
          %2862 = vmatprep.subr.mxu0 0.0
          %2863 = vmatpush1.msra.mxu0 %v2798
          %2864 = vmatprep.subr.mxu0 0.0
          %2865 = vmatpush1.msra.mxu0 %v2799
          %2866 = vmatprep.subr.mxu0 0.0
          %2867 = vmatpush1.msra.mxu0 %v2800
          %2868 = vmatprep.subr.mxu0 0.0
          %2869 = vmatpush1.msra.mxu0 %v2801
          %2870 = vmatprep.subr.mxu0 0.0
          %2871 = vmatpush1.msra.mxu0 %v2802
          %2872 = vmatprep.subr.mxu0 0.0
          %2873 = vmatpush1.msra.mxu0 %v2803
          %2874 = vmatprep.subr.mxu0 0.0
          %2875 = vmatpush1.msra.mxu0 %v2804
          %2876 = vmatprep.subr.mxu0 0.0
          %2877 = vmatpush1.msra.mxu0 %v2805
          %2878 = vmatprep.subr.mxu0 0.0
          %2879 = vmatpush1.msra.mxu0 %v2806
          %2880 = vmatprep.subr.mxu0 0.0
          %2881 = vmatpush1.msra.mxu0 %v2807
          %2882 = vmatprep.subr.mxu0 0.0
          %2883 = vmatpush1.msra.mxu0 %v2808
          %2884 = vmatprep.subr.mxu0 0.0
          %2885 = vmatpush1.msra.mxu0 %v2809
          %2886 = vmatprep.subr.mxu0 0.0
          %2887 = vmatpush1.msra.mxu0 %v2810
          %2888 = vmatprep.subr.mxu0 0.0
          %2889 = vmatpush1.msra.mxu0 %v2811
          %2890 = vmatprep.subr.mxu0 0.0
          %2891 = vmatpush1.msra.mxu0 %v2812
          %2892 = vmatprep.subr.mxu0 0.0
          %2893 = vmatpush1.msra.mxu0 %v2813
          %2894 = vmatprep.subr.mxu0 0.0
          %2895 = vmatpush1.msra.mxu0 %v2814
          %2896 = vmatprep.mubr.f32.mxu0 %v2831
          %2897 = vmatmul.mubr.f32.gmra.mrb[0].mxu0 %v2830
          %v2898 = vpop.f32.mrb[0].mxu0
          %v2899 = vadd.f32 0.0, %v2898
          %v2900 = vpop.f32.mrb[0].mxu0
          %2901 = vdwg.mxu0
          %v2902 = vld [vmem:[%s13] sm:$0xff]
          %v2903 = vld [vmem:[%s13 + $0x8] sm:$0xff]
          %v2904 = vld [vmem:[%s13 + $0x10] sm:$0xff]
          %v2905 = vld [vmem:[%s13 + $0x18] sm:$0xff]
          %v2906 = vld [vmem:[%s14] sm:$0x1]
          %v2908 = vlaneseq
          %v2909 = vshrl.u32 %v2908, 7
          %v2910 = vsub.s32 0, %v2909
          %v2911 = vrot.slane %v2906, %v2910
          %v2914 = vsel %vm2397, %v2899, 0
          %2916 = vmatprep.subr.mxu0 0.0
          %2917 = vmatpush1.msra.mxu0 %v2902
          %2918 = vmatprep.subr.mxu0 0.0
          %2919 = vmatpush1.msra.mxu0 %v2903
          %2920 = vmatprep.subr.mxu0 0.0
          %2921 = vmatpush1.msra.mxu0 %v2904
          %2922 = vmatprep.subr.mxu0 0.0
          %2923 = vmatpush1.msra.mxu0 %v2905
          %2924 = vmatprep.subr.mxu0 0.0
          %2925 = vmatpush1.msra.mxu0 0.0
          %2926 = vmatprep.subr.mxu0 0.0
          %2927 = vmatpush1.msra.mxu0 0.0
          %2928 = vmatprep.subr.mxu0 0.0
          %2929 = vmatpush1.msra.mxu0 0.0
          %2930 = vmatprep.subr.mxu0 0.0
          %2931 = vmatpush1.msra.mxu0 0.0
          %2932 = vmatprep.subr.mxu0 0.0
          %2933 = vmatpush1.msra.mxu0 0.0
          %2934 = vmatprep.subr.mxu0 0.0
          %2935 = vmatpush1.msra.mxu0 0.0
          %2936 = vmatprep.subr.mxu0 0.0
          %2937 = vmatpush1.msra.mxu0 0.0
          %2938 = vmatprep.subr.mxu0 0.0
          %2939 = vmatpush1.msra.mxu0 0.0
          %2940 = vmatprep.subr.mxu0 0.0
          %2941 = vmatpush1.msra.mxu0 0.0
          %2942 = vmatprep.subr.mxu0 0.0
          %2943 = vmatpush1.msra.mxu0 0.0
          %2944 = vmatprep.subr.mxu0 0.0
          %2945 = vmatpush1.msra.mxu0 0.0
          %2946 = vmatprep.subr.mxu0 0.0
          %2947 = vmatpush1.msra.mxu0 0.0
          %2948 = vmatprep.subr.mxu0 0.0
          %2949 = vmatpush1.msra.mxu0 0.0
          %2950 = vmatprep.subr.mxu0 0.0
          %2951 = vmatpush1.msra.mxu0 0.0
          %2952 = vmatprep.subr.mxu0 0.0
          %2953 = vmatpush1.msra.mxu0 0.0
          %2954 = vmatprep.subr.mxu0 0.0
          %2955 = vmatpush1.msra.mxu0 0.0
          %2956 = vmatprep.subr.mxu0 0.0
          %2957 = vmatpush1.msra.mxu0 0.0
          %2958 = vmatprep.subr.mxu0 0.0
          %2959 = vmatpush1.msra.mxu0 0.0
          %2960 = vmatprep.subr.mxu0 0.0
          %2961 = vmatpush1.msra.mxu0 0.0
          %2962 = vmatprep.subr.mxu0 0.0
          %2963 = vmatpush1.msra.mxu0 0.0
          %2964 = vmatprep.subr.mxu0 0.0
          %2965 = vmatpush1.msra.mxu0 0.0
          %2966 = vmatprep.subr.mxu0 0.0
          %2967 = vmatpush1.msra.mxu0 0.0
          %2968 = vmatprep.subr.mxu0 0.0
          %2969 = vmatpush1.msra.mxu0 0.0
          %2970 = vmatprep.subr.mxu0 0.0
          %2971 = vmatpush1.msra.mxu0 0.0
          %2972 = vmatprep.subr.mxu0 0.0
          %2973 = vmatpush1.msra.mxu0 0.0
          %2974 = vmatprep.subr.mxu0 0.0
          %2975 = vmatpush1.msra.mxu0 0.0
          %2976 = vmatprep.subr.mxu0 0.0
          %2977 = vmatpush1.msra.mxu0 0.0
          %2978 = vmatprep.subr.mxu0 0.0
          %2979 = vmatpush1.msra.mxu0 0.0
          %2980 = vmatprep.mubr.f32.mxu0 0.0
          %2981 = vmatmul.mubr.f32.gmra.mrb[0].mxu0 %v2914
          %v2982 = vpop.f32.mrb[0].mxu0
          %v2983 = vadd.f32 %v2911, %v2982
          %v2984 = vpop.f32.mrb[0].mxu0
          %2985 = vdwg.mxu0
          %vm2986 = vcmask 64512
          %2987 = vst.msk [vmem:[#allocation5] sm:$0xff] %vm2986, %v2983
        $region141: #{tpu_custom_call.1} parent=116 // pred_fallthru
          _
        // Predicated region
        $region142: #{tpu_custom_call.1} parent=116 // pred_check
          %p2988 = pneg %p372
        $region143: #{tpu_custom_call.1} parent=116 // pred_check_branch
          %2990 = sbr.rel (%p2988) target = $region145
        $region144: #{tpu_custom_call.1} parent=116 // pred_region
          %s2992 = ssub.s32 128, 128
          %2993 = vsyncadd [#allocation6], %s2992
          %s2995 = sshll.u32 [#allocation5], 4
          %s2996 = int_to_ptr.vmem [resolvable:$true] %s2995
          %2998 = dma.vmem_to_hbm [thread:$0]  %s2996, 128, %s15, [#allocation6]
        $region145: #{tpu_custom_call.1} parent=116 // pred_fallthru
          _
        // Predicated region
        $region146: #{tpu_custom_call.1} parent=116 // pred_check
          %p2999 = pneg %p372
        $region147: #{tpu_custom_call.1} parent=116 // pred_check_branch
          %3001 = sbr.rel (%p2999) target = $region149
        $region148: #{tpu_custom_call.1} parent=116 // pred_region
          %3002 = dma.done [#allocation6], 128
        $region149: #{tpu_custom_call.1} parent=116 // pred_fallthru
          _
      $region117: #{tpu_custom_call.1} parent=5 // pred_fallthru
        _
      %p3003 = scmp.le.s32.totalorder 2, %s22
      // Predicated region
      $region150: #{tpu_custom_call.1} parent=5 // pred_check
        %p3004 = pneg %p3003
      $region151: #{tpu_custom_call.1} parent=5 // pred_check_branch
        %3006 = sbr.rel (%p3004) target = $region153
      $region152: #{tpu_custom_call.1} parent=5 // pred_region
        %s3007 = ssub.s32 %s22, 2
      $region153: #{tpu_custom_call.1} parent=5 // pred_fallthru
        _
    $region6: #{tpu_custom_call.1} parent=1 // loop_footer
      %s26 = sadd.s32 1, %s22
    $region7: #{tpu_custom_call.1} parent=1 // loop_footer_branch
      %21 = sbr.rel target = $region3
    $region8: #{tpu_custom_call.1} parent=1 // loop_exit
      _
    %3008 = vsyncpa [#allocation6], 1
    %s3009 = scalar_lea.sflag [#allocation6], 1
    %3010 = vsyncpa %s3009, 1

</llo_original>
